<compile_context>
chip_gen: v5e
topology: v5e:2x2
jax: 0.10.0
libtpu: 0.0.40
codegen_flags: <defaults>
</compile_context>

<pallas_src>
import functools

import jax
import jax.numpy as jnp
from jax import lax
from jax.experimental import pallas as pl
from jax.experimental.pallas import tpu as pltpu

EPS = 1e-5  # PyTorch nn.LayerNorm default

PARAM_ORDER = ["ln1_w", "ln1_b", "ln2_w", "ln2_b",
               "wq", "wk", "wv", "w_proj", "b_proj",
               "w1", "b1", "w2", "b2"]
MATMUL_WEIGHTS = ("wq", "wk", "wv", "w_proj", "w1", "w2")


def _layer_norm(x, w, b):
    mu = jnp.mean(x, axis=-1, keepdims=True)
    var = jnp.mean((x - mu) ** 2, axis=-1, keepdims=True)
    return (x - mu) * lax.rsqrt(var + EPS) * w + b


def block_kernel(x_ref, ln1w_ref, ln1b_ref, ln2w_ref, ln2b_ref,
                 wq_ref, wk_ref, wv_ref, wproj_ref, bproj_ref,
                 w1_ref, b1_ref, w2_ref, b2_ref, o_ref,
                 q3_s, k3_s, v3_s, m_s, l_s, acc_s, *,
                 n_head, tq, tk, compute_dtype, approx_recip):
    T, C = x_ref.shape                      # full-sequence view for this batch element
    hs = C // n_head
    qi = pl.program_id(1)
    q_start = pl.multiple_of(qi * tq, tq)

    # ---- once per batch element: LN1 + (scaled) Q / K / V projections ----
    @pl.when(qi == 0)
    def _init_qkv():
        xn = _layer_norm(x_ref[...], ln1w_ref[...], ln1b_ref[...]).astype(compute_dtype)
        scale = C ** -0.5                   # PyTorch module uses C (= n_embed) ** -0.5
        q = (jnp.dot(xn, wq_ref[...], preferred_element_type=jnp.float32)
             * scale).astype(compute_dtype)                       # scale folded into Q
        k = jnp.dot(xn, wk_ref[...],
                    preferred_element_type=jnp.float32).astype(compute_dtype)
        v = jnp.dot(xn, wv_ref[...],
                    preferred_element_type=jnp.float32).astype(compute_dtype)
        # head split once per batch element (cast before the relayout)
        q3_s[...] = jnp.swapaxes(q.reshape(T, n_head, hs), 0, 1)  # (h, T, hs)
        k3_s[...] = jnp.swapaxes(k.reshape(T, n_head, hs), 0, 1)
        v3_s[...] = jnp.swapaxes(v.reshape(T, n_head, hs), 0, 1)

    # ---- flash-style causal attention for this query tile ----
    m_s[...] = jnp.full_like(m_s, -jnp.inf)
    l_s[...] = jnp.zeros_like(l_s)
    acc_s[...] = jnp.zeros_like(acc_s)

    q3 = q3_s[:, pl.ds(q_start, tq), :]                           # (h, tq, hs)
    row = q_start + lax.broadcasted_iota(jnp.int32, (tq, tk), 0)  # 2-D mask pieces
    col = lax.broadcasted_iota(jnp.int32, (tq, tk), 1)
    n_kv = pl.cdiv(q_start + tq, tk)        # causal: never visit tiles above the diagonal

    @pl.loop(0, n_kv)
    def _kv_step(kv):
        kv_start = pl.multiple_of(kv * tk, tk)
        k_t = k3_s[:, pl.ds(kv_start, tk), :]                     # (h, tk, hs)
        v_t = v3_s[:, pl.ds(kv_start, tk), :]
        s = jnp.einsum('hqd,hkd->hqk', q3, k_t,
                       preferred_element_type=jnp.float32)        # (h, tq, tk)
        mask = row >= (kv_start + col)                            # (tq, tk)
        s = jnp.where(mask[None], s, -jnp.inf)
        # key 0 is never masked, so the running max is finite after tile 0
        m_new = jnp.maximum(m_s[...], jnp.max(s, axis=-1, keepdims=True))
        alpha = jnp.exp(m_s[...] - m_new)
        p = jnp.exp(s - m_new)
        l_s[...] = alpha * l_s[...] + jnp.sum(p, axis=-1, keepdims=True)
        acc_s[...] = alpha * acc_s[...] + jnp.einsum(
            'hqk,hkd->hqd', p.astype(compute_dtype), v_t,
            preferred_element_type=jnp.float32)
        m_s[...] = m_new

    if approx_recip:
        head_out = acc_s[...] * pl.reciprocal(l_s[...], approx=True)
    else:
        head_out = acc_s[...] / l_s[...]
    cat = jnp.swapaxes(head_out.astype(compute_dtype), 0, 1).reshape(tq, C)  # (tq, C)

    x_q = x_ref[pl.ds(q_start, tq), :]                            # residual input (f32)
    sa = jnp.dot(cat, wproj_ref[...],
                 preferred_element_type=jnp.float32) + bproj_ref[...]
    x1 = x_q + sa                                                 # residual 1 (dropout = id)

    # ---- feed-forward on LayerNorm2(x1) ----
    xn2 = _layer_norm(x1, ln2w_ref[...], ln2b_ref[...]).astype(compute_dtype)
    hdn = jnp.maximum(
        jnp.dot(xn2, w1_ref[...], preferred_element_type=jnp.float32) + b1_ref[...], 0.0)
    ff = jnp.dot(hdn.astype(compute_dtype), w2_ref[...],
                 preferred_element_type=jnp.float32) + b2_ref[...]

    o_ref[...] = (x1 + ff).astype(o_ref.dtype)                    # residual 2 (dropout = id)


# ---------------------------------------------------------------------------
# Feature probe for single-buffered (grid-invariant) weight blocks.
# This is the ONLY place a broad except is used; the real pallas_call is never
# retried, so genuine lowering / VMEM errors always surface.
# ---------------------------------------------------------------------------
_SINGLE_BUFFER_OK = None


def _probe_kernel(x_ref, o_ref):
    o_ref[...] = x_ref[...] + 1.0


def _single_buffer_weights_supported():
    global _SINGLE_BUFFER_OK
    if _SINGLE_BUFFER_OK is None:
        try:
            spec = pl.BlockSpec((8, 128), lambda i: (0, 0),
                                pipeline_mode=pl.Buffered(1))
            out = pl.pallas_call(
                _probe_kernel,
                out_shape=jax.ShapeDtypeStruct((8, 128), jnp.float32),
                grid=(2,),
                in_specs=[spec],
                out_specs=pl.BlockSpec((8, 128), lambda i: (0, 0)),
            )(jnp.zeros((8, 128), jnp.float32))
            jax.block_until_ready(out)
            _SINGLE_BUFFER_OK = True
        except Exception:
            _SINGLE_BUFFER_OK = False
    return _SINGLE_BUFFER_OK


def _invariant_spec(shape, single_buffer):
    index_map = lambda b, qi, _z=(0,) * len(shape): _z   # grid-invariant block
    if single_buffer:
        # Invariant weights do not need double buffering — halves their VMEM use.
        return pl.BlockSpec(shape, index_map, pipeline_mode=pl.Buffered(1))
    return pl.BlockSpec(shape, index_map)


def _estimate_vmem_bytes(T, C, n_head, tq, compute_dtype, weight_buffers):
    """Rough padded VMEM footprint of the pallas_call below (advisory)."""
    cs = jnp.dtype(compute_dtype).itemsize
    hs = C // n_head
    lane = lambda n: max(-(-n // 128) * 128, 128)
    sub = lambda n: max(-(-n // 8) * 8, 8)
    x_blk = 2 * sub(T) * lane(C) * 4                      # double-buffered x block
    o_blk = 2 * sub(tq) * lane(C) * 4                     # double-buffered output block
    w_mm = (4 * sub(C) * lane(C) + sub(C) * lane(4 * C) + sub(4 * C) * lane(C)) * cs
    w_small = (6 * sub(1) * lane(C) + sub(1) * lane(4 * C)) * 4
    weights = weight_buffers * w_mm + 2 * w_small
    scratch = (3 * n_head * sub(T) * lane(hs) * cs        # q3 / k3 / v3
               + 2 * n_head * sub(tq) * lane(1) * 4       # running max / denom
               + n_head * sub(tq) * lane(hs) * 4)         # output accumulator
    return x_blk + o_blk + weights + scratch


def transformer_block(x, params, n_head, *, tq=None, tk=None,
                      compute_dtype=jnp.bfloat16,
                      vmem_limit_bytes=48 * 1024 * 1024):
    B, T, C = x.shape
    assert C % n_head == 0
    if tq is None:
        tq = T if T <= 128 else 128
    if tk is None:
        tk = tq
    assert T % tq == 0 and (tq == T or tq % 8 == 0)
    assert T % tk == 0 and (tk == T or tk % 8 == 0)
    nq = T // tq
    hs = C // n_head

    # Cast matmul weights once in the wrapper (halves weight DMA on the bf16 path).
    args = []
    for name in PARAM_ORDER:
        p = params[name]
        if name in MATMUL_WEIGHTS:
            p = p.astype(compute_dtype)
        args.append(p)

    single_buffer = _single_buffer_weights_supported()
    est = _estimate_vmem_bytes(T, C, n_head, tq, compute_dtype,
                               weight_buffers=1 if single_buffer else 2)
    if est > vmem_limit_bytes:
        raise ValueError(
            f"Estimated VMEM footprint {est / 2**20:.1f} MiB exceeds the "
            f"{vmem_limit_bytes / 2**20:.1f} MiB budget (v7x has 64 MiB total). "
            "Reduce T residency / tq, or tile w1/w2 along the 4*C axis with an "
            "extra grid dimension.")

    kern = functools.partial(
        block_kernel, n_head=n_head, tq=tq, tk=tk, compute_dtype=compute_dtype,
        approx_recip=(compute_dtype != jnp.float32))

    in_specs = [pl.BlockSpec((None, T, C), lambda b, qi: (b, 0, 0))]
    in_specs += [_invariant_spec(p.shape, single_buffer) for p in args]

    scratch_shapes = [
        pltpu.VMEM((n_head, T, hs), compute_dtype),   # q3 (scale folded in)
        pltpu.VMEM((n_head, T, hs), compute_dtype),   # k3
        pltpu.VMEM((n_head, T, hs), compute_dtype),   # v3
        pltpu.VMEM((n_head, tq, 1), jnp.float32),     # running max
        pltpu.VMEM((n_head, tq, 1), jnp.float32),     # running denominator
        pltpu.VMEM((n_head, tq, hs), jnp.float32),    # output accumulator
    ]

    out = pl.pallas_call(
        kern,
        out_shape=jax.ShapeDtypeStruct((B, T, C), x.dtype),
        grid=(B, nq),
        in_specs=in_specs,
        out_specs=pl.BlockSpec((None, tq, C), lambda b, qi: (b, qi, 0)),
        scratch_shapes=scratch_shapes,
        compiler_params=pltpu.CompilerParams(
            # B parallel (megacore splits the batch); qi must stay "arbitrary"
            # so the per-batch Q/K/V scratch is reused across query tiles.
            dimension_semantics=("parallel", "arbitrary"),
            vmem_limit_bytes=vmem_limit_bytes),
    )(x, *args)
    return jax.block_until_ready(out)


def init_params(key, n_embed):
    C = n_embed
    ks = jax.random.split(key, 8)

    def lin(k, fan_in, fan_out):
        bound = 1.0 / (fan_in ** 0.5)
        return jax.random.uniform(k, (fan_in, fan_out), jnp.float32, -bound, bound)

    return {
        "ln1_w": jnp.ones((1, C), jnp.float32),
        "ln1_b": jnp.zeros((1, C), jnp.float32),
        "ln2_w": jnp.ones((1, C), jnp.float32),
        "ln2_b": jnp.zeros((1, C), jnp.float32),
        "wq": lin(ks[0], C, C),
        "wk": lin(ks[1], C, C),
        "wv": lin(ks[2], C, C),
        "w_proj": lin(ks[3], C, C),
        "b_proj": jax.random.uniform(ks[4], (1, C), jnp.float32,
                                     -1.0 / C ** 0.5, 1.0 / C ** 0.5),
        "w1": lin(ks[5], C, 4 * C),
        "b1": jnp.zeros((1, 4 * C), jnp.float32),
        "w2": lin(ks[6], 4 * C, C),
        "b2": jnp.zeros((1, C), jnp.float32),
    }


def ref_block(x, params, n_head):
    """Pure-JAX reference mirroring the PyTorch module (eval mode)."""
    B, T, C = x.shape
    hs = C // n_head

    def ln(z, w, b):
        mu = z.mean(-1, keepdims=True)
        var = ((z - mu) ** 2).mean(-1, keepdims=True)
        return (z - mu) / jnp.sqrt(var + EPS) * w + b

    xn = ln(x, params["ln1_w"][0], params["ln1_b"][0])
    q = xn @ params["wq"]; k = xn @ params["wk"]; v = xn @ params["wv"]
    mask = jnp.tril(jnp.ones((T, T), bool))
    outs = []
    for h in range(n_head):
        sl = slice(h * hs, (h + 1) * hs)
        s = (q[..., sl] @ jnp.swapaxes(k[..., sl], -1, -2)) * (C ** -0.5)
        s = jnp.where(mask, s, -jnp.inf)
        outs.append(jax.nn.softmax(s, axis=-1) @ v[..., sl])
    sa = jnp.concatenate(outs, -1) @ params["w_proj"] + params["b_proj"][0]
    x1 = x + sa
    xn2 = ln(x1, params["ln2_w"][0], params["ln2_b"][0])
    ff = jnp.maximum(xn2 @ params["w1"] + params["b1"][0], 0.0) @ params["w2"] + params["b2"][0]
    return x1 + ff


if __name__ == "__main__":
    # Small, TPU-friendly demo: lane-dense C=128, T=32 split into 4 query
    # tiles of 8 (exercises the per-batch Q/K/V hoist and the causal
    # flash-style key-tile loop with a dynamic trip count).
    B, T, N_EMBED, N_HEAD, TQ, TK = 2, 32, 128, 4, 8, 8

    key = jax.random.PRNGKey(0)
    kx, kp = jax.random.split(key)
    x = jax.random.normal(kx, (B, T, N_EMBED), jnp.float32)
    params = init_params(kp, N_EMBED)

    expected = ref_block(x, params, N_HEAD)

    # Exact-semantics check: f32 MXU path.
    out_f32 = transformer_block(x, params, N_HEAD, tq=TQ, tk=TK,
                                compute_dtype=jnp.float32)
    assert out_f32.shape == (B, T, N_EMBED)
    assert jnp.allclose(out_f32, expected, atol=5e-4, rtol=5e-4), "f32 mismatch vs reference"

    # Performance path: bf16 matmul operands, f32 accumulation.
    out_bf16 = transformer_block(x, params, N_HEAD, tq=TQ, tk=TK)
    assert out_bf16.shape == (B, T, N_EMBED)
    assert jnp.allclose(out_bf16, expected, atol=1e-1, rtol=5e-2), "bf16 mismatch vs reference"

    print("KERNEL_OK")
</pallas_src>

<mosaic_0001>
module attributes {stable_mosaic.version = 11 : i64} {
  func.func @_probe_kernel(%arg0: i32, %arg1: memref<8x128xf32, #tpu.memory_space<vmem>>, %arg2: memref<8x128xf32, #tpu.memory_space<vmem>>) attributes {dimension_semantics = [#tpu.dimension_semantics<arbitrary>], iteration_bounds = array<i64: 2>, scalar_prefetch = 0 : i64, scratch_operands = 0 : i64, tpu.core_type = #tpu.core_type<tc>, window_params = [{pipeline_mode = #tpu.pipeline_mode<synchronous>, transform_indices = @transform_0, window_bounds = array<i64: 8, 128>}, {pipeline_mode = #tpu.pipeline_mode<synchronous>, transform_indices = @transform_1, window_bounds = array<i64: 8, 128>}]} {
    %c0 = arith.constant 0 : index
    %c0_0 = arith.constant 0 : index
    %0 = vector.load %arg1[%c0, %c0_0] : memref<8x128xf32, #tpu.memory_space<vmem>>, vector<8x128xf32>
    %cst = arith.constant 1.000000e+00 : f32
    %1 = vector.broadcast %cst : f32 to vector<8x128xf32>
    %2 = arith.addf %0, %1 : vector<8x128xf32>
    %c0_1 = arith.constant 0 : index
    %c0_2 = arith.constant 0 : index
    %3 = vector.load %arg2[%c0_1, %c0_2] : memref<8x128xf32, #tpu.memory_space<vmem>>, vector<8x128xf32>
    tpu.vector_store %arg2[%c0_1, %c0_2], %2 {strides = array<i32>} : memref<8x128xf32, #tpu.memory_space<vmem>>, vector<8x128xf32>,
    return
  }
  func.func @transform_0(%arg0: i32) -> (i32, i32) {
    %c0_i32 = arith.constant 0 : i32
    %c0_i32_0 = arith.constant 0 : i32
    %c0_i32_1 = arith.constant 0 : i32
    return %c0_i32, %c0_i32_0 : i32, i32
  }
  func.func @transform_1(%arg0: i32) -> (i32, i32) {
    %c0_i32 = arith.constant 0 : i32
    %c0_i32_0 = arith.constant 0 : i32
    %c0_i32_1 = arith.constant 0 : i32
    return %c0_i32, %c0_i32_0 : i32, i32
  }
}

module attributes {stable_mosaic.version = 11 : i64} {
  func.func @block_kernel(%arg0: i32, %arg1: i32, %arg2: memref<1x32x128xf32, #tpu.memory_space<vmem>>, %arg3: memref<1x128xf32, #tpu.memory_space<vmem>>, %arg4: memref<1x128xf32, #tpu.memory_space<vmem>>, %arg5: memref<1x128xf32, #tpu.memory_space<vmem>>, %arg6: memref<1x128xf32, #tpu.memory_space<vmem>>, %arg7: memref<128x128xf32, #tpu.memory_space<vmem>>, %arg8: memref<128x128xf32, #tpu.memory_space<vmem>>, %arg9: memref<128x128xf32, #tpu.memory_space<vmem>>, %arg10: memref<128x128xf32, #tpu.memory_space<vmem>>, %arg11: memref<1x128xf32, #tpu.memory_space<vmem>>, %arg12: memref<128x512xf32, #tpu.memory_space<vmem>>, %arg13: memref<1x512xf32, #tpu.memory_space<vmem>>, %arg14: memref<512x128xf32, #tpu.memory_space<vmem>>, %arg15: memref<1x128xf32, #tpu.memory_space<vmem>>, %arg16: memref<1x8x128xf32, #tpu.memory_space<vmem>>, %arg17: memref<4x32x32xf32, #tpu.memory_space<vmem>>, %arg18: memref<4x32x32xf32, #tpu.memory_space<vmem>>, %arg19: memref<4x32x32xf32, #tpu.memory_space<vmem>>, %arg20: memref<4x8x1xf32, #tpu.memory_space<vmem>>, %arg21: memref<4x8x1xf32, #tpu.memory_space<vmem>>, %arg22: memref<4x8x32xf32, #tpu.memory_space<vmem>>) attributes {dimension_semantics = [#tpu.dimension_semantics<parallel>, #tpu.dimension_semantics<arbitrary>], iteration_bounds = array<i64: 2, 4>, scalar_prefetch = 0 : i64, scratch_operands = 6 : i64, tpu.core_type = #tpu.core_type<tc>, window_params = [{transform_indices = @transform_0, window_bounds = array<i64: 1, 32, 128>}, {pipeline_mode = #tpu.pipeline_mode<synchronous>, transform_indices = @transform_1, window_bounds = array<i64: 1, 128>}, {pipeline_mode = #tpu.pipeline_mode<synchronous>, transform_indices = @transform_2, window_bounds = array<i64: 1, 128>}, {pipeline_mode = #tpu.pipeline_mode<synchronous>, transform_indices = @transform_3, window_bounds = array<i64: 1, 128>}, {pipeline_mode = #tpu.pipeline_mode<synchronous>, transform_indices = @transform_4, window_bounds = array<i64: 1, 128>}, {pipeline_mode = #tpu.pipeline_mode<synchronous>, transform_indices = @transform_5, window_bounds = array<i64: 128, 128>}, {pipeline_mode = #tpu.pipeline_mode<synchronous>, transform_indices = @transform_6, window_bounds = array<i64: 128, 128>}, {pipeline_mode = #tpu.pipeline_mode<synchronous>, transform_indices = @transform_7, window_bounds = array<i64: 128, 128>}, {pipeline_mode = #tpu.pipeline_mode<synchronous>, transform_indices = @transform_8, window_bounds = array<i64: 128, 128>}, {pipeline_mode = #tpu.pipeline_mode<synchronous>, transform_indices = @transform_9, window_bounds = array<i64: 1, 128>}, {pipeline_mode = #tpu.pipeline_mode<synchronous>, transform_indices = @transform_10, window_bounds = array<i64: 128, 512>}, {pipeline_mode = #tpu.pipeline_mode<synchronous>, transform_indices = @transform_11, window_bounds = array<i64: 1, 512>}, {pipeline_mode = #tpu.pipeline_mode<synchronous>, transform_indices = @transform_12, window_bounds = array<i64: 512, 128>}, {pipeline_mode = #tpu.pipeline_mode<synchronous>, transform_indices = @transform_13, window_bounds = array<i64: 1, 128>}, {transform_indices = @transform_14, window_bounds = array<i64: 1, 8, 128>}]} {
    %c8_i32 = arith.constant 8 : i32
    %0 = arith.muli %arg1, %c8_i32 : i32
    %1 = tpu.assume_multiple %0, 8 : i32
    %c0_i32 = arith.constant 0 : i32
    %2 = arith.cmpi eq, %arg1, %c0_i32 : i32
    %3 = arith.extui %2 : i1 to i32
    %c0_i32_0 = arith.constant 0 : i32
    %4 = arith.cmpi ne, %3, %c0_i32_0 : i32
    scf.if %4 {
      %c0_58 = arith.constant 0 : index
      %c0_59 = arith.constant 0 : index
      %c0_60 = arith.constant 0 : index
      %81 = vector.load %arg2[%c0_58, %c0_59, %c0_60] : memref<1x32x128xf32, #tpu.memory_space<vmem>>, vector<1x32x128xf32>
      %82 = vector.shape_cast %81 : vector<1x32x128xf32> to vector<32x128xf32>
      %c0_61 = arith.constant 0 : index
      %c0_62 = arith.constant 0 : index
      %83 = vector.load %arg3[%c0_61, %c0_62] : memref<1x128xf32, #tpu.memory_space<vmem>>, vector<1x128xf32>
      %c0_63 = arith.constant 0 : index
      %c0_64 = arith.constant 0 : index
      %84 = vector.load %arg4[%c0_63, %c0_64] : memref<1x128xf32, #tpu.memory_space<vmem>>, vector<1x128xf32>
      %cst_65 = arith.constant dense<0.000000e+00> : vector<32xf32>
      %85 = vector.multi_reduction <add>, %82, %cst_65 [1] : vector<32x128xf32> to vector<32xf32>
      %86 = vector.shape_cast %85 : vector<32xf32> to vector<32x1xf32>
      %cst_66 = arith.constant 1.280000e+02 : f32
      %87 = vector.broadcast %cst_66 : f32 to vector<32x1xf32>
      %88 = arith.divf %86, %87 : vector<32x1xf32>
      %89 = vector.broadcast %88 : vector<32x1xf32> to vector<32x128xf32>
      %90 = arith.subf %82, %89 : vector<32x128xf32>
      %91 = arith.mulf %90, %90 : vector<32x128xf32>
      %cst_67 = arith.constant dense<0.000000e+00> : vector<32xf32>
      %92 = vector.multi_reduction <add>, %91, %cst_67 [1] : vector<32x128xf32> to vector<32xf32>
      %93 = vector.shape_cast %92 : vector<32xf32> to vector<32x1xf32>
      %cst_68 = arith.constant 1.280000e+02 : f32
      %94 = vector.broadcast %cst_68 : f32 to vector<32x1xf32>
      %95 = arith.divf %93, %94 : vector<32x1xf32>
      %96 = vector.broadcast %88 : vector<32x1xf32> to vector<32x128xf32>
      %97 = arith.subf %82, %96 : vector<32x128xf32>
      %cst_69 = arith.constant 9.99999974E-6 : f32
      %98 = vector.broadcast %cst_69 : f32 to vector<32x1xf32>
      %99 = arith.addf %95, %98 : vector<32x1xf32>
      %100 = math.rsqrt %99 : vector<32x1xf32>
      %101 = vector.broadcast %100 : vector<32x1xf32> to vector<32x128xf32>
      %102 = arith.mulf %97, %101 : vector<32x128xf32>
      %103 = vector.broadcast %83 : vector<1x128xf32> to vector<32x128xf32>
      %104 = arith.mulf %102, %103 : vector<32x128xf32>
      %105 = vector.broadcast %84 : vector<1x128xf32> to vector<32x128xf32>
      %106 = arith.addf %104, %105 : vector<32x128xf32>
      %c0_70 = arith.constant 0 : index
      %c0_71 = arith.constant 0 : index
      %107 = vector.load %arg7[%c0_70, %c0_71] : memref<128x128xf32, #tpu.memory_space<vmem>>, vector<128x128xf32>
      %cst_72 = arith.constant dense<0.000000e+00> : vector<32x128xf32>
      %108 = tpu.matmul %106, %107, %cst_72 {dimension_numbers = #tpu.dot_dimension_numbers<[1], [0], [0], [1], [0, 0, 1, 1], [], []>} : vector<32x128xf32>, vector<128x128xf32>, vector<32x128xf32> -> vector<32x128xf32>
      %cst_73 = arith.constant 0.0883883461 : f32
      %109 = vector.broadcast %cst_73 : f32 to vector<32x128xf32>
      %110 = arith.mulf %108, %109 : vector<32x128xf32>
      %c0_74 = arith.constant 0 : index
      %c0_75 = arith.constant 0 : index
      %111 = vector.load %arg8[%c0_74, %c0_75] : memref<128x128xf32, #tpu.memory_space<vmem>>, vector<128x128xf32>
      %cst_76 = arith.constant dense<0.000000e+00> : vector<32x128xf32>
      %112 = tpu.matmul %106, %111, %cst_76 {dimension_numbers = #tpu.dot_dimension_numbers<[1], [0], [0], [1], [0, 0, 1, 1], [], []>} : vector<32x128xf32>, vector<128x128xf32>, vector<32x128xf32> -> vector<32x128xf32>
      %c0_77 = arith.constant 0 : index
      %c0_78 = arith.constant 0 : index
      %113 = vector.load %arg9[%c0_77, %c0_78] : memref<128x128xf32, #tpu.memory_space<vmem>>, vector<128x128xf32>
      %cst_79 = arith.constant dense<0.000000e+00> : vector<32x128xf32>
      %114 = tpu.matmul %106, %113, %cst_79 {dimension_numbers = #tpu.dot_dimension_numbers<[1], [0], [0], [1], [0, 0, 1, 1], [], []>} : vector<32x128xf32>, vector<128x128xf32>, vector<32x128xf32> -> vector<32x128xf32>
      %115 = vector.shape_cast %110 : vector<32x128xf32> to vector<32x4x32xf32>
      %116 = tpu.transpose %115, [1, 0, 2] : vector<32x4x32xf32> -> vector<4x32x32xf32>
      %c0_80 = arith.constant 0 : index
      %c0_81 = arith.constant 0 : index
      %c0_82 = arith.constant 0 : index
      %117 = vector.load %arg17[%c0_80, %c0_81, %c0_82] : memref<4x32x32xf32, #tpu.memory_space<vmem>>, vector<4x32x32xf32>
      tpu.vector_store %arg17[%c0_80, %c0_81, %c0_82], %116 {strides = array<i32>} : memref<4x32x32xf32, #tpu.memory_space<vmem>>, vector<4x32x32xf32>,
      %118 = vector.shape_cast %112 : vector<32x128xf32> to vector<32x4x32xf32>
      %119 = tpu.transpose %118, [1, 0, 2] : vector<32x4x32xf32> -> vector<4x32x32xf32>
      %c0_83 = arith.constant 0 : index
      %c0_84 = arith.constant 0 : index
      %c0_85 = arith.constant 0 : index
      %120 = vector.load %arg18[%c0_83, %c0_84, %c0_85] : memref<4x32x32xf32, #tpu.memory_space<vmem>>, vector<4x32x32xf32>
      tpu.vector_store %arg18[%c0_83, %c0_84, %c0_85], %119 {strides = array<i32>} : memref<4x32x32xf32, #tpu.memory_space<vmem>>, vector<4x32x32xf32>,
      %121 = vector.shape_cast %114 : vector<32x128xf32> to vector<32x4x32xf32>
      %122 = tpu.transpose %121, [1, 0, 2] : vector<32x4x32xf32> -> vector<4x32x32xf32>
      %c0_86 = arith.constant 0 : index
      %c0_87 = arith.constant 0 : index
      %c0_88 = arith.constant 0 : index
      %123 = vector.load %arg19[%c0_86, %c0_87, %c0_88] : memref<4x32x32xf32, #tpu.memory_space<vmem>>, vector<4x32x32xf32>
      tpu.vector_store %arg19[%c0_86, %c0_87, %c0_88], %122 {strides = array<i32>} : memref<4x32x32xf32, #tpu.memory_space<vmem>>, vector<4x32x32xf32>,
    } else {
    }
    %cst = arith.constant 0xFF800000 : f32
    %5 = vector.broadcast %cst : f32 to vector<4x8x1xf32>
    %c0 = arith.constant 0 : index
    %c0_1 = arith.constant 0 : index
    %c0_2 = arith.constant 0 : index
    %6 = vector.load %arg20[%c0, %c0_1, %c0_2] : memref<4x8x1xf32, #tpu.memory_space<vmem>>, vector<4x8x1xf32>
    tpu.vector_store %arg20[%c0, %c0_1, %c0_2], %5 {strides = array<i32>} : memref<4x8x1xf32, #tpu.memory_space<vmem>>, vector<4x8x1xf32>,
    %cst_3 = arith.constant 0.000000e+00 : f32
    %7 = vector.broadcast %cst_3 : f32 to vector<4x8x1xf32>
    %c0_4 = arith.constant 0 : index
    %c0_5 = arith.constant 0 : index
    %c0_6 = arith.constant 0 : index
    %8 = vector.load %arg21[%c0_4, %c0_5, %c0_6] : memref<4x8x1xf32, #tpu.memory_space<vmem>>, vector<4x8x1xf32>
    tpu.vector_store %arg21[%c0_4, %c0_5, %c0_6], %7 {strides = array<i32>} : memref<4x8x1xf32, #tpu.memory_space<vmem>>, vector<4x8x1xf32>,
    %cst_7 = arith.constant 0.000000e+00 : f32
    %9 = vector.broadcast %cst_7 : f32 to vector<4x8x32xf32>
    %c0_8 = arith.constant 0 : index
    %c0_9 = arith.constant 0 : index
    %c0_10 = arith.constant 0 : index
    %10 = vector.load %arg22[%c0_8, %c0_9, %c0_10] : memref<4x8x32xf32, #tpu.memory_space<vmem>>, vector<4x8x32xf32>
    tpu.vector_store %arg22[%c0_8, %c0_9, %c0_10], %9 {strides = array<i32>} : memref<4x8x32xf32, #tpu.memory_space<vmem>>, vector<4x8x32xf32>,
    %c0_11 = arith.constant 0 : index
    %11 = arith.index_cast %1 : i32 to index
    %c0_12 = arith.constant 0 : index
    %12 = vector.load %arg17[%c0_11, %11, %c0_12] : memref<4x32x32xf32, #tpu.memory_space<vmem>>, vector<4x8x32xf32>
    %13 = tpu.iota {dimensions = array<i32: 0>} : vector<8x8xi32>
    %14 = vector.broadcast %1 : i32 to vector<8x8xi32>
    %15 = arith.addi %14, %13 : vector<8x8xi32>
    %16 = tpu.iota {dimensions = array<i32: 1>} : vector<8x8xi32>
    %c8_i32_13 = arith.constant 8 : i32
    %17 = arith.addi %1, %c8_i32_13 : i32
    %c7_i32 = arith.constant 7 : i32
    %18 = arith.addi %17, %c7_i32 : i32
    %c8_i32_14 = arith.constant 8 : i32
    %19 = arith.divsi %18, %c8_i32_14 : i32
    %c0_i32_15 = arith.constant 0 : i32
    %20 = arith.subi %19, %c0_i32_15 : i32
    %c1_i32 = arith.constant 1 : i32
    %c1_i32_16 = arith.constant 1 : i32
    %21 = arith.subi %c1_i32, %c1_i32_16 : i32
    %22 = arith.addi %20, %21 : i32
    %c1_i32_17 = arith.constant 1 : i32
    %23 = arith.divsi %22, %c1_i32_17 : i32
    %c1_i32_18 = arith.constant 1 : i32
    %c0_i32_19 = arith.constant 0 : i32
    %c0_i32_20 = arith.constant 0 : i32
    %24 = arith.subi %23, %c0_i32_20 : i32
    %25 = arith.addi %c0_i32_20, %24 : i32
    %c1_i32_21 = arith.constant 1 : i32
    scf.for %arg23 = %c0_i32_20 to %25 step %c1_i32_21  : i32 {
      %81 = arith.muli %arg23, %c1_i32_18 : i32
      %82 = arith.addi %c0_i32_19, %81 : i32
      %c8_i32_58 = arith.constant 8 : i32
      %83 = arith.muli %82, %c8_i32_58 : i32
      %84 = tpu.assume_multiple %83, 8 : i32
      %c0_59 = arith.constant 0 : index
      %85 = arith.index_cast %84 : i32 to index
      %c0_60 = arith.constant 0 : index
      %86 = vector.load %arg18[%c0_59, %85, %c0_60] : memref<4x32x32xf32, #tpu.memory_space<vmem>>, vector<4x8x32xf32>
      %c0_61 = arith.constant 0 : index
      %87 = arith.index_cast %84 : i32 to index
      %c0_62 = arith.constant 0 : index
      %88 = vector.load %arg19[%c0_61, %87, %c0_62] : memref<4x32x32xf32, #tpu.memory_space<vmem>>, vector<4x8x32xf32>
      "tpu.trace_start"() <{level = 10 : i32, message = "hqd,hkd->hqk"}> : () -> ()
      %cst_63 = arith.constant dense<0.000000e+00> : vector<4x8x8xf32>
      %89 = tpu.matmul %12, %86, %cst_63 {dimension_numbers = #tpu.dot_dimension_numbers<[2], [2], [1], [1], [0, 0, 0, 1, 1, 1], [0], [0]>} : vector<4x8x32xf32>, vector<4x8x32xf32>, vector<4x8x8xf32> -> vector<4x8x8xf32>
      "tpu.trace_stop"() : () -> ()
      %90 = vector.broadcast %84 : i32 to vector<8x8xi32>
      %91 = arith.addi %90, %16 : vector<8x8xi32>
      %92 = arith.cmpi sge, %15, %91 : vector<8x8xi32>
      %93 = vector.shape_cast %92 : vector<8x8xi1> to vector<1x8x8xi1>
      %cst_64 = arith.constant 0xFF800000 : f32
      %94 = vector.shape_cast %93 : vector<1x8x8xi1> to vector<1x8x8xi1>
      %95 = vector.broadcast %94 : vector<1x8x8xi1> to vector<4x8x8xi1>
      %96 = vector.broadcast %cst_64 : f32 to vector<4x8x8xf32>
      %97 = arith.select %95, %89, %96 : vector<4x8x8xi1>, vector<4x8x8xf32>
      %c0_65 = arith.constant 0 : index
      %c0_66 = arith.constant 0 : index
      %c0_67 = arith.constant 0 : index
      %98 = vector.load %arg20[%c0_65, %c0_66, %c0_67] : memref<4x8x1xf32, #tpu.memory_space<vmem>>, vector<4x8x1xf32>
      %cst_68 = arith.constant dense<0xFF800000> : vector<4x8xf32>
      %99 = vector.multi_reduction <maximumf>, %97, %cst_68 [2] : vector<4x8x8xf32> to vector<4x8xf32>
      %100 = vector.shape_cast %99 : vector<4x8xf32> to vector<4x8x1xf32>
      %101 = arith.maximumf %98, %100 : vector<4x8x1xf32>
      %c0_69 = arith.constant 0 : index
      %c0_70 = arith.constant 0 : index
      %c0_71 = arith.constant 0 : index
      %102 = vector.load %arg20[%c0_69, %c0_70, %c0_71] : memref<4x8x1xf32, #tpu.memory_space<vmem>>, vector<4x8x1xf32>
      %103 = arith.subf %102, %101 : vector<4x8x1xf32>
      %104 = math.exp %103 : vector<4x8x1xf32>
      %105 = vector.broadcast %101 : vector<4x8x1xf32> to vector<4x8x8xf32>
      %106 = arith.subf %97, %105 : vector<4x8x8xf32>
      %107 = math.exp %106 : vector<4x8x8xf32>
      %c0_72 = arith.constant 0 : index
      %c0_73 = arith.constant 0 : index
      %c0_74 = arith.constant 0 : index
      %108 = vector.load %arg21[%c0_72, %c0_73, %c0_74] : memref<4x8x1xf32, #tpu.memory_space<vmem>>, vector<4x8x1xf32>
      %109 = arith.mulf %104, %108 : vector<4x8x1xf32>
      %cst_75 = arith.constant dense<0.000000e+00> : vector<4x8xf32>
      %110 = vector.multi_reduction <add>, %107, %cst_75 [2] : vector<4x8x8xf32> to vector<4x8xf32>
      %111 = vector.shape_cast %110 : vector<4x8xf32> to vector<4x8x1xf32>
      %112 = arith.addf %109, %111 : vector<4x8x1xf32>
      %c0_76 = arith.constant 0 : index
      %c0_77 = arith.constant 0 : index
      %c0_78 = arith.constant 0 : index
      %113 = vector.load %arg21[%c0_76, %c0_77, %c0_78] : memref<4x8x1xf32, #tpu.memory_space<vmem>>, vector<4x8x1xf32>
      tpu.vector_store %arg21[%c0_76, %c0_77, %c0_78], %112 {strides = array<i32>} : memref<4x8x1xf32, #tpu.memory_space<vmem>>, vector<4x8x1xf32>,
      %c0_79 = arith.constant 0 : index
      %c0_80 = arith.constant 0 : index
      %c0_81 = arith.constant 0 : index
      %114 = vector.load %arg22[%c0_79, %c0_80, %c0_81] : memref<4x8x32xf32, #tpu.memory_space<vmem>>, vector<4x8x32xf32>
      %115 = vector.broadcast %104 : vector<4x8x1xf32> to vector<4x8x32xf32>
      %116 = arith.mulf %115, %114 : vector<4x8x32xf32>
      "tpu.trace_start"() <{level = 10 : i32, message = "hqk,hkd->hqd"}> : () -> ()
      %cst_82 = arith.constant dense<0.000000e+00> : vector<4x8x32xf32>
      %117 = tpu.matmul %107, %88, %cst_82 {dimension_numbers = #tpu.dot_dimension_numbers<[2], [1], [1], [2], [0, 0, 0, 1, 1, 2], [0], [0]>} : vector<4x8x8xf32>, vector<4x8x32xf32>, vector<4x8x32xf32> -> vector<4x8x32xf32>
      "tpu.trace_stop"() : () -> ()
      %118 = arith.addf %116, %117 : vector<4x8x32xf32>
      %c0_83 = arith.constant 0 : index
      %c0_84 = arith.constant 0 : index
      %c0_85 = arith.constant 0 : index
      %119 = vector.load %arg22[%c0_83, %c0_84, %c0_85] : memref<4x8x32xf32, #tpu.memory_space<vmem>>, vector<4x8x32xf32>
      tpu.vector_store %arg22[%c0_83, %c0_84, %c0_85], %118 {strides = array<i32>} : memref<4x8x32xf32, #tpu.memory_space<vmem>>, vector<4x8x32xf32>,
      %c0_86 = arith.constant 0 : index
      %c0_87 = arith.constant 0 : index
      %c0_88 = arith.constant 0 : index
      %120 = vector.load %arg20[%c0_86, %c0_87, %c0_88] : memref<4x8x1xf32, #tpu.memory_space<vmem>>, vector<4x8x1xf32>
      tpu.vector_store %arg20[%c0_86, %c0_87, %c0_88], %101 {strides = array<i32>} : memref<4x8x1xf32, #tpu.memory_space<vmem>>, vector<4x8x1xf32>,
    }
    %c0_22 = arith.constant 0 : index
    %c0_23 = arith.constant 0 : index
    %c0_24 = arith.constant 0 : index
    %26 = vector.load %arg22[%c0_22, %c0_23, %c0_24] : memref<4x8x32xf32, #tpu.memory_space<vmem>>, vector<4x8x32xf32>
    %c0_25 = arith.constant 0 : index
    %c0_26 = arith.constant 0 : index
    %c0_27 = arith.constant 0 : index
    %27 = vector.load %arg21[%c0_25, %c0_26, %c0_27] : memref<4x8x1xf32, #tpu.memory_space<vmem>>, vector<4x8x1xf32>
    %28 = vector.broadcast %27 : vector<4x8x1xf32> to vector<4x8x32xf32>
    %29 = arith.divf %26, %28 : vector<4x8x32xf32>
    %30 = tpu.transpose %29, [1, 0, 2] : vector<4x8x32xf32> -> vector<8x4x32xf32>
    %31 = vector.shape_cast %30 : vector<8x4x32xf32> to vector<8x128xf32>
    %c0_28 = arith.constant 0 : index
    %32 = arith.index_cast %1 : i32 to index
    %c0_29 = arith.constant 0 : index
    %33 = vector.load %arg2[%c0_28, %32, %c0_29] : memref<1x32x128xf32, #tpu.memory_space<vmem>>, vector<1x8x128xf32>
    %34 = vector.shape_cast %33 : vector<1x8x128xf32> to vector<8x128xf32>
    %c0_30 = arith.constant 0 : index
    %c0_31 = arith.constant 0 : index
    %35 = vector.load %arg10[%c0_30, %c0_31] : memref<128x128xf32, #tpu.memory_space<vmem>>, vector<128x128xf32>
    %cst_32 = arith.constant dense<0.000000e+00> : vector<8x128xf32>
    %36 = tpu.matmul %31, %35, %cst_32 {dimension_numbers = #tpu.dot_dimension_numbers<[1], [0], [0], [1], [0, 0, 1, 1], [], []>} : vector<8x128xf32>, vector<128x128xf32>, vector<8x128xf32> -> vector<8x128xf32>
    %c0_33 = arith.constant 0 : index
    %c0_34 = arith.constant 0 : index
    %37 = vector.load %arg11[%c0_33, %c0_34] : memref<1x128xf32, #tpu.memory_space<vmem>>, vector<1x128xf32>
    %38 = vector.broadcast %37 : vector<1x128xf32> to vector<8x128xf32>
    %39 = arith.addf %36, %38 : vector<8x128xf32>
    %40 = arith.addf %34, %39 : vector<8x128xf32>
    %c0_35 = arith.constant 0 : index
    %c0_36 = arith.constant 0 : index
    %41 = vector.load %arg5[%c0_35, %c0_36] : memref<1x128xf32, #tpu.memory_space<vmem>>, vector<1x128xf32>
    %c0_37 = arith.constant 0 : index
    %c0_38 = arith.constant 0 : index
    %42 = vector.load %arg6[%c0_37, %c0_38] : memref<1x128xf32, #tpu.memory_space<vmem>>, vector<1x128xf32>
    %cst_39 = arith.constant dense<0.000000e+00> : vector<8xf32>
    %43 = vector.multi_reduction <add>, %40, %cst_39 [1] : vector<8x128xf32> to vector<8xf32>
    %44 = vector.shape_cast %43 : vector<8xf32> to vector<8x1xf32>
    %cst_40 = arith.constant 1.280000e+02 : f32
    %45 = vector.broadcast %cst_40 : f32 to vector<8x1xf32>
    %46 = arith.divf %44, %45 : vector<8x1xf32>
    %47 = vector.broadcast %46 : vector<8x1xf32> to vector<8x128xf32>
    %48 = arith.subf %40, %47 : vector<8x128xf32>
    %49 = arith.mulf %48, %48 : vector<8x128xf32>
    %cst_41 = arith.constant dense<0.000000e+00> : vector<8xf32>
    %50 = vector.multi_reduction <add>, %49, %cst_41 [1] : vector<8x128xf32> to vector<8xf32>
    %51 = vector.shape_cast %50 : vector<8xf32> to vector<8x1xf32>
    %cst_42 = arith.constant 1.280000e+02 : f32
    %52 = vector.broadcast %cst_42 : f32 to vector<8x1xf32>
    %53 = arith.divf %51, %52 : vector<8x1xf32>
    %54 = vector.broadcast %46 : vector<8x1xf32> to vector<8x128xf32>
    %55 = arith.subf %40, %54 : vector<8x128xf32>
    %cst_43 = arith.constant 9.99999974E-6 : f32
    %56 = vector.broadcast %cst_43 : f32 to vector<8x1xf32>
    %57 = arith.addf %53, %56 : vector<8x1xf32>
    %58 = math.rsqrt %57 : vector<8x1xf32>
    %59 = vector.broadcast %58 : vector<8x1xf32> to vector<8x128xf32>
    %60 = arith.mulf %55, %59 : vector<8x128xf32>
    %61 = vector.broadcast %41 : vector<1x128xf32> to vector<8x128xf32>
    %62 = arith.mulf %60, %61 : vector<8x128xf32>
    %63 = vector.broadcast %42 : vector<1x128xf32> to vector<8x128xf32>
    %64 = arith.addf %62, %63 : vector<8x128xf32>
    %c0_44 = arith.constant 0 : index
    %c0_45 = arith.constant 0 : index
    %65 = vector.load %arg12[%c0_44, %c0_45] : memref<128x512xf32, #tpu.memory_space<vmem>>, vector<128x512xf32>
    %cst_46 = arith.constant dense<0.000000e+00> : vector<8x512xf32>
    %66 = tpu.matmul %64, %65, %cst_46 {dimension_numbers = #tpu.dot_dimension_numbers<[1], [0], [0], [1], [0, 0, 1, 1], [], []>} : vector<8x128xf32>, vector<128x512xf32>, vector<8x512xf32> -> vector<8x512xf32>
    %c0_47 = arith.constant 0 : index
    %c0_48 = arith.constant 0 : index
    %67 = vector.load %arg13[%c0_47, %c0_48] : memref<1x512xf32, #tpu.memory_space<vmem>>, vector<1x512xf32>
    %68 = vector.broadcast %67 : vector<1x512xf32> to vector<8x512xf32>
    %69 = arith.addf %66, %68 : vector<8x512xf32>
    %cst_49 = arith.constant 0.000000e+00 : f32
    %70 = vector.broadcast %cst_49 : f32 to vector<8x512xf32>
    %71 = arith.maximumf %69, %70 : vector<8x512xf32>
    %c0_50 = arith.constant 0 : index
    %c0_51 = arith.constant 0 : index
    %72 = vector.load %arg14[%c0_50, %c0_51] : memref<512x128xf32, #tpu.memory_space<vmem>>, vector<512x128xf32>
    %cst_52 = arith.constant dense<0.000000e+00> : vector<8x128xf32>
    %73 = tpu.matmul %71, %72, %cst_52 {dimension_numbers = #tpu.dot_dimension_numbers<[1], [0], [0], [1], [0, 0, 1, 1], [], []>} : vector<8x512xf32>, vector<512x128xf32>, vector<8x128xf32> -> vector<8x128xf32>
    %c0_53 = arith.constant 0 : index
    %c0_54 = arith.constant 0 : index
    %74 = vector.load %arg15[%c0_53, %c0_54] : memref<1x128xf32, #tpu.memory_space<vmem>>, vector<1x128xf32>
    %75 = vector.broadcast %74 : vector<1x128xf32> to vector<8x128xf32>
    %76 = arith.addf %73, %75 : vector<8x128xf32>
    %77 = arith.addf %40, %76 : vector<8x128xf32>
    %c0_55 = arith.constant 0 : index
    %c0_56 = arith.constant 0 : index
    %c0_57 = arith.constant 0 : index
    %78 = vector.load %arg16[%c0_55, %c0_56, %c0_57] : memref<1x8x128xf32, #tpu.memory_space<vmem>>, vector<1x8x128xf32>
    %79 = vector.shape_cast %78 : vector<1x8x128xf32> to vector<8x128xf32>
    %80 = vector.shape_cast %77 : vector<8x128xf32> to vector<1x8x128xf32>
    tpu.vector_store %arg16[%c0_55, %c0_56, %c0_57], %80 {strides = array<i32>} : memref<1x8x128xf32, #tpu.memory_space<vmem>>, vector<1x8x128xf32>,
    return
  }
  func.func @transform_0(%arg0: i32, %arg1: i32) -> (i32, i32, i32) {
    %c0_i32 = arith.constant 0 : i32
    %c0_i32_0 = arith.constant 0 : i32
    %c0_i32_1 = arith.constant 0 : i32
    return %arg0, %c0_i32, %c0_i32_0 : i32, i32, i32
  }
  func.func @transform_1(%arg0: i32, %arg1: i32) -> (i32, i32) {
    %c0_i32 = arith.constant 0 : i32
    %c0_i32_0 = arith.constant 0 : i32
    %c0_i32_1 = arith.constant 0 : i32
    return %c0_i32, %c0_i32_0 : i32, i32
  }
  func.func @transform_2(%arg0: i32, %arg1: i32) -> (i32, i32) {
    %c0_i32 = arith.constant 0 : i32
    %c0_i32_0 = arith.constant 0 : i32
    %c0_i32_1 = arith.constant 0 : i32
    return %c0_i32, %c0_i32_0 : i32, i32
  }
  func.func @transform_3(%arg0: i32, %arg1: i32) -> (i32, i32) {
    %c0_i32 = arith.constant 0 : i32
    %c0_i32_0 = arith.constant 0 : i32
    %c0_i32_1 = arith.constant 0 : i32
    return %c0_i32, %c0_i32_0 : i32, i32
  }
  func.func @transform_4(%arg0: i32, %arg1: i32) -> (i32, i32) {
    %c0_i32 = arith.constant 0 : i32
    %c0_i32_0 = arith.constant 0 : i32
    %c0_i32_1 = arith.constant 0 : i32
    return %c0_i32, %c0_i32_0 : i32, i32
  }
  func.func @transform_5(%arg0: i32, %arg1: i32) -> (i32, i32) {
    %c0_i32 = arith.constant 0 : i32
    %c0_i32_0 = arith.constant 0 : i32
    %c0_i32_1 = arith.constant 0 : i32
    return %c0_i32, %c0_i32_0 : i32, i32
  }
  func.func @transform_6(%arg0: i32, %arg1: i32) -> (i32, i32) {
    %c0_i32 = arith.constant 0 : i32
    %c0_i32_0 = arith.constant 0 : i32
    %c0_i32_1 = arith.constant 0 : i32
    return %c0_i32, %c0_i32_0 : i32, i32
  }
  func.func @transform_7(%arg0: i32, %arg1: i32) -> (i32, i32) {
    %c0_i32 = arith.constant 0 : i32
    %c0_i32_0 = arith.constant 0 : i32
    %c0_i32_1 = arith.constant 0 : i32
    return %c0_i32, %c0_i32_0 : i32, i32
  }
  func.func @transform_8(%arg0: i32, %arg1: i32) -> (i32, i32) {
    %c0_i32 = arith.constant 0 : i32
    %c0_i32_0 = arith.constant 0 : i32
    %c0_i32_1 = arith.constant 0 : i32
    return %c0_i32, %c0_i32_0 : i32, i32
  }
  func.func @transform_9(%arg0: i32, %arg1: i32) -> (i32, i32) {
    %c0_i32 = arith.constant 0 : i32
    %c0_i32_0 = arith.constant 0 : i32
    %c0_i32_1 = arith.constant 0 : i32
    return %c0_i32, %c0_i32_0 : i32, i32
  }
  func.func @transform_10(%arg0: i32, %arg1: i32) -> (i32, i32) {
    %c0_i32 = arith.constant 0 : i32
    %c0_i32_0 = arith.constant 0 : i32
    %c0_i32_1 = arith.constant 0 : i32
    return %c0_i32, %c0_i32_0 : i32, i32
  }
  func.func @transform_11(%arg0: i32, %arg1: i32) -> (i32, i32) {
    %c0_i32 = arith.constant 0 : i32
    %c0_i32_0 = arith.constant 0 : i32
    %c0_i32_1 = arith.constant 0 : i32
    return %c0_i32, %c0_i32_0 : i32, i32
  }
  func.func @transform_12(%arg0: i32, %arg1: i32) -> (i32, i32) {
    %c0_i32 = arith.constant 0 : i32
    %c0_i32_0 = arith.constant 0 : i32
    %c0_i32_1 = arith.constant 0 : i32
    return %c0_i32, %c0_i32_0 : i32, i32
  }
  func.func @transform_13(%arg0: i32, %arg1: i32) -> (i32, i32) {
    %c0_i32 = arith.constant 0 : i32
    %c0_i32_0 = arith.constant 0 : i32
    %c0_i32_1 = arith.constant 0 : i32
    return %c0_i32, %c0_i32_0 : i32, i32
  }
  func.func @transform_14(%arg0: i32, %arg1: i32) -> (i32, i32, i32) {
    %c0_i32 = arith.constant 0 : i32
    %c0_i32_0 = arith.constant 0 : i32
    return %arg0, %arg1, %c0_i32 : i32, i32, i32
  }
}

</mosaic_0001>

<llo_original>
// kernel: tpu_custom_call.1
$region0: #{tpu_custom_call.1}
  #allocation0 [shape = 'u32[]', space=smem, size = 0x4, offset = 0x4, fixed_abs, tag = 'smem constant byte address 0x4 - core index']
  #allocation1 [shape = 'u32[72,128]{1,0:T(1,128)}', space=vmem, size = 0x9000, scoped, tag = 'internal scratch']
  %s0 = inlined_call_operand.hbm [shape: f32[8,128], index: 0, kind: input, shape index: {}]
  %s1 = inlined_call_operand.hbm [shape: f32[8,128], index: 1, kind: output, shape index: {}]
  %s2 = sld [smem:[#allocation0]]
  $region41: #{tpu_custom_call.1} parent=0
    _
  %s4 = ssub.s32 1, %s2
  %s5 = scalar_select 0, %s4, %s2
  $region1: #{tpu_custom_call.1} parent=0
    #allocation2 [shape = 'u8[4096]{0}', space=vmem, size = 0x1000, scoped, tag = 'input window, operand 0, single buffered']
    #allocation3 [shape = 's32[2]{0}', space=sflag, size = 0x8, scoped, tag = 'scoped memory for tpu_custom_call.1']
    #allocation4 [shape = 's32[2]{0}', space=sflag, size = 0x8, scoped, tag = 'scoped memory for tpu_custom_call.1']
    #allocation5 [shape = 'u8[4096]{0}', space=vmem, size = 0x1000, scoped, tag = 'output window, operand 0, single buffered']
    %6 = vsyncpa [#allocation3], 0
    %7 = vsyncpa [#allocation4], 0
    loop: start=0, step=1, limit=4
    $region2: #{tpu_custom_call.1} parent=1 // loop_pre_header
      _
    $region3: #{tpu_custom_call.1} parent=1 // loop_header
      %s9 = sphi 0, %s13
      %p10 = scmp.ge.s32.totalorder %s9, 4
      %s17 = sphi 0, %s17
      %s19 = sphi 0, %s17
      %s20 = sphi 0, %s19
      %s34 = sphi 0, %s20
      %s38 = sphi 0, %s38
      %s40 = sphi 0, %s38
      %s41 = sphi 0, %s40
      %s55 = sphi 0, %s41
    $region4: #{tpu_custom_call.1} parent=1 // loop_header_branch
      %12 = sbr.rel (%p10) target = $region8
    $region5: #{tpu_custom_call.1} parent=1 // loop_body
      %s14 = ssub.s32 %s9, 1
      %s15 = ssub.s32 %s9, 2
      %s16 = sadd.s32 %s9, 1
      %s18 = sadd.s32 %s17, 1
      %p21 = scmp.eq.s32.totalorder %s9, 1
      %p22 = scmp.ne.s32.totalorder %s17, %s19
      %p23 = scmp.eq.s32.totalorder %s9, 0
      %p24 = por %p22, %p23
      %p25 = scmp.ne.s32.totalorder %s17, %s19
      %p26 = scmp.eq.s32.totalorder %s14, 1
      %p27 = por %p25, %p26
      %p28 = scmp.ne.s32.totalorder %s19, %s20
      %p29 = scmp.eq.s32.totalorder %s14, 0
      %p30 = por %p28, %p29
      %p31 = scmp.ne.s32.totalorder %s19, %s20
      %p32 = scmp.eq.s32.totalorder %s15, 1
      %p33 = por %p31, %p32
      %p35 = scmp.ne.s32.totalorder %s20, %s34
      %p36 = scmp.eq.s32.totalorder %s15, 0
      %p37 = por %p35, %p36
      %s39 = sadd.s32 %s38, 1
      %p42 = scmp.eq.s32.totalorder %s9, 1
      %p43 = scmp.ne.s32.totalorder %s38, %s40
      %p44 = scmp.eq.s32.totalorder %s9, 0
      %p45 = por %p43, %p44
      %p46 = scmp.ne.s32.totalorder %s38, %s40
      %p47 = scmp.eq.s32.totalorder %s14, 1
      %p48 = por %p46, %p47
      %p49 = scmp.ne.s32.totalorder %s40, %s41
      %p50 = scmp.eq.s32.totalorder %s14, 0
      %p51 = por %p49, %p50
      %p52 = scmp.ne.s32.totalorder %s40, %s41
      %p53 = scmp.eq.s32.totalorder %s15, 1
      %p54 = por %p52, %p53
      %p56 = scmp.ne.s32.totalorder %s41, %s55
      %p57 = scmp.eq.s32.totalorder %s15, 0
      %p58 = por %p56, %p57
      %p59 = scmp.le.s32.totalorder 1, %s9
      %p60 = scmp.lt.s32.totalorder %s9, 3
      %p61 = pnand %p59, %p60
      %p62 = pneg %p61
      // Predicated region
      $region9: #{tpu_custom_call.1} parent=5 // pred_check
        _
      $region10: #{tpu_custom_call.1} parent=5 // pred_check_branch
        %64 = sbr.rel (%p61) target = $region12
      $region11: #{tpu_custom_call.1} parent=5 // pred_region
        %s65 = ssub.s32 %s9, 1
        // Predicated region
        $region13: #{tpu_custom_call.1} parent=11 // pred_check
          %p66 = pneg %p30
        $region14: #{tpu_custom_call.1} parent=11 // pred_check_branch
          %68 = sbr.rel (%p66) target = $region16
        $region15: #{tpu_custom_call.1} parent=11 // pred_region
          %70 = vsyncadd [#allocation3], 0
          %s72 = sshll.u32 %s0, 4
          %s73 = int_to_ptr.hbm [resolvable:$true] %s72
          %s74 = sshll.u32 [#allocation2], 4
          %s75 = int_to_ptr.vmem [resolvable:$true] %s74
          %77 = dma.hbm_to_vmem [thread:$0]  %s73, 128, %s75, [#allocation3]
        $region16: #{tpu_custom_call.1} parent=11 // pred_fallthru
          _
      $region12: #{tpu_custom_call.1} parent=5 // pred_fallthru
        _
      %p78 = scmp.lt.s32.totalorder %s9, 2
      // Predicated region
      $region17: #{tpu_custom_call.1} parent=5 // pred_check
        %p79 = pneg %p78
      $region18: #{tpu_custom_call.1} parent=5 // pred_check_branch
        %81 = sbr.rel (%p79) target = $region20
      $region19: #{tpu_custom_call.1} parent=5 // pred_region
        _
      $region20: #{tpu_custom_call.1} parent=5 // pred_fallthru
        _
      %p82 = scmp.le.s32.totalorder 1, %s9
      %p83 = scmp.lt.s32.totalorder %s9, 3
      %p84 = pnand %p82, %p83
      %p85 = pneg %p84
      // Predicated region
      $region21: #{tpu_custom_call.1} parent=5 // pred_check
        _
      $region22: #{tpu_custom_call.1} parent=5 // pred_check_branch
        %87 = sbr.rel (%p84) target = $region24
      $region23: #{tpu_custom_call.1} parent=5 // pred_region
        %s88 = ssub.s32 %s9, 1
        // Predicated region
        $region25: #{tpu_custom_call.1} parent=23 // pred_check
          %p89 = pneg %p30
        $region26: #{tpu_custom_call.1} parent=23 // pred_check_branch
          %91 = sbr.rel (%p89) target = $region28
        $region27: #{tpu_custom_call.1} parent=23 // pred_region
          %93 = dma.done [#allocation3], 128
        $region28: #{tpu_custom_call.1} parent=23 // pred_fallthru
          _
        %p94 = pneg %p30
        %p95 = pneg %p27
        %p96 = pneg %p51
        %p97 = pneg %p48
        %v98 = vld [vmem:[#allocation2] sm:$0xff]
        %v99 = vadd.f32 %v98, 1.0
        %100 = vst [vmem:[#allocation5] sm:$0xff] %v99
        // Predicated region
        $region29: #{tpu_custom_call.1} parent=23 // pred_check
          %p101 = pneg %p48
        $region30: #{tpu_custom_call.1} parent=23 // pred_check_branch
          %103 = sbr.rel (%p101) target = $region32
        $region31: #{tpu_custom_call.1} parent=23 // pred_region
          %105 = vsyncadd [#allocation4], 0
          %s107 = sshll.u32 [#allocation5], 4
          %s108 = int_to_ptr.vmem [resolvable:$true] %s107
          %s109 = sshll.u32 %s1, 4
          %s110 = int_to_ptr.hbm [resolvable:$true] %s109
          %112 = dma.vmem_to_hbm [thread:$0]  %s108, 128, %s110, [#allocation4]
        $region32: #{tpu_custom_call.1} parent=23 // pred_fallthru
          _
        // Predicated region
        $region33: #{tpu_custom_call.1} parent=23 // pred_check
          %p113 = pneg %p48
        $region34: #{tpu_custom_call.1} parent=23 // pred_check_branch
          %115 = sbr.rel (%p113) target = $region36
        $region35: #{tpu_custom_call.1} parent=23 // pred_region
          %117 = dma.done [#allocation4], 128
        $region36: #{tpu_custom_call.1} parent=23 // pred_fallthru
          _
      $region24: #{tpu_custom_call.1} parent=5 // pred_fallthru
        _
      %p118 = scmp.le.s32.totalorder 2, %s9
      // Predicated region
      $region37: #{tpu_custom_call.1} parent=5 // pred_check
        %p119 = pneg %p118
      $region38: #{tpu_custom_call.1} parent=5 // pred_check_branch
        %121 = sbr.rel (%p119) target = $region40
      $region39: #{tpu_custom_call.1} parent=5 // pred_region
        %s122 = ssub.s32 %s9, 2
      $region40: #{tpu_custom_call.1} parent=5 // pred_fallthru
        _
    $region6: #{tpu_custom_call.1} parent=1 // loop_footer
      %s13 = sadd.s32 1, %s9
    $region7: #{tpu_custom_call.1} parent=1 // loop_footer_branch
      %8 = sbr.rel target = $region3
    $region8: #{tpu_custom_call.1} parent=1 // loop_exit
      _
    %123 = vsyncpa [#allocation3], 1
    %s124 = scalar_lea.sflag [#allocation3], 1
    %125 = vsyncpa %s124, 1
    %126 = vsyncpa [#allocation4], 1
    %s127 = scalar_lea.sflag [#allocation4], 1
    %128 = vsyncpa %s127, 1

// kernel: tpu_custom_call.1
$region0: #{tpu_custom_call.1}
  #allocation0 [shape = 'u32[]', space=smem, size = 0x4, offset = 0x4, fixed_abs, tag = 'smem constant byte address 0x4 - core index']
  #allocation1 [shape = 'u32[72,128]{1,0:T(1,128)}', space=vmem, size = 0x9000, scoped, tag = 'internal scratch']
  #allocation2 [shape = 'f32[4,32,32]{2,1,0:T(8,128)}', space=vmem, size = 0x10000, scoped, tag = 'scratch operand']
  #allocation3 [shape = 'f32[4,32,32]{2,1,0:T(8,128)}', space=vmem, size = 0x10000, scoped, tag = 'scratch operand']
  #allocation4 [shape = 'f32[4,32,32]{2,1,0:T(8,128)}', space=vmem, size = 0x10000, scoped, tag = 'scratch operand']
  #allocation5 [shape = 'f32[4,8,1]{2,1,0:T(8,128)}', space=vmem, size = 0x4000, scoped, tag = 'scratch operand']
  #allocation6 [shape = 'f32[4,8,1]{2,1,0:T(8,128)}', space=vmem, size = 0x4000, scoped, tag = 'scratch operand']
  #allocation7 [shape = 'f32[4,8,32]{2,1,0:T(8,128)}', space=vmem, size = 0x4000, scoped, tag = 'scratch operand']
  %s0 = inlined_call_operand.hbm [shape: f32[2,32,128], index: 0, kind: input, shape index: {}]
  %s1 = inlined_call_operand.hbm [shape: f32[1,128], index: 1, kind: input, shape index: {}]
  %s2 = inlined_call_operand.vmem [shape: f32[1,128], index: 2, kind: input, shape index: {}]
  %s3 = inlined_call_operand.vmem [shape: f32[1,128], index: 3, kind: input, shape index: {}]
  %s4 = inlined_call_operand.vmem [shape: f32[1,128], index: 4, kind: input, shape index: {}]
  %s5 = inlined_call_operand.hbm [shape: f32[128,128], index: 5, kind: input, shape index: {}]
  %s6 = inlined_call_operand.hbm [shape: f32[128,128], index: 6, kind: input, shape index: {}]
  %s7 = inlined_call_operand.hbm [shape: f32[128,128], index: 7, kind: input, shape index: {}]
  %s8 = inlined_call_operand.hbm [shape: f32[128,128], index: 8, kind: input, shape index: {}]
  %s9 = inlined_call_operand.vmem [shape: f32[1,128], index: 9, kind: input, shape index: {}]
  %s10 = inlined_call_operand.hbm [shape: f32[128,512], index: 10, kind: input, shape index: {}]
  %s11 = inlined_call_operand.vmem [shape: f32[1,512], index: 11, kind: input, shape index: {}]
  %s12 = inlined_call_operand.hbm [shape: f32[512,128], index: 12, kind: input, shape index: {}]
  %s13 = inlined_call_operand.vmem [shape: f32[1,128], index: 13, kind: input, shape index: {}]
  %s14 = inlined_call_operand.hbm [shape: f32[2,32,128], index: 14, kind: output, shape index: {}]
  %s15 = sld [smem:[#allocation0]]
  $region132: #{tpu_custom_call.1} parent=0
    _
  %s17 = ssub.s32 1, %s15
  %s18 = scalar_select 0, %s17, %s15
  $region1: #{tpu_custom_call.1} parent=0
    #allocation8 [shape = 'u8[32768]{0}', space=vmem, size = 0x8000, scoped, tag = 'input window, operand 0']
    #allocation9 [shape = 's32[2]{0}', space=sflag, size = 0x8, scoped, tag = 'scoped memory for tpu_custom_call.1']
    #allocation10 [shape = 's32[2]{0}', space=sflag, size = 0x8, scoped, tag = 'scoped memory for tpu_custom_call.1']
    #allocation11 [shape = 'u8[512]{0}', space=vmem, size = 0x400, scoped, tag = 'input window, operand 1, single buffered']
    #allocation12 [shape = 's32[1]{0}', space=sflag, size = 0x4, scoped, tag = 'scoped memory for tpu_custom_call.1']
    #allocation13 [shape = 'u8[65536]{0}', space=vmem, size = 0x10000, scoped, tag = 'input window, operand 5, single buffered']
    #allocation14 [shape = 'u8[65536]{0}', space=vmem, size = 0x10000, scoped, tag = 'input window, operand 6, single buffered']
    #allocation15 [shape = 's32[1]{0}', space=sflag, size = 0x4, scoped, tag = 'scoped memory for tpu_custom_call.1']
    #allocation16 [shape = 'u8[65536]{0}', space=vmem, size = 0x10000, scoped, tag = 'input window, operand 7, single buffered']
    #allocation17 [shape = 'u8[65536]{0}', space=vmem, size = 0x10000, scoped, tag = 'input window, operand 8, single buffered']
    #allocation18 [shape = 's32[1]{0}', space=sflag, size = 0x4, scoped, tag = 'scoped memory for tpu_custom_call.1']
    #allocation19 [shape = 'u8[262144]{0}', space=vmem, size = 0x40000, scoped, tag = 'input window, operand 10, single buffered']
    #allocation20 [shape = 'u8[262144]{0}', space=vmem, size = 0x40000, scoped, tag = 'input window, operand 12, single buffered']
    #allocation21 [shape = 's32[1]{0}', space=sflag, size = 0x4, scoped, tag = 'scoped memory for tpu_custom_call.1']
    #allocation22 [shape = 'u8[8192]{0}', space=vmem, size = 0x2000, scoped, tag = 'output window, operand 0']
    %19 = vsyncpa [#allocation9], 0
    %s20 = scalar_lea.sflag [#allocation9], 1
    %21 = vsyncpa %s20, 0
    %22 = vsyncpa [#allocation12], 0
    %23 = vsyncpa [#allocation15], 0
    %24 = vsyncpa [#allocation18], 0
    %25 = vsyncpa [#allocation21], 0
    %26 = vsyncpa [#allocation10], 0
    %s27 = scalar_lea.sflag [#allocation10], 1
    %28 = vsyncpa %s27, 0
    loop: start=0, step=1, limit=10
    $region2: #{tpu_custom_call.1} parent=1 // loop_pre_header
      _
    $region3: #{tpu_custom_call.1} parent=1 // loop_header
      %s30 = sphi 0, %s34
      %p31 = scmp.ge.s32.totalorder %s30, 10
      %s37 = sphi 0, %s49
      %s38 = sphi 0, %s45
      %s39 = sphi 0, %s37
      %s40 = sphi 0, %s38
      %s41 = sphi 0, %s39
      %s42 = sphi 0, %s40
      %s52 = sphi 0, %s54
      %s55 = sphi 0, %s52
      %s56 = sphi 0, %s55
      %s72 = sphi 0, %s56
      %s76 = sphi 0, %s76
      %s78 = sphi 0, %s76
      %s79 = sphi 0, %s78
      %s93 = sphi 0, %s79
      %s97 = sphi 0, %s97
      %s99 = sphi 0, %s97
      %s100 = sphi 0, %s99
      %s114 = sphi 0, %s100
      %s118 = sphi 0, %s118
      %s120 = sphi 0, %s118
      %s121 = sphi 0, %s120
      %s135 = sphi 0, %s121
      %s139 = sphi 0, %s139
      %s141 = sphi 0, %s139
      %s142 = sphi 0, %s141
      %s156 = sphi 0, %s142
      %s160 = sphi 0, %s160
      %s162 = sphi 0, %s160
      %s163 = sphi 0, %s162
      %s177 = sphi 0, %s163
      %s181 = sphi 0, %s181
      %s183 = sphi 0, %s181
      %s184 = sphi 0, %s183
      %s198 = sphi 0, %s184
      %s202 = sphi 0, %s202
      %s204 = sphi 0, %s202
      %s205 = sphi 0, %s204
      %s219 = sphi 0, %s205
      %s223 = sphi 0, %s223
      %s225 = sphi 0, %s223
      %s226 = sphi 0, %s225
      %s240 = sphi 0, %s226
      %s244 = sphi 0, %s244
      %s246 = sphi 0, %s244
      %s247 = sphi 0, %s246
      %s261 = sphi 0, %s247
      %s265 = sphi 0, %s265
      %s267 = sphi 0, %s265
      %s268 = sphi 0, %s267
      %s282 = sphi 0, %s268
      %s286 = sphi 0, %s286
      %s288 = sphi 0, %s286
      %s289 = sphi 0, %s288
      %s303 = sphi 0, %s289
      %s307 = sphi 0, %s307
      %s309 = sphi 0, %s307
      %s310 = sphi 0, %s309
      %s324 = sphi 0, %s310
      %s328 = sphi 0, %s328
      %s330 = sphi 0, %s328
      %s331 = sphi 0, %s330
      %s345 = sphi 0, %s331
      %s353 = sphi 0, %s355
      %s356 = sphi 0, %s353
      %s357 = sphi 0, %s356
      %s373 = sphi 0, %s357
    $region4: #{tpu_custom_call.1} parent=1 // loop_header_branch
      %33 = sbr.rel (%p31) target = $region8
    $region5: #{tpu_custom_call.1} parent=1 // loop_body
      %s35 = ssub.s32 %s30, 1
      %s36 = ssub.s32 %s30, 2
      %s43 = sadd.s32 1, %s38
      %p44 = scmp.ge.s32.totalorder %s43, 4
      %s45 = scalar_select %p44, 0, %s43
      %s46 = sadd.s32 1, %s37
      %s47 = scalar_select %p44, %s46, %s37
      %p48 = scmp.ge.s32.totalorder %s47, 2
      %s49 = scalar_select %p48, 0, %s47
      %s50 = ssub.s32 %s37, %s49
      %p51 = scmp.eq.s32.totalorder %s50, 0
      %s53 = sadd.s32 %s52, 1
      %s54 = scalar_select %p51, %s52, %s53
      %p57 = pneg %p51
      %p58 = scmp.eq.s32.totalorder %s30, 7
      %p59 = por %p57, %p58
      %p60 = scmp.ne.s32.totalorder %s52, %s55
      %p61 = scmp.eq.s32.totalorder %s30, 0
      %p62 = por %p60, %p61
      %p63 = scmp.ne.s32.totalorder %s52, %s55
      %p64 = scmp.eq.s32.totalorder %s35, 7
      %p65 = por %p63, %p64
      %p66 = scmp.ne.s32.totalorder %s55, %s56
      %p67 = scmp.eq.s32.totalorder %s35, 0
      %p68 = por %p66, %p67
      %p69 = scmp.ne.s32.totalorder %s55, %s56
      %p70 = scmp.eq.s32.totalorder %s36, 7
      %p71 = por %p69, %p70
      %p73 = scmp.ne.s32.totalorder %s56, %s72
      %p74 = scmp.eq.s32.totalorder %s36, 0
      %p75 = por %p73, %p74
      %s77 = sadd.s32 %s76, 1
      %p80 = scmp.eq.s32.totalorder %s30, 7
      %p81 = scmp.ne.s32.totalorder %s76, %s78
      %p82 = scmp.eq.s32.totalorder %s30, 0
      %p83 = por %p81, %p82
      %p84 = scmp.ne.s32.totalorder %s76, %s78
      %p85 = scmp.eq.s32.totalorder %s35, 7
      %p86 = por %p84, %p85
      %p87 = scmp.ne.s32.totalorder %s78, %s79
      %p88 = scmp.eq.s32.totalorder %s35, 0
      %p89 = por %p87, %p88
      %p90 = scmp.ne.s32.totalorder %s78, %s79
      %p91 = scmp.eq.s32.totalorder %s36, 7
      %p92 = por %p90, %p91
      %p94 = scmp.ne.s32.totalorder %s79, %s93
      %p95 = scmp.eq.s32.totalorder %s36, 0
      %p96 = por %p94, %p95
      %s98 = sadd.s32 %s97, 1
      %p101 = scmp.eq.s32.totalorder %s30, 7
      %p102 = scmp.ne.s32.totalorder %s97, %s99
      %p103 = scmp.eq.s32.totalorder %s30, 0
      %p104 = por %p102, %p103
      %p105 = scmp.ne.s32.totalorder %s97, %s99
      %p106 = scmp.eq.s32.totalorder %s35, 7
      %p107 = por %p105, %p106
      %p108 = scmp.ne.s32.totalorder %s99, %s100
      %p109 = scmp.eq.s32.totalorder %s35, 0
      %p110 = por %p108, %p109
      %p111 = scmp.ne.s32.totalorder %s99, %s100
      %p112 = scmp.eq.s32.totalorder %s36, 7
      %p113 = por %p111, %p112
      %p115 = scmp.ne.s32.totalorder %s100, %s114
      %p116 = scmp.eq.s32.totalorder %s36, 0
      %p117 = por %p115, %p116
      %s119 = sadd.s32 %s118, 1
      %p122 = scmp.eq.s32.totalorder %s30, 7
      %p123 = scmp.ne.s32.totalorder %s118, %s120
      %p124 = scmp.eq.s32.totalorder %s30, 0
      %p125 = por %p123, %p124
      %p126 = scmp.ne.s32.totalorder %s118, %s120
      %p127 = scmp.eq.s32.totalorder %s35, 7
      %p128 = por %p126, %p127
      %p129 = scmp.ne.s32.totalorder %s120, %s121
      %p130 = scmp.eq.s32.totalorder %s35, 0
      %p131 = por %p129, %p130
      %p132 = scmp.ne.s32.totalorder %s120, %s121
      %p133 = scmp.eq.s32.totalorder %s36, 7
      %p134 = por %p132, %p133
      %p136 = scmp.ne.s32.totalorder %s121, %s135
      %p137 = scmp.eq.s32.totalorder %s36, 0
      %p138 = por %p136, %p137
      %s140 = sadd.s32 %s139, 1
      %p143 = scmp.eq.s32.totalorder %s30, 7
      %p144 = scmp.ne.s32.totalorder %s139, %s141
      %p145 = scmp.eq.s32.totalorder %s30, 0
      %p146 = por %p144, %p145
      %p147 = scmp.ne.s32.totalorder %s139, %s141
      %p148 = scmp.eq.s32.totalorder %s35, 7
      %p149 = por %p147, %p148
      %p150 = scmp.ne.s32.totalorder %s141, %s142
      %p151 = scmp.eq.s32.totalorder %s35, 0
      %p152 = por %p150, %p151
      %p153 = scmp.ne.s32.totalorder %s141, %s142
      %p154 = scmp.eq.s32.totalorder %s36, 7
      %p155 = por %p153, %p154
      %p157 = scmp.ne.s32.totalorder %s142, %s156
      %p158 = scmp.eq.s32.totalorder %s36, 0
      %p159 = por %p157, %p158
      %s161 = sadd.s32 %s160, 1
      %p164 = scmp.eq.s32.totalorder %s30, 7
      %p165 = scmp.ne.s32.totalorder %s160, %s162
      %p166 = scmp.eq.s32.totalorder %s30, 0
      %p167 = por %p165, %p166
      %p168 = scmp.ne.s32.totalorder %s160, %s162
      %p169 = scmp.eq.s32.totalorder %s35, 7
      %p170 = por %p168, %p169
      %p171 = scmp.ne.s32.totalorder %s162, %s163
      %p172 = scmp.eq.s32.totalorder %s35, 0
      %p173 = por %p171, %p172
      %p174 = scmp.ne.s32.totalorder %s162, %s163
      %p175 = scmp.eq.s32.totalorder %s36, 7
      %p176 = por %p174, %p175
      %p178 = scmp.ne.s32.totalorder %s163, %s177
      %p179 = scmp.eq.s32.totalorder %s36, 0
      %p180 = por %p178, %p179
      %s182 = sadd.s32 %s181, 1
      %p185 = scmp.eq.s32.totalorder %s30, 7
      %p186 = scmp.ne.s32.totalorder %s181, %s183
      %p187 = scmp.eq.s32.totalorder %s30, 0
      %p188 = por %p186, %p187
      %p189 = scmp.ne.s32.totalorder %s181, %s183
      %p190 = scmp.eq.s32.totalorder %s35, 7
      %p191 = por %p189, %p190
      %p192 = scmp.ne.s32.totalorder %s183, %s184
      %p193 = scmp.eq.s32.totalorder %s35, 0
      %p194 = por %p192, %p193
      %p195 = scmp.ne.s32.totalorder %s183, %s184
      %p196 = scmp.eq.s32.totalorder %s36, 7
      %p197 = por %p195, %p196
      %p199 = scmp.ne.s32.totalorder %s184, %s198
      %p200 = scmp.eq.s32.totalorder %s36, 0
      %p201 = por %p199, %p200
      %s203 = sadd.s32 %s202, 1
      %p206 = scmp.eq.s32.totalorder %s30, 7
      %p207 = scmp.ne.s32.totalorder %s202, %s204
      %p208 = scmp.eq.s32.totalorder %s30, 0
      %p209 = por %p207, %p208
      %p210 = scmp.ne.s32.totalorder %s202, %s204
      %p211 = scmp.eq.s32.totalorder %s35, 7
      %p212 = por %p210, %p211
      %p213 = scmp.ne.s32.totalorder %s204, %s205
      %p214 = scmp.eq.s32.totalorder %s35, 0
      %p215 = por %p213, %p214
      %p216 = scmp.ne.s32.totalorder %s204, %s205
      %p217 = scmp.eq.s32.totalorder %s36, 7
      %p218 = por %p216, %p217
      %p220 = scmp.ne.s32.totalorder %s205, %s219
      %p221 = scmp.eq.s32.totalorder %s36, 0
      %p222 = por %p220, %p221
      %s224 = sadd.s32 %s223, 1
      %p227 = scmp.eq.s32.totalorder %s30, 7
      %p228 = scmp.ne.s32.totalorder %s223, %s225
      %p229 = scmp.eq.s32.totalorder %s30, 0
      %p230 = por %p228, %p229
      %p231 = scmp.ne.s32.totalorder %s223, %s225
      %p232 = scmp.eq.s32.totalorder %s35, 7
      %p233 = por %p231, %p232
      %p234 = scmp.ne.s32.totalorder %s225, %s226
      %p235 = scmp.eq.s32.totalorder %s35, 0
      %p236 = por %p234, %p235
      %p237 = scmp.ne.s32.totalorder %s225, %s226
      %p238 = scmp.eq.s32.totalorder %s36, 7
      %p239 = por %p237, %p238
      %p241 = scmp.ne.s32.totalorder %s226, %s240
      %p242 = scmp.eq.s32.totalorder %s36, 0
      %p243 = por %p241, %p242
      %s245 = sadd.s32 %s244, 1
      %p248 = scmp.eq.s32.totalorder %s30, 7
      %p249 = scmp.ne.s32.totalorder %s244, %s246
      %p250 = scmp.eq.s32.totalorder %s30, 0
      %p251 = por %p249, %p250
      %p252 = scmp.ne.s32.totalorder %s244, %s246
      %p253 = scmp.eq.s32.totalorder %s35, 7
      %p254 = por %p252, %p253
      %p255 = scmp.ne.s32.totalorder %s246, %s247
      %p256 = scmp.eq.s32.totalorder %s35, 0
      %p257 = por %p255, %p256
      %p258 = scmp.ne.s32.totalorder %s246, %s247
      %p259 = scmp.eq.s32.totalorder %s36, 7
      %p260 = por %p258, %p259
      %p262 = scmp.ne.s32.totalorder %s247, %s261
      %p263 = scmp.eq.s32.totalorder %s36, 0
      %p264 = por %p262, %p263
      %s266 = sadd.s32 %s265, 1
      %p269 = scmp.eq.s32.totalorder %s30, 7
      %p270 = scmp.ne.s32.totalorder %s265, %s267
      %p271 = scmp.eq.s32.totalorder %s30, 0
      %p272 = por %p270, %p271
      %p273 = scmp.ne.s32.totalorder %s265, %s267
      %p274 = scmp.eq.s32.totalorder %s35, 7
      %p275 = por %p273, %p274
      %p276 = scmp.ne.s32.totalorder %s267, %s268
      %p277 = scmp.eq.s32.totalorder %s35, 0
      %p278 = por %p276, %p277
      %p279 = scmp.ne.s32.totalorder %s267, %s268
      %p280 = scmp.eq.s32.totalorder %s36, 7
      %p281 = por %p279, %p280
      %p283 = scmp.ne.s32.totalorder %s268, %s282
      %p284 = scmp.eq.s32.totalorder %s36, 0
      %p285 = por %p283, %p284
      %s287 = sadd.s32 %s286, 1
      %p290 = scmp.eq.s32.totalorder %s30, 7
      %p291 = scmp.ne.s32.totalorder %s286, %s288
      %p292 = scmp.eq.s32.totalorder %s30, 0
      %p293 = por %p291, %p292
      %p294 = scmp.ne.s32.totalorder %s286, %s288
      %p295 = scmp.eq.s32.totalorder %s35, 7
      %p296 = por %p294, %p295
      %p297 = scmp.ne.s32.totalorder %s288, %s289
      %p298 = scmp.eq.s32.totalorder %s35, 0
      %p299 = por %p297, %p298
      %p300 = scmp.ne.s32.totalorder %s288, %s289
      %p301 = scmp.eq.s32.totalorder %s36, 7
      %p302 = por %p300, %p301
      %p304 = scmp.ne.s32.totalorder %s289, %s303
      %p305 = scmp.eq.s32.totalorder %s36, 0
      %p306 = por %p304, %p305
      %s308 = sadd.s32 %s307, 1
      %p311 = scmp.eq.s32.totalorder %s30, 7
      %p312 = scmp.ne.s32.totalorder %s307, %s309
      %p313 = scmp.eq.s32.totalorder %s30, 0
      %p314 = por %p312, %p313
      %p315 = scmp.ne.s32.totalorder %s307, %s309
      %p316 = scmp.eq.s32.totalorder %s35, 7
      %p317 = por %p315, %p316
      %p318 = scmp.ne.s32.totalorder %s309, %s310
      %p319 = scmp.eq.s32.totalorder %s35, 0
      %p320 = por %p318, %p319
      %p321 = scmp.ne.s32.totalorder %s309, %s310
      %p322 = scmp.eq.s32.totalorder %s36, 7
      %p323 = por %p321, %p322
      %p325 = scmp.ne.s32.totalorder %s310, %s324
      %p326 = scmp.eq.s32.totalorder %s36, 0
      %p327 = por %p325, %p326
      %s329 = sadd.s32 %s328, 1
      %p332 = scmp.eq.s32.totalorder %s30, 7
      %p333 = scmp.ne.s32.totalorder %s328, %s330
      %p334 = scmp.eq.s32.totalorder %s30, 0
      %p335 = por %p333, %p334
      %p336 = scmp.ne.s32.totalorder %s328, %s330
      %p337 = scmp.eq.s32.totalorder %s35, 7
      %p338 = por %p336, %p337
      %p339 = scmp.ne.s32.totalorder %s330, %s331
      %p340 = scmp.eq.s32.totalorder %s35, 0
      %p341 = por %p339, %p340
      %p342 = scmp.ne.s32.totalorder %s330, %s331
      %p343 = scmp.eq.s32.totalorder %s36, 7
      %p344 = por %p342, %p343
      %p346 = scmp.ne.s32.totalorder %s331, %s345
      %p347 = scmp.eq.s32.totalorder %s36, 0
      %p348 = por %p346, %p347
      %s349 = ssub.s32 %s37, %s49
      %s350 = ssub.s32 %s38, %s45
      %s351 = sor.u32 %s349, %s350
      %p352 = scmp.eq.s32.totalorder %s351, 0
      %s354 = sadd.s32 %s353, 1
      %s355 = scalar_select %p352, %s353, %s354
      %p358 = pneg %p352
      %p359 = scmp.eq.s32.totalorder %s30, 7
      %p360 = por %p358, %p359
      %p361 = scmp.ne.s32.totalorder %s353, %s356
      %p362 = scmp.eq.s32.totalorder %s30, 0
      %p363 = por %p361, %p362
      %p364 = scmp.ne.s32.totalorder %s353, %s356
      %p365 = scmp.eq.s32.totalorder %s35, 7
      %p366 = por %p364, %p365
      %p367 = scmp.ne.s32.totalorder %s356, %s357
      %p368 = scmp.eq.s32.totalorder %s35, 0
      %p369 = por %p367, %p368
      %p370 = scmp.ne.s32.totalorder %s356, %s357
      %p371 = scmp.eq.s32.totalorder %s36, 7
      %p372 = por %p370, %p371
      %p374 = scmp.ne.s32.totalorder %s357, %s373
      %p375 = scmp.eq.s32.totalorder %s36, 0
      %p376 = por %p374, %p375
      %p377 = scmp.le.s32.totalorder 1, %s30
      %p378 = scmp.lt.s32.totalorder %s30, 9
      %p379 = pnand %p377, %p378
      %p380 = pneg %p379
      // Predicated region
      $region9: #{tpu_custom_call.1} parent=5 // pred_check
        _
      $region10: #{tpu_custom_call.1} parent=5 // pred_check_branch
        %382 = sbr.rel (%p379) target = $region12
      $region11: #{tpu_custom_call.1} parent=5 // pred_region
        %s383 = ssub.s32 %s30, 1
        // Predicated region
        $region13: #{tpu_custom_call.1} parent=11 // pred_check
          %p384 = pneg %p89
        $region14: #{tpu_custom_call.1} parent=11 // pred_check_branch
          %386 = sbr.rel (%p384) target = $region16
        $region15: #{tpu_custom_call.1} parent=11 // pred_region
          %388 = vsyncadd [#allocation12], 0
          %s390 = sshll.u32 %s1, 4
          %s391 = int_to_ptr.hbm [resolvable:$true] %s390
          %s392 = sshll.u32 [#allocation11], 4
          %s393 = int_to_ptr.vmem [resolvable:$true] %s392
          %395 = dma.hbm_to_vmem [thread:$0]  %s391, 16, %s393, [#allocation12]
        $region16: #{tpu_custom_call.1} parent=11 // pred_fallthru
          _
        // Predicated region
        $region17: #{tpu_custom_call.1} parent=11 // pred_check
          %p396 = pneg %p110
        $region18: #{tpu_custom_call.1} parent=11 // pred_check_branch
          %398 = sbr.rel (%p396) target = $region20
        $region19: #{tpu_custom_call.1} parent=11 // pred_region
          _
        $region20: #{tpu_custom_call.1} parent=11 // pred_fallthru
          _
        // Predicated region
        $region21: #{tpu_custom_call.1} parent=11 // pred_check
          %p399 = pneg %p131
        $region22: #{tpu_custom_call.1} parent=11 // pred_check_branch
          %401 = sbr.rel (%p399) target = $region24
        $region23: #{tpu_custom_call.1} parent=11 // pred_region
          _
        $region24: #{tpu_custom_call.1} parent=11 // pred_fallthru
          _
        // Predicated region
        $region25: #{tpu_custom_call.1} parent=11 // pred_check
          %p402 = pneg %p152
        $region26: #{tpu_custom_call.1} parent=11 // pred_check_branch
          %404 = sbr.rel (%p402) target = $region28
        $region27: #{tpu_custom_call.1} parent=11 // pred_region
          _
        $region28: #{tpu_custom_call.1} parent=11 // pred_fallthru
          _
        // Predicated region
        $region29: #{tpu_custom_call.1} parent=11 // pred_check
          %p405 = pneg %p173
        $region30: #{tpu_custom_call.1} parent=11 // pred_check_branch
          %407 = sbr.rel (%p405) target = $region32
        $region31: #{tpu_custom_call.1} parent=11 // pred_region
          %409 = vsyncadd [#allocation12], 0
          %s410 = sshll.u32 %s5, 4
          %s411 = int_to_ptr.hbm [resolvable:$true] %s410
          %s412 = sshll.u32 [#allocation13], 4
          %s413 = int_to_ptr.vmem [resolvable:$true] %s412
          %418 = dma.hbm_to_vmem [thread:$0]  %s411, 2048, %s413, [#allocation12], 128, 128, 8
        $region32: #{tpu_custom_call.1} parent=11 // pred_fallthru
          _
        // Predicated region
        $region33: #{tpu_custom_call.1} parent=11 // pred_check
          %p419 = pneg %p194
        $region34: #{tpu_custom_call.1} parent=11 // pred_check_branch
          %421 = sbr.rel (%p419) target = $region36
        $region35: #{tpu_custom_call.1} parent=11 // pred_region
          %423 = vsyncadd [#allocation15], 0
          %s424 = sshll.u32 %s6, 4
          %s425 = int_to_ptr.hbm [resolvable:$true] %s424
          %s426 = sshll.u32 [#allocation14], 4
          %s427 = int_to_ptr.vmem [resolvable:$true] %s426
          %432 = dma.hbm_to_vmem [thread:$0]  %s425, 2048, %s427, [#allocation15], 128, 128, 8
        $region36: #{tpu_custom_call.1} parent=11 // pred_fallthru
          _
        // Predicated region
        $region37: #{tpu_custom_call.1} parent=11 // pred_check
          %p433 = pneg %p215
        $region38: #{tpu_custom_call.1} parent=11 // pred_check_branch
          %435 = sbr.rel (%p433) target = $region40
        $region39: #{tpu_custom_call.1} parent=11 // pred_region
          %437 = vsyncadd [#allocation15], 0
          %s438 = sshll.u32 %s7, 4
          %s439 = int_to_ptr.hbm [resolvable:$true] %s438
          %s440 = sshll.u32 [#allocation16], 4
          %s441 = int_to_ptr.vmem [resolvable:$true] %s440
          %446 = dma.hbm_to_vmem [thread:$0]  %s439, 2048, %s441, [#allocation15], 128, 128, 8
        $region40: #{tpu_custom_call.1} parent=11 // pred_fallthru
          _
        // Predicated region
        $region41: #{tpu_custom_call.1} parent=11 // pred_check
          %p447 = pneg %p236
        $region42: #{tpu_custom_call.1} parent=11 // pred_check_branch
          %449 = sbr.rel (%p447) target = $region44
        $region43: #{tpu_custom_call.1} parent=11 // pred_region
          %451 = vsyncadd [#allocation18], 0
          %s452 = sshll.u32 %s8, 4
          %s453 = int_to_ptr.hbm [resolvable:$true] %s452
          %s454 = sshll.u32 [#allocation17], 4
          %s455 = int_to_ptr.vmem [resolvable:$true] %s454
          %460 = dma.hbm_to_vmem [thread:$0]  %s453, 2048, %s455, [#allocation18], 128, 128, 8
        $region44: #{tpu_custom_call.1} parent=11 // pred_fallthru
          _
        // Predicated region
        $region45: #{tpu_custom_call.1} parent=11 // pred_check
          %p461 = pneg %p257
        $region46: #{tpu_custom_call.1} parent=11 // pred_check_branch
          %463 = sbr.rel (%p461) target = $region48
        $region47: #{tpu_custom_call.1} parent=11 // pred_region
          _
        $region48: #{tpu_custom_call.1} parent=11 // pred_fallthru
          _
        // Predicated region
        $region49: #{tpu_custom_call.1} parent=11 // pred_check
          %p464 = pneg %p278
        $region50: #{tpu_custom_call.1} parent=11 // pred_check_branch
          %466 = sbr.rel (%p464) target = $region52
        $region51: #{tpu_custom_call.1} parent=11 // pred_region
          %468 = vsyncadd [#allocation18], 0
          %s469 = sshll.u32 %s10, 4
          %s470 = int_to_ptr.hbm [resolvable:$true] %s469
          %s471 = sshll.u32 [#allocation19], 4
          %s472 = int_to_ptr.vmem [resolvable:$true] %s471
          %477 = dma.hbm_to_vmem [thread:$0]  %s470, 8192, %s472, [#allocation18], 512, 512, 32
        $region52: #{tpu_custom_call.1} parent=11 // pred_fallthru
          _
        // Predicated region
        $region53: #{tpu_custom_call.1} parent=11 // pred_check
          %p478 = pneg %p299
        $region54: #{tpu_custom_call.1} parent=11 // pred_check_branch
          %480 = sbr.rel (%p478) target = $region56
        $region55: #{tpu_custom_call.1} parent=11 // pred_region
          _
        $region56: #{tpu_custom_call.1} parent=11 // pred_fallthru
          _
        // Predicated region
        $region57: #{tpu_custom_call.1} parent=11 // pred_check
          %p481 = pneg %p320
        $region58: #{tpu_custom_call.1} parent=11 // pred_check_branch
          %483 = sbr.rel (%p481) target = $region60
        $region59: #{tpu_custom_call.1} parent=11 // pred_region
          %485 = vsyncadd [#allocation21], 0
          %s486 = sshll.u32 %s12, 4
          %s487 = int_to_ptr.hbm [resolvable:$true] %s486
          %s488 = sshll.u32 [#allocation20], 4
          %s489 = int_to_ptr.vmem [resolvable:$true] %s488
          %494 = dma.hbm_to_vmem [thread:$0]  %s487, 8192, %s489, [#allocation21], 128, 128, 8
        $region60: #{tpu_custom_call.1} parent=11 // pred_fallthru
          _
        // Predicated region
        $region61: #{tpu_custom_call.1} parent=11 // pred_check
          %p495 = pneg %p341
        $region62: #{tpu_custom_call.1} parent=11 // pred_check_branch
          %497 = sbr.rel (%p495) target = $region64
        $region63: #{tpu_custom_call.1} parent=11 // pred_region
          _
        $region64: #{tpu_custom_call.1} parent=11 // pred_fallthru
          _
      $region12: #{tpu_custom_call.1} parent=5 // pred_fallthru
        _
      %p498 = scmp.lt.s32.totalorder %s30, 8
      // Predicated region
      $region65: #{tpu_custom_call.1} parent=5 // pred_check
        %p499 = pneg %p498
      $region66: #{tpu_custom_call.1} parent=5 // pred_check_branch
        %501 = sbr.rel (%p499) target = $region68
      $region67: #{tpu_custom_call.1} parent=5 // pred_region
        // Predicated region
        $region69: #{tpu_custom_call.1} parent=67 // pred_check
          %p502 = pneg %p62
        $region70: #{tpu_custom_call.1} parent=67 // pred_check_branch
          %504 = sbr.rel (%p502) target = $region72
        $region71: #{tpu_custom_call.1} parent=67 // pred_region
          %s505 = sand.u32 %s52, 1
          %s506 = scalar_lea.sflag [#allocation9], %s505
          %s507 = sand.u32 %s52, 1
          %s508 = smul.addr %s507, 32
          %s509 = scalar_lea.vmem [#allocation8], %s508
          %511 = vsyncadd %s506, 0
          %s512 = smul.addr %s37, 4
          %s513 = smul.addr %s512, 8
          %s514 = scalar_lea.hbm %s0, %s513
          %s515 = sshll.u32 %s514, 4
          %s516 = int_to_ptr.hbm [resolvable:$true] %s515
          %s517 = sshll.u32 %s509, 4
          %s518 = int_to_ptr.vmem [resolvable:$true] %s517
          %523 = dma.hbm_to_vmem [thread:$0]  %s516, 512, %s518, %s506, 128, 128, 8
        $region72: #{tpu_custom_call.1} parent=67 // pred_fallthru
          _
      $region68: #{tpu_custom_call.1} parent=5 // pred_fallthru
        _
      %p524 = scmp.le.s32.totalorder 1, %s30
      %p525 = scmp.lt.s32.totalorder %s30, 9
      %p526 = pnand %p524, %p525
      %p527 = pneg %p526
      // Predicated region
      $region73: #{tpu_custom_call.1} parent=5 // pred_check
        _
      $region74: #{tpu_custom_call.1} parent=5 // pred_check_branch
        %529 = sbr.rel (%p526) target = $region76
      $region75: #{tpu_custom_call.1} parent=5 // pred_region
        %s530 = ssub.s32 %s30, 1
        %s531 = sand.u32 %s55, 1
        %s532 = scalar_lea.sflag [#allocation9], %s531
        %s533 = sand.u32 %s55, 1
        %s534 = smul.addr %s533, 32
        %s535 = scalar_lea.vmem [#allocation8], %s534
        // Predicated region
        $region77: #{tpu_custom_call.1} parent=75 // pred_check
          %p536 = pneg %p68
        $region78: #{tpu_custom_call.1} parent=75 // pred_check_branch
          %538 = sbr.rel (%p536) target = $region80
        $region79: #{tpu_custom_call.1} parent=75 // pred_region
          %540 = dma.done %s532, 512
        $region80: #{tpu_custom_call.1} parent=75 // pred_fallthru
          _
        // Predicated region
        $region81: #{tpu_custom_call.1} parent=75 // pred_check
          %p541 = pneg %p89
        $region82: #{tpu_custom_call.1} parent=75 // pred_check_branch
          %543 = sbr.rel (%p541) target = $region84
        $region83: #{tpu_custom_call.1} parent=75 // pred_region
          %545 = dma.done [#allocation12], 16
        $region84: #{tpu_custom_call.1} parent=75 // pred_fallthru
          _
        // Predicated region
        $region85: #{tpu_custom_call.1} parent=75 // pred_check
          %p546 = pneg %p173
        $region86: #{tpu_custom_call.1} parent=75 // pred_check_branch
          %548 = sbr.rel (%p546) target = $region88
        $region87: #{tpu_custom_call.1} parent=75 // pred_region
          %550 = dma.done [#allocation12], 2048
        $region88: #{tpu_custom_call.1} parent=75 // pred_fallthru
          _
        // Predicated region
        $region89: #{tpu_custom_call.1} parent=75 // pred_check
          %p551 = pneg %p194
        $region90: #{tpu_custom_call.1} parent=75 // pred_check_branch
          %553 = sbr.rel (%p551) target = $region92
        $region91: #{tpu_custom_call.1} parent=75 // pred_region
          %555 = dma.done [#allocation15], 2048
        $region92: #{tpu_custom_call.1} parent=75 // pred_fallthru
          _
        // Predicated region
        $region93: #{tpu_custom_call.1} parent=75 // pred_check
          %p556 = pneg %p215
        $region94: #{tpu_custom_call.1} parent=75 // pred_check_branch
          %558 = sbr.rel (%p556) target = $region96
        $region95: #{tpu_custom_call.1} parent=75 // pred_region
          %560 = dma.done [#allocation15], 2048
        $region96: #{tpu_custom_call.1} parent=75 // pred_fallthru
          _
        // Predicated region
        $region97: #{tpu_custom_call.1} parent=75 // pred_check
          %p561 = pneg %p236
        $region98: #{tpu_custom_call.1} parent=75 // pred_check_branch
          %563 = sbr.rel (%p561) target = $region100
        $region99: #{tpu_custom_call.1} parent=75 // pred_region
          %565 = dma.done [#allocation18], 2048
        $region100: #{tpu_custom_call.1} parent=75 // pred_fallthru
          _
        // Predicated region
        $region101: #{tpu_custom_call.1} parent=75 // pred_check
          %p566 = pneg %p278
        $region102: #{tpu_custom_call.1} parent=75 // pred_check_branch
          %568 = sbr.rel (%p566) target = $region104
        $region103: #{tpu_custom_call.1} parent=75 // pred_region
          %570 = dma.done [#allocation18], 8192
        $region104: #{tpu_custom_call.1} parent=75 // pred_fallthru
          _
        // Predicated region
        $region105: #{tpu_custom_call.1} parent=75 // pred_check
          %p571 = pneg %p320
        $region106: #{tpu_custom_call.1} parent=75 // pred_check_branch
          %573 = sbr.rel (%p571) target = $region108
        $region107: #{tpu_custom_call.1} parent=75 // pred_region
          %575 = dma.done [#allocation21], 8192
        $region108: #{tpu_custom_call.1} parent=75 // pred_fallthru
          _
        %s576 = sand.u32 %s55, 1
        %s577 = scalar_lea.sflag [#allocation9], %s576
        %s578 = sand.u32 %s55, 1
        %s579 = smul.addr %s578, 32
        %s580 = scalar_lea.vmem [#allocation8], %s579
        %p581 = pneg %p68
        %p582 = pneg %p65
        %p583 = pneg %p89
        %p584 = pneg %p86
        %p585 = pneg %p110
        %p586 = pneg %p107
        %p587 = pneg %p131
        %p588 = pneg %p128
        %p589 = pneg %p152
        %p590 = pneg %p149
        %p591 = pneg %p173
        %p592 = pneg %p170
        %p593 = pneg %p194
        %p594 = pneg %p191
        %p595 = pneg %p215
        %p596 = pneg %p212
        %p597 = pneg %p236
        %p598 = pneg %p233
        %p599 = pneg %p257
        %p600 = pneg %p254
        %p601 = pneg %p278
        %p602 = pneg %p275
        %p603 = pneg %p299
        %p604 = pneg %p296
        %p605 = pneg %p320
        %p606 = pneg %p317
        %p607 = pneg %p341
        %p608 = pneg %p338
        %p609 = pneg %p369
        %p610 = pneg %p366
        %s611 = sand.u32 %s356, 1
        %s612 = scalar_lea.sflag [#allocation10], %s611
        %s613 = sand.u32 %s356, 1
        %s614 = smul.addr %s613, 8
        %s615 = scalar_lea.vmem [#allocation22], %s614
        %s616 = smul.u32 %s40, 8
        %p617 = scmp.eq.s32.totalorder %s40, 0
        // Predicated region
        $region109: #{tpu_custom_call.1} parent=75 // pred_check
          %p618 = pneg %p617
        $region110: #{tpu_custom_call.1} parent=75 // pred_check_branch
          %620 = sbr.rel (%p618) target = $region112
        $region111: #{tpu_custom_call.1} parent=75 // pred_region
          %v621 = vld [vmem:[%s535] sm:$0xff]
          %v622 = vld [vmem:[%s535 + $0x8] sm:$0xff]
          %v623 = vld [vmem:[%s535 + $0x10] sm:$0xff]
          %v624 = vld [vmem:[%s535 + $0x18] sm:$0xff]
          %v625 = vld [vmem:[#allocation11] sm:$0x1]
          %v626 = vld [vmem:[%s2] sm:$0x1]
          %627 = vadd.xlane.f32.xlu0 %v621
          %v628 = vpop.xlane.xlu0 %627
          %629 = vadd.xlane.f32.xlu0 %v622
          %v630 = vpop.xlane.xlu0 %629
          %631 = vadd.xlane.f32.xlu0 %v623
          %v632 = vpop.xlane.xlu0 %631
          %633 = vadd.xlane.f32.xlu0 %v624
          %v634 = vpop.xlane.xlu0 %633
          %v635 = vrcp.pop 128.0
          %v636 = vmul.f32 128.0, %v635
          %v637 = vsub.f32 1.0, %v636
          %v638 = vmul.f32 %v635, %v637
          %v639 = vadd.f32 %v635, %v638
          %vm640 = vweird.f32 %v635
          %v641 = vsel %vm640, %v635, %v639
          %v642 = vmul.f32 %v628, %v641
          %v643 = vmul.f32 %v630, %v641
          %v644 = vmul.f32 %v632, %v641
          %v645 = vmul.f32 %v634, %v641
          %v646 = vsub.f32 %v621, %v642
          %v647 = vsub.f32 %v622, %v643
          %v648 = vsub.f32 %v623, %v644
          %v649 = vsub.f32 %v624, %v645
          %v650 = vmul.f32 %v646, %v646
          %v651 = vmul.f32 %v647, %v647
          %v652 = vmul.f32 %v648, %v648
          %v653 = vmul.f32 %v649, %v649
          %654 = vadd.xlane.f32.xlu0 %v650
          %v655 = vpop.xlane.xlu0 %654
          %656 = vadd.xlane.f32.xlu0 %v651
          %v657 = vpop.xlane.xlu0 %656
          %658 = vadd.xlane.f32.xlu0 %v652
          %v659 = vpop.xlane.xlu0 %658
          %660 = vadd.xlane.f32.xlu0 %v653
          %v661 = vpop.xlane.xlu0 %660
          %v662 = vmul.f32 %v655, %v641
          %v663 = vmul.f32 %v657, %v641
          %v664 = vmul.f32 %v659, %v641
          %v665 = vmul.f32 %v661, %v641
          %v666 = vadd.f32 %v662, 1e-05
          %v667 = vadd.f32 %v663, 1e-05
          %v668 = vadd.f32 %v664, 1e-05
          %v669 = vadd.f32 %v665, 1e-05
          %v670 = vrsqrt.pop %v666
          %v671 = vmul.f32 %v670, %v666
          %v672 = vmul.f32 %v671, %v670
          %v673 = vmul.f32 0.5, %v672
          %v674 = vsub.f32 1.5, %v673
          %v675 = vmul.f32 %v670, %v674
          %vm676 = vweird.f32 %v666
          %vm677 = vweird.f32 %v670
          %vm678 = vmor %vm676, %vm677
          %v679 = vsel %vm678, %v670, %v675
          %v680 = vrsqrt.pop %v667
          %v681 = vmul.f32 %v680, %v667
          %v682 = vmul.f32 %v681, %v680
          %v683 = vmul.f32 0.5, %v682
          %v684 = vsub.f32 1.5, %v683
          %v685 = vmul.f32 %v680, %v684
          %vm686 = vweird.f32 %v667
          %vm687 = vweird.f32 %v680
          %vm688 = vmor %vm686, %vm687
          %v689 = vsel %vm688, %v680, %v685
          %v690 = vrsqrt.pop %v668
          %v691 = vmul.f32 %v690, %v668
          %v692 = vmul.f32 %v691, %v690
          %v693 = vmul.f32 0.5, %v692
          %v694 = vsub.f32 1.5, %v693
          %v695 = vmul.f32 %v690, %v694
          %vm696 = vweird.f32 %v668
          %vm697 = vweird.f32 %v690
          %vm698 = vmor %vm696, %vm697
          %v699 = vsel %vm698, %v690, %v695
          %v700 = vrsqrt.pop %v669
          %v701 = vmul.f32 %v700, %v669
          %v702 = vmul.f32 %v701, %v700
          %v703 = vmul.f32 0.5, %v702
          %v704 = vsub.f32 1.5, %v703
          %v705 = vmul.f32 %v700, %v704
          %vm706 = vweird.f32 %v669
          %vm707 = vweird.f32 %v700
          %vm708 = vmor %vm706, %vm707
          %v709 = vsel %vm708, %v700, %v705
          %v710 = vmul.f32 %v646, %v679
          %v711 = vmul.f32 %v647, %v689
          %v712 = vmul.f32 %v648, %v699
          %v713 = vmul.f32 %v649, %v709
          %v715 = vperm.slane %v625, 0
          %v717 = vmul.f32 %v710, %v715
          %v718 = vmul.f32 %v711, %v715
          %v719 = vmul.f32 %v712, %v715
          %v720 = vmul.f32 %v713, %v715
          %v722 = vperm.slane %v626, 0
          %v724 = vadd.f32 %v717, %v722
          %v725 = vadd.f32 %v718, %v722
          %v726 = vadd.f32 %v719, %v722
          %v727 = vadd.f32 %v720, %v722
          %v728 = vld [vmem:[#allocation13] sm:$0xff]
          %v729 = vld [vmem:[#allocation13 + $0x8] sm:$0xff]
          %v730 = vld [vmem:[#allocation13 + $0x10] sm:$0xff]
          %v731 = vld [vmem:[#allocation13 + $0x18] sm:$0xff]
          %v732 = vld [vmem:[#allocation13 + $0x20] sm:$0xff]
          %v733 = vld [vmem:[#allocation13 + $0x28] sm:$0xff]
          %v734 = vld [vmem:[#allocation13 + $0x30] sm:$0xff]
          %v735 = vld [vmem:[#allocation13 + $0x38] sm:$0xff]
          %v736 = vld [vmem:[#allocation13 + $0x40] sm:$0xff]
          %v737 = vld [vmem:[#allocation13 + $0x48] sm:$0xff]
          %v738 = vld [vmem:[#allocation13 + $0x50] sm:$0xff]
          %v739 = vld [vmem:[#allocation13 + $0x58] sm:$0xff]
          %v740 = vld [vmem:[#allocation13 + $0x60] sm:$0xff]
          %v741 = vld [vmem:[#allocation13 + $0x68] sm:$0xff]
          %v742 = vld [vmem:[#allocation13 + $0x70] sm:$0xff]
          %v743 = vld [vmem:[#allocation13 + $0x78] sm:$0xff]
          %744 = vmatpush.msra.mxu0 %v743
          %745 = vmatpush.msra.mxu0 %v742
          %746 = vmatpush.msra.mxu0 %v741
          %747 = vmatpush.msra.mxu0 %v740
          %748 = vmatpush.msra.mxu0 %v739
          %749 = vmatpush.msra.mxu0 %v738
          %750 = vmatpush.msra.mxu0 %v737
          %751 = vmatpush.msra.mxu0 %v736
          %752 = vmatpush.msra.mxu0 %v735
          %753 = vmatpush.msra.mxu0 %v734
          %754 = vmatpush.msra.mxu0 %v733
          %755 = vmatpush.msra.mxu0 %v732
          %756 = vmatpush.msra.mxu0 %v731
          %757 = vmatpush.msra.mxu0 %v730
          %758 = vmatpush.msra.mxu0 %v729
          %759 = vmatpush.msra.mxu0 %v728
          %760 = vmatmul.f32.gmra.mxu0 %v724
          %v761 = vpop.f32.mrf.mxu0
          %v762 = vadd.f32 0.0, %v761
          %763 = vmatmul.f32.gmra.mxu0 %v725
          %v764 = vpop.f32.mrf.mxu0
          %v765 = vadd.f32 0.0, %v764
          %766 = vmatmul.f32.gmra.mxu0 %v726
          %v767 = vpop.f32.mrf.mxu0
          %v768 = vadd.f32 0.0, %v767
          %769 = vmatmul.f32.gmra.mxu0 %v727
          %v770 = vpop.f32.mrf.mxu0
          %v771 = vadd.f32 0.0, %v770
          %772 = vdwg.mxu0
          %v773 = vmul.f32 %v762, 0.088388346
          %v774 = vmul.f32 %v765, 0.088388346
          %v775 = vmul.f32 %v768, 0.088388346
          %v776 = vmul.f32 %v771, 0.088388346
          %v777 = vld [vmem:[#allocation14] sm:$0xff]
          %v778 = vld [vmem:[#allocation14 + $0x8] sm:$0xff]
          %v779 = vld [vmem:[#allocation14 + $0x10] sm:$0xff]
          %v780 = vld [vmem:[#allocation14 + $0x18] sm:$0xff]
          %v781 = vld [vmem:[#allocation14 + $0x20] sm:$0xff]
          %v782 = vld [vmem:[#allocation14 + $0x28] sm:$0xff]
          %v783 = vld [vmem:[#allocation14 + $0x30] sm:$0xff]
          %v784 = vld [vmem:[#allocation14 + $0x38] sm:$0xff]
          %v785 = vld [vmem:[#allocation14 + $0x40] sm:$0xff]
          %v786 = vld [vmem:[#allocation14 + $0x48] sm:$0xff]
          %v787 = vld [vmem:[#allocation14 + $0x50] sm:$0xff]
          %v788 = vld [vmem:[#allocation14 + $0x58] sm:$0xff]
          %v789 = vld [vmem:[#allocation14 + $0x60] sm:$0xff]
          %v790 = vld [vmem:[#allocation14 + $0x68] sm:$0xff]
          %v791 = vld [vmem:[#allocation14 + $0x70] sm:$0xff]
          %v792 = vld [vmem:[#allocation14 + $0x78] sm:$0xff]
          %793 = vmatpush.msra.mxu0 %v792
          %794 = vmatpush.msra.mxu0 %v791
          %795 = vmatpush.msra.mxu0 %v790
          %796 = vmatpush.msra.mxu0 %v789
          %797 = vmatpush.msra.mxu0 %v788
          %798 = vmatpush.msra.mxu0 %v787
          %799 = vmatpush.msra.mxu0 %v786
          %800 = vmatpush.msra.mxu0 %v785
          %801 = vmatpush.msra.mxu0 %v784
          %802 = vmatpush.msra.mxu0 %v783
          %803 = vmatpush.msra.mxu0 %v782
          %804 = vmatpush.msra.mxu0 %v781
          %805 = vmatpush.msra.mxu0 %v780
          %806 = vmatpush.msra.mxu0 %v779
          %807 = vmatpush.msra.mxu0 %v778
          %808 = vmatpush.msra.mxu0 %v777
          %809 = vmatmul.f32.gmra.mxu0 %v724
          %v810 = vpop.f32.mrf.mxu0
          %v811 = vadd.f32 0.0, %v810
          %812 = vmatmul.f32.gmra.mxu0 %v725
          %v813 = vpop.f32.mrf.mxu0
          %v814 = vadd.f32 0.0, %v813
          %815 = vmatmul.f32.gmra.mxu0 %v726
          %v816 = vpop.f32.mrf.mxu0
          %v817 = vadd.f32 0.0, %v816
          %818 = vmatmul.f32.gmra.mxu0 %v727
          %v819 = vpop.f32.mrf.mxu0
          %v820 = vadd.f32 0.0, %v819
          %821 = vdwg.mxu0
          %v822 = vld [vmem:[#allocation16] sm:$0xff]
          %v823 = vld [vmem:[#allocation16 + $0x8] sm:$0xff]
          %v824 = vld [vmem:[#allocation16 + $0x10] sm:$0xff]
          %v825 = vld [vmem:[#allocation16 + $0x18] sm:$0xff]
          %v826 = vld [vmem:[#allocation16 + $0x20] sm:$0xff]
          %v827 = vld [vmem:[#allocation16 + $0x28] sm:$0xff]
          %v828 = vld [vmem:[#allocation16 + $0x30] sm:$0xff]
          %v829 = vld [vmem:[#allocation16 + $0x38] sm:$0xff]
          %v830 = vld [vmem:[#allocation16 + $0x40] sm:$0xff]
          %v831 = vld [vmem:[#allocation16 + $0x48] sm:$0xff]
          %v832 = vld [vmem:[#allocation16 + $0x50] sm:$0xff]
          %v833 = vld [vmem:[#allocation16 + $0x58] sm:$0xff]
          %v834 = vld [vmem:[#allocation16 + $0x60] sm:$0xff]
          %v835 = vld [vmem:[#allocation16 + $0x68] sm:$0xff]
          %v836 = vld [vmem:[#allocation16 + $0x70] sm:$0xff]
          %v837 = vld [vmem:[#allocation16 + $0x78] sm:$0xff]
          %838 = vmatpush.msra.mxu0 %v837
          %839 = vmatpush.msra.mxu0 %v836
          %840 = vmatpush.msra.mxu0 %v835
          %841 = vmatpush.msra.mxu0 %v834
          %842 = vmatpush.msra.mxu0 %v833
          %843 = vmatpush.msra.mxu0 %v832
          %844 = vmatpush.msra.mxu0 %v831
          %845 = vmatpush.msra.mxu0 %v830
          %846 = vmatpush.msra.mxu0 %v829
          %847 = vmatpush.msra.mxu0 %v828
          %848 = vmatpush.msra.mxu0 %v827
          %849 = vmatpush.msra.mxu0 %v826
          %850 = vmatpush.msra.mxu0 %v825
          %851 = vmatpush.msra.mxu0 %v824
          %852 = vmatpush.msra.mxu0 %v823
          %853 = vmatpush.msra.mxu0 %v822
          %854 = vmatmul.f32.gmra.mxu0 %v724
          %v855 = vpop.f32.mrf.mxu0
          %v856 = vadd.f32 0.0, %v855
          %857 = vmatmul.f32.gmra.mxu0 %v725
          %v858 = vpop.f32.mrf.mxu0
          %v859 = vadd.f32 0.0, %v858
          %860 = vmatmul.f32.gmra.mxu0 %v726
          %v861 = vpop.f32.mrf.mxu0
          %v862 = vadd.f32 0.0, %v861
          %863 = vmatmul.f32.gmra.mxu0 %v727
          %v864 = vpop.f32.mrf.mxu0
          %v865 = vadd.f32 0.0, %v864
          %866 = vdwg.mxu0
          %871 = vrot.lane.b32.xlu0 %v773, 96
          %v872 = vpop.permute.xlu0 %871
          %873 = vrot.lane.b32.xlu0 %v774, 96
          %v874 = vpop.permute.xlu0 %873
          %875 = vrot.lane.b32.xlu0 %v775, 96
          %v876 = vpop.permute.xlu0 %875
          %877 = vrot.lane.b32.xlu0 %v776, 96
          %v878 = vpop.permute.xlu0 %877
          %883 = vrot.lane.b32.xlu0 %v773, 64
          %v884 = vpop.permute.xlu0 %883
          %885 = vrot.lane.b32.xlu0 %v774, 64
          %v886 = vpop.permute.xlu0 %885
          %887 = vrot.lane.b32.xlu0 %v775, 64
          %v888 = vpop.permute.xlu0 %887
          %889 = vrot.lane.b32.xlu0 %v776, 64
          %v890 = vpop.permute.xlu0 %889
          %895 = vrot.lane.b32.xlu0 %v773, 32
          %v896 = vpop.permute.xlu0 %895
          %897 = vrot.lane.b32.xlu0 %v774, 32
          %v898 = vpop.permute.xlu0 %897
          %899 = vrot.lane.b32.xlu0 %v775, 32
          %v900 = vpop.permute.xlu0 %899
          %901 = vrot.lane.b32.xlu0 %v776, 32
          %v902 = vpop.permute.xlu0 %901
          %v907 = vrot.slane %v884, 4
          %vm908 = vcmask 1047556
          %v909 = vsel %vm908, %v907, %v773
          %v910 = vrot.slane %v773, 4
          %v911 = vsel %vm908, %v884, %v910
          %v913 = vunpack.c.l.s4 1983009808
          %v914 = vunpack.c.0.s8 %v913
          %v915 = vperm.slane %v909, %v914
          %v917 = vunpack.c.l.s4 1983009808
          %v918 = vunpack.c.0.s8 %v917
          %v919 = vperm.slane %v911, %v918
          %v920 = vrot.slane %v896, 4
          %v921 = vsel %vm908, %v920, %v872
          %v922 = vrot.slane %v872, 4
          %v923 = vsel %vm908, %v896, %v922
          %v925 = vunpack.c.l.s4 1983009808
          %v926 = vunpack.c.0.s8 %v925
          %v927 = vperm.slane %v921, %v926
          %v929 = vunpack.c.l.s4 1983009808
          %v930 = vunpack.c.0.s8 %v929
          %v931 = vperm.slane %v923, %v930
          %v932 = vrot.slane %v927, 4
          %v933 = vsel %vm908, %v932, %v915
          %v934 = vrot.slane %v915, 4
          %v935 = vsel %vm908, %v927, %v934
          %v937 = vunpack.c.l.s4 1934713408
          %v938 = vunpack.c.0.s8 %v937
          %v939 = vperm.slane %v933, %v938
          %v941 = vunpack.c.l.s4 1934713408
          %v942 = vunpack.c.0.s8 %v941
          %v943 = vperm.slane %v935, %v942
          %v944 = vrot.slane %v931, 4
          %v945 = vsel %vm908, %v944, %v919
          %v946 = vrot.slane %v919, 4
          %v947 = vsel %vm908, %v931, %v946
          %v949 = vunpack.c.l.s4 1934713408
          %v950 = vunpack.c.0.s8 %v949
          %v951 = vperm.slane %v945, %v950
          %v953 = vunpack.c.l.s4 1934713408
          %v954 = vunpack.c.0.s8 %v953
          %v955 = vperm.slane %v947, %v954
          %v956 = vrot.slane %v939, 4
          %v957 = vsel %vm908, 0.0, %v956
          %v958 = vrot.slane %v943, 4
          %v959 = vsel %vm908, 0.0, %v958
          %v960 = vrot.slane %v951, 4
          %v961 = vsel %vm908, 0.0, %v960
          %v962 = vrot.slane %v955, 4
          %v963 = vsel %vm908, 0.0, %v962
          %v964 = vrot.slane %v886, 4
          %v965 = vsel %vm908, %v964, %v774
          %v966 = vrot.slane %v774, 4
          %v967 = vsel %vm908, %v886, %v966
          %v969 = vunpack.c.l.s4 1983009808
          %v970 = vunpack.c.0.s8 %v969
          %v971 = vperm.slane %v965, %v970
          %v973 = vunpack.c.l.s4 1983009808
          %v974 = vunpack.c.0.s8 %v973
          %v975 = vperm.slane %v967, %v974
          %v976 = vrot.slane %v898, 4
          %v977 = vsel %vm908, %v976, %v874
          %v978 = vrot.slane %v874, 4
          %v979 = vsel %vm908, %v898, %v978
          %v981 = vunpack.c.l.s4 1983009808
          %v982 = vunpack.c.0.s8 %v981
          %v983 = vperm.slane %v977, %v982
          %v985 = vunpack.c.l.s4 1983009808
          %v986 = vunpack.c.0.s8 %v985
          %v987 = vperm.slane %v979, %v986
          %v988 = vrot.slane %v983, 4
          %v989 = vsel %vm908, %v988, %v971
          %v990 = vrot.slane %v971, 4
          %v991 = vsel %vm908, %v983, %v990
          %v993 = vunpack.c.l.s4 1934713408
          %v994 = vunpack.c.0.s8 %v993
          %v995 = vperm.slane %v989, %v994
          %v997 = vunpack.c.l.s4 1934713408
          %v998 = vunpack.c.0.s8 %v997
          %v999 = vperm.slane %v991, %v998
          %v1000 = vrot.slane %v987, 4
          %v1001 = vsel %vm908, %v1000, %v975
          %v1002 = vrot.slane %v975, 4
          %v1003 = vsel %vm908, %v987, %v1002
          %v1005 = vunpack.c.l.s4 1934713408
          %v1006 = vunpack.c.0.s8 %v1005
          %v1007 = vperm.slane %v1001, %v1006
          %v1009 = vunpack.c.l.s4 1934713408
          %v1010 = vunpack.c.0.s8 %v1009
          %v1011 = vperm.slane %v1003, %v1010
          %v1012 = vrot.slane %v995, 4
          %v1013 = vsel %vm908, 0.0, %v1012
          %v1014 = vrot.slane %v999, 4
          %v1015 = vsel %vm908, 0.0, %v1014
          %v1016 = vrot.slane %v1007, 4
          %v1017 = vsel %vm908, 0.0, %v1016
          %v1018 = vrot.slane %v1011, 4
          %v1019 = vsel %vm908, 0.0, %v1018
          %v1020 = vrot.slane %v888, 4
          %v1021 = vsel %vm908, %v1020, %v775
          %v1022 = vrot.slane %v775, 4
          %v1023 = vsel %vm908, %v888, %v1022
          %v1025 = vunpack.c.l.s4 1983009808
          %v1026 = vunpack.c.0.s8 %v1025
          %v1027 = vperm.slane %v1021, %v1026
          %v1029 = vunpack.c.l.s4 1983009808
          %v1030 = vunpack.c.0.s8 %v1029
          %v1031 = vperm.slane %v1023, %v1030
          %v1032 = vrot.slane %v900, 4
          %v1033 = vsel %vm908, %v1032, %v876
          %v1034 = vrot.slane %v876, 4
          %v1035 = vsel %vm908, %v900, %v1034
          %v1037 = vunpack.c.l.s4 1983009808
          %v1038 = vunpack.c.0.s8 %v1037
          %v1039 = vperm.slane %v1033, %v1038
          %v1041 = vunpack.c.l.s4 1983009808
          %v1042 = vunpack.c.0.s8 %v1041
          %v1043 = vperm.slane %v1035, %v1042
          %v1044 = vrot.slane %v1039, 4
          %v1045 = vsel %vm908, %v1044, %v1027
          %v1046 = vrot.slane %v1027, 4
          %v1047 = vsel %vm908, %v1039, %v1046
          %v1049 = vunpack.c.l.s4 1934713408
          %v1050 = vunpack.c.0.s8 %v1049
          %v1051 = vperm.slane %v1045, %v1050
          %v1053 = vunpack.c.l.s4 1934713408
          %v1054 = vunpack.c.0.s8 %v1053
          %v1055 = vperm.slane %v1047, %v1054
          %v1056 = vrot.slane %v1043, 4
          %v1057 = vsel %vm908, %v1056, %v1031
          %v1058 = vrot.slane %v1031, 4
          %v1059 = vsel %vm908, %v1043, %v1058
          %v1061 = vunpack.c.l.s4 1934713408
          %v1062 = vunpack.c.0.s8 %v1061
          %v1063 = vperm.slane %v1057, %v1062
          %v1065 = vunpack.c.l.s4 1934713408
          %v1066 = vunpack.c.0.s8 %v1065
          %v1067 = vperm.slane %v1059, %v1066
          %v1068 = vrot.slane %v1051, 4
          %v1069 = vsel %vm908, 0.0, %v1068
          %v1070 = vrot.slane %v1055, 4
          %v1071 = vsel %vm908, 0.0, %v1070
          %v1072 = vrot.slane %v1063, 4
          %v1073 = vsel %vm908, 0.0, %v1072
          %v1074 = vrot.slane %v1067, 4
          %v1075 = vsel %vm908, 0.0, %v1074
          %v1076 = vrot.slane %v890, 4
          %v1077 = vsel %vm908, %v1076, %v776
          %v1078 = vrot.slane %v776, 4
          %v1079 = vsel %vm908, %v890, %v1078
          %v1081 = vunpack.c.l.s4 1983009808
          %v1082 = vunpack.c.0.s8 %v1081
          %v1083 = vperm.slane %v1077, %v1082
          %v1085 = vunpack.c.l.s4 1983009808
          %v1086 = vunpack.c.0.s8 %v1085
          %v1087 = vperm.slane %v1079, %v1086
          %v1088 = vrot.slane %v902, 4
          %v1089 = vsel %vm908, %v1088, %v878
          %v1090 = vrot.slane %v878, 4
          %v1091 = vsel %vm908, %v902, %v1090
          %v1093 = vunpack.c.l.s4 1983009808
          %v1094 = vunpack.c.0.s8 %v1093
          %v1095 = vperm.slane %v1089, %v1094
          %v1097 = vunpack.c.l.s4 1983009808
          %v1098 = vunpack.c.0.s8 %v1097
          %v1099 = vperm.slane %v1091, %v1098
          %v1100 = vrot.slane %v1095, 4
          %v1101 = vsel %vm908, %v1100, %v1083
          %v1102 = vrot.slane %v1083, 4
          %v1103 = vsel %vm908, %v1095, %v1102
          %v1105 = vunpack.c.l.s4 1934713408
          %v1106 = vunpack.c.0.s8 %v1105
          %v1107 = vperm.slane %v1101, %v1106
          %v1109 = vunpack.c.l.s4 1934713408
          %v1110 = vunpack.c.0.s8 %v1109
          %v1111 = vperm.slane %v1103, %v1110
          %v1112 = vrot.slane %v1099, 4
          %v1113 = vsel %vm908, %v1112, %v1087
          %v1114 = vrot.slane %v1087, 4
          %v1115 = vsel %vm908, %v1099, %v1114
          %v1117 = vunpack.c.l.s4 1934713408
          %v1118 = vunpack.c.0.s8 %v1117
          %v1119 = vperm.slane %v1113, %v1118
          %v1121 = vunpack.c.l.s4 1934713408
          %v1122 = vunpack.c.0.s8 %v1121
          %v1123 = vperm.slane %v1115, %v1122
          %v1124 = vrot.slane %v1107, 4
          %v1125 = vsel %vm908, 0.0, %v1124
          %v1126 = vrot.slane %v1111, 4
          %v1127 = vsel %vm908, 0.0, %v1126
          %v1128 = vrot.slane %v1119, 4
          %v1129 = vsel %vm908, 0.0, %v1128
          %v1130 = vrot.slane %v1123, 4
          %v1131 = vsel %vm908, 0.0, %v1130
          %v1132 = vsel %vm908, %v958, %v939
          %v1134 = vunpack.c.l.s4 1983009808
          %v1135 = vunpack.c.0.s8 %v1134
          %v1136 = vperm.slane %v1132, %v1135
          %v1137 = vrot.slane %v959, 4
          %v1138 = vsel %vm908, %v1137, %v957
          %v1140 = vunpack.c.l.s4 1983009808
          %v1141 = vunpack.c.0.s8 %v1140
          %v1142 = vperm.slane %v1138, %v1141
          %v1143 = vsel %vm908, %v962, %v951
          %v1145 = vunpack.c.l.s4 1983009808
          %v1146 = vunpack.c.0.s8 %v1145
          %v1147 = vperm.slane %v1143, %v1146
          %v1148 = vrot.slane %v963, 4
          %v1149 = vsel %vm908, %v1148, %v961
          %v1151 = vunpack.c.l.s4 1983009808
          %v1152 = vunpack.c.0.s8 %v1151
          %v1153 = vperm.slane %v1149, %v1152
          %v1154 = vrot.slane %v1142, 4
          %v1155 = vsel %vm908, %v1154, %v1136
          %v1156 = vrot.slane %v1136, 4
          %v1157 = vsel %vm908, %v1142, %v1156
          %v1159 = vunpack.c.l.s4 1934713408
          %v1160 = vunpack.c.0.s8 %v1159
          %v1161 = vperm.slane %v1155, %v1160
          %v1163 = vunpack.c.l.s4 1934713408
          %v1164 = vunpack.c.0.s8 %v1163
          %v1165 = vperm.slane %v1157, %v1164
          %v1166 = vrot.slane %v1153, 4
          %v1167 = vsel %vm908, %v1166, %v1147
          %v1168 = vrot.slane %v1147, 4
          %v1169 = vsel %vm908, %v1153, %v1168
          %v1171 = vunpack.c.l.s4 1934713408
          %v1172 = vunpack.c.0.s8 %v1171
          %v1173 = vperm.slane %v1167, %v1172
          %v1175 = vunpack.c.l.s4 1934713408
          %v1176 = vunpack.c.0.s8 %v1175
          %v1177 = vperm.slane %v1169, %v1176
          %v1178 = vrot.slane %v1173, 4
          %v1179 = vsel %vm908, %v1178, %v1161
          %v1180 = vrot.slane %v1161, 4
          %v1181 = vsel %vm908, %v1173, %v1180
          %v1182 = vrot.slane %v1177, 4
          %v1183 = vsel %vm908, %v1182, %v1165
          %v1184 = vrot.slane %v1165, 4
          %v1185 = vsel %vm908, %v1177, %v1184
          %v1186 = vsel %vm908, %v1014, %v995
          %v1188 = vunpack.c.l.s4 1983009808
          %v1189 = vunpack.c.0.s8 %v1188
          %v1190 = vperm.slane %v1186, %v1189
          %v1191 = vrot.slane %v1015, 4
          %v1192 = vsel %vm908, %v1191, %v1013
          %v1194 = vunpack.c.l.s4 1983009808
          %v1195 = vunpack.c.0.s8 %v1194
          %v1196 = vperm.slane %v1192, %v1195
          %v1197 = vsel %vm908, %v1018, %v1007
          %v1199 = vunpack.c.l.s4 1983009808
          %v1200 = vunpack.c.0.s8 %v1199
          %v1201 = vperm.slane %v1197, %v1200
          %v1202 = vrot.slane %v1019, 4
          %v1203 = vsel %vm908, %v1202, %v1017
          %v1205 = vunpack.c.l.s4 1983009808
          %v1206 = vunpack.c.0.s8 %v1205
          %v1207 = vperm.slane %v1203, %v1206
          %v1208 = vrot.slane %v1196, 4
          %v1209 = vsel %vm908, %v1208, %v1190
          %v1210 = vrot.slane %v1190, 4
          %v1211 = vsel %vm908, %v1196, %v1210
          %v1213 = vunpack.c.l.s4 1934713408
          %v1214 = vunpack.c.0.s8 %v1213
          %v1215 = vperm.slane %v1209, %v1214
          %v1217 = vunpack.c.l.s4 1934713408
          %v1218 = vunpack.c.0.s8 %v1217
          %v1219 = vperm.slane %v1211, %v1218
          %v1220 = vrot.slane %v1207, 4
          %v1221 = vsel %vm908, %v1220, %v1201
          %v1222 = vrot.slane %v1201, 4
          %v1223 = vsel %vm908, %v1207, %v1222
          %v1225 = vunpack.c.l.s4 1934713408
          %v1226 = vunpack.c.0.s8 %v1225
          %v1227 = vperm.slane %v1221, %v1226
          %v1229 = vunpack.c.l.s4 1934713408
          %v1230 = vunpack.c.0.s8 %v1229
          %v1231 = vperm.slane %v1223, %v1230
          %v1232 = vrot.slane %v1227, 4
          %v1233 = vsel %vm908, %v1232, %v1215
          %v1234 = vrot.slane %v1215, 4
          %v1235 = vsel %vm908, %v1227, %v1234
          %v1236 = vrot.slane %v1231, 4
          %v1237 = vsel %vm908, %v1236, %v1219
          %v1238 = vrot.slane %v1219, 4
          %v1239 = vsel %vm908, %v1231, %v1238
          %v1240 = vsel %vm908, %v1070, %v1051
          %v1242 = vunpack.c.l.s4 1983009808
          %v1243 = vunpack.c.0.s8 %v1242
          %v1244 = vperm.slane %v1240, %v1243
          %v1245 = vrot.slane %v1071, 4
          %v1246 = vsel %vm908, %v1245, %v1069
          %v1248 = vunpack.c.l.s4 1983009808
          %v1249 = vunpack.c.0.s8 %v1248
          %v1250 = vperm.slane %v1246, %v1249
          %v1251 = vsel %vm908, %v1074, %v1063
          %v1253 = vunpack.c.l.s4 1983009808
          %v1254 = vunpack.c.0.s8 %v1253
          %v1255 = vperm.slane %v1251, %v1254
          %v1256 = vrot.slane %v1075, 4
          %v1257 = vsel %vm908, %v1256, %v1073
          %v1259 = vunpack.c.l.s4 1983009808
          %v1260 = vunpack.c.0.s8 %v1259
          %v1261 = vperm.slane %v1257, %v1260
          %v1262 = vrot.slane %v1250, 4
          %v1263 = vsel %vm908, %v1262, %v1244
          %v1264 = vrot.slane %v1244, 4
          %v1265 = vsel %vm908, %v1250, %v1264
          %v1267 = vunpack.c.l.s4 1934713408
          %v1268 = vunpack.c.0.s8 %v1267
          %v1269 = vperm.slane %v1263, %v1268
          %v1271 = vunpack.c.l.s4 1934713408
          %v1272 = vunpack.c.0.s8 %v1271
          %v1273 = vperm.slane %v1265, %v1272
          %v1274 = vrot.slane %v1261, 4
          %v1275 = vsel %vm908, %v1274, %v1255
          %v1276 = vrot.slane %v1255, 4
          %v1277 = vsel %vm908, %v1261, %v1276
          %v1279 = vunpack.c.l.s4 1934713408
          %v1280 = vunpack.c.0.s8 %v1279
          %v1281 = vperm.slane %v1275, %v1280
          %v1283 = vunpack.c.l.s4 1934713408
          %v1284 = vunpack.c.0.s8 %v1283
          %v1285 = vperm.slane %v1277, %v1284
          %v1286 = vrot.slane %v1281, 4
          %v1287 = vsel %vm908, %v1286, %v1269
          %v1288 = vrot.slane %v1269, 4
          %v1289 = vsel %vm908, %v1281, %v1288
          %v1290 = vrot.slane %v1285, 4
          %v1291 = vsel %vm908, %v1290, %v1273
          %v1292 = vrot.slane %v1273, 4
          %v1293 = vsel %vm908, %v1285, %v1292
          %v1294 = vsel %vm908, %v1126, %v1107
          %v1296 = vunpack.c.l.s4 1983009808
          %v1297 = vunpack.c.0.s8 %v1296
          %v1298 = vperm.slane %v1294, %v1297
          %v1299 = vrot.slane %v1127, 4
          %v1300 = vsel %vm908, %v1299, %v1125
          %v1302 = vunpack.c.l.s4 1983009808
          %v1303 = vunpack.c.0.s8 %v1302
          %v1304 = vperm.slane %v1300, %v1303
          %v1305 = vsel %vm908, %v1130, %v1119
          %v1307 = vunpack.c.l.s4 1983009808
          %v1308 = vunpack.c.0.s8 %v1307
          %v1309 = vperm.slane %v1305, %v1308
          %v1310 = vrot.slane %v1131, 4
          %v1311 = vsel %vm908, %v1310, %v1129
          %v1313 = vunpack.c.l.s4 1983009808
          %v1314 = vunpack.c.0.s8 %v1313
          %v1315 = vperm.slane %v1311, %v1314
          %v1316 = vrot.slane %v1304, 4
          %v1317 = vsel %vm908, %v1316, %v1298
          %v1318 = vrot.slane %v1298, 4
          %v1319 = vsel %vm908, %v1304, %v1318
          %v1321 = vunpack.c.l.s4 1934713408
          %v1322 = vunpack.c.0.s8 %v1321
          %v1323 = vperm.slane %v1317, %v1322
          %v1325 = vunpack.c.l.s4 1934713408
          %v1326 = vunpack.c.0.s8 %v1325
          %v1327 = vperm.slane %v1319, %v1326
          %v1328 = vrot.slane %v1315, 4
          %v1329 = vsel %vm908, %v1328, %v1309
          %v1330 = vrot.slane %v1309, 4
          %v1331 = vsel %vm908, %v1315, %v1330
          %v1333 = vunpack.c.l.s4 1934713408
          %v1334 = vunpack.c.0.s8 %v1333
          %v1335 = vperm.slane %v1329, %v1334
          %v1337 = vunpack.c.l.s4 1934713408
          %v1338 = vunpack.c.0.s8 %v1337
          %v1339 = vperm.slane %v1331, %v1338
          %v1340 = vrot.slane %v1335, 4
          %v1341 = vsel %vm908, %v1340, %v1323
          %v1342 = vrot.slane %v1323, 4
          %v1343 = vsel %vm908, %v1335, %v1342
          %v1344 = vrot.slane %v1339, 4
          %v1345 = vsel %vm908, %v1344, %v1327
          %v1346 = vrot.slane %v1327, 4
          %v1347 = vsel %vm908, %v1339, %v1346
          %vm1348 = vcmask 261120
          %1349 = vst.msk [vmem:[#allocation2] sm:$0xff] %vm1348, %v1179
          %1350 = vst.msk [vmem:[#allocation2 + $0x8] sm:$0xff] %vm1348, %v1233
          %1351 = vst.msk [vmem:[#allocation2 + $0x10] sm:$0xff] %vm1348, %v1287
          %1352 = vst.msk [vmem:[#allocation2 + $0x18] sm:$0xff] %vm1348, %v1341
          %1353 = vst.msk [vmem:[#allocation2 + $0x20] sm:$0xff] %vm1348, %v1181
          %1354 = vst.msk [vmem:[#allocation2 + $0x28] sm:$0xff] %vm1348, %v1235
          %1355 = vst.msk [vmem:[#allocation2 + $0x30] sm:$0xff] %vm1348, %v1289
          %1356 = vst.msk [vmem:[#allocation2 + $0x38] sm:$0xff] %vm1348, %v1343
          %1357 = vst.msk [vmem:[#allocation2 + $0x40] sm:$0xff] %vm1348, %v1183
          %1358 = vst.msk [vmem:[#allocation2 + $0x48] sm:$0xff] %vm1348, %v1237
          %1359 = vst.msk [vmem:[#allocation2 + $0x50] sm:$0xff] %vm1348, %v1291
          %1360 = vst.msk [vmem:[#allocation2 + $0x58] sm:$0xff] %vm1348, %v1345
          %1361 = vst.msk [vmem:[#allocation2 + $0x60] sm:$0xff] %vm1348, %v1185
          %1362 = vst.msk [vmem:[#allocation2 + $0x68] sm:$0xff] %vm1348, %v1239
          %1363 = vst.msk [vmem:[#allocation2 + $0x70] sm:$0xff] %vm1348, %v1293
          %1364 = vst.msk [vmem:[#allocation2 + $0x78] sm:$0xff] %vm1348, %v1347
          %1369 = vrot.lane.b32.xlu0 %v811, 96
          %v1370 = vpop.permute.xlu0 %1369
          %1371 = vrot.lane.b32.xlu0 %v814, 96
          %v1372 = vpop.permute.xlu0 %1371
          %1373 = vrot.lane.b32.xlu0 %v817, 96
          %v1374 = vpop.permute.xlu0 %1373
          %1375 = vrot.lane.b32.xlu0 %v820, 96
          %v1376 = vpop.permute.xlu0 %1375
          %1381 = vrot.lane.b32.xlu0 %v811, 64
          %v1382 = vpop.permute.xlu0 %1381
          %1383 = vrot.lane.b32.xlu0 %v814, 64
          %v1384 = vpop.permute.xlu0 %1383
          %1385 = vrot.lane.b32.xlu0 %v817, 64
          %v1386 = vpop.permute.xlu0 %1385
          %1387 = vrot.lane.b32.xlu0 %v820, 64
          %v1388 = vpop.permute.xlu0 %1387
          %1393 = vrot.lane.b32.xlu0 %v811, 32
          %v1394 = vpop.permute.xlu0 %1393
          %1395 = vrot.lane.b32.xlu0 %v814, 32
          %v1396 = vpop.permute.xlu0 %1395
          %1397 = vrot.lane.b32.xlu0 %v817, 32
          %v1398 = vpop.permute.xlu0 %1397
          %1399 = vrot.lane.b32.xlu0 %v820, 32
          %v1400 = vpop.permute.xlu0 %1399
          %v1405 = vrot.slane %v1382, 4
          %v1406 = vsel %vm908, %v1405, %v811
          %v1407 = vrot.slane %v811, 4
          %v1408 = vsel %vm908, %v1382, %v1407
          %v1410 = vunpack.c.l.s4 1983009808
          %v1411 = vunpack.c.0.s8 %v1410
          %v1412 = vperm.slane %v1406, %v1411
          %v1414 = vunpack.c.l.s4 1983009808
          %v1415 = vunpack.c.0.s8 %v1414
          %v1416 = vperm.slane %v1408, %v1415
          %v1417 = vrot.slane %v1394, 4
          %v1418 = vsel %vm908, %v1417, %v1370
          %v1419 = vrot.slane %v1370, 4
          %v1420 = vsel %vm908, %v1394, %v1419
          %v1422 = vunpack.c.l.s4 1983009808
          %v1423 = vunpack.c.0.s8 %v1422
          %v1424 = vperm.slane %v1418, %v1423
          %v1426 = vunpack.c.l.s4 1983009808
          %v1427 = vunpack.c.0.s8 %v1426
          %v1428 = vperm.slane %v1420, %v1427
          %v1429 = vrot.slane %v1424, 4
          %v1430 = vsel %vm908, %v1429, %v1412
          %v1431 = vrot.slane %v1412, 4
          %v1432 = vsel %vm908, %v1424, %v1431
          %v1434 = vunpack.c.l.s4 1934713408
          %v1435 = vunpack.c.0.s8 %v1434
          %v1436 = vperm.slane %v1430, %v1435
          %v1438 = vunpack.c.l.s4 1934713408
          %v1439 = vunpack.c.0.s8 %v1438
          %v1440 = vperm.slane %v1432, %v1439
          %v1441 = vrot.slane %v1428, 4
          %v1442 = vsel %vm908, %v1441, %v1416
          %v1443 = vrot.slane %v1416, 4
          %v1444 = vsel %vm908, %v1428, %v1443
          %v1446 = vunpack.c.l.s4 1934713408
          %v1447 = vunpack.c.0.s8 %v1446
          %v1448 = vperm.slane %v1442, %v1447
          %v1450 = vunpack.c.l.s4 1934713408
          %v1451 = vunpack.c.0.s8 %v1450
          %v1452 = vperm.slane %v1444, %v1451
          %v1453 = vrot.slane %v1436, 4
          %v1454 = vsel %vm908, 0.0, %v1453
          %v1455 = vrot.slane %v1440, 4
          %v1456 = vsel %vm908, 0.0, %v1455
          %v1457 = vrot.slane %v1448, 4
          %v1458 = vsel %vm908, 0.0, %v1457
          %v1459 = vrot.slane %v1452, 4
          %v1460 = vsel %vm908, 0.0, %v1459
          %v1461 = vrot.slane %v1384, 4
          %v1462 = vsel %vm908, %v1461, %v814
          %v1463 = vrot.slane %v814, 4
          %v1464 = vsel %vm908, %v1384, %v1463
          %v1466 = vunpack.c.l.s4 1983009808
          %v1467 = vunpack.c.0.s8 %v1466
          %v1468 = vperm.slane %v1462, %v1467
          %v1470 = vunpack.c.l.s4 1983009808
          %v1471 = vunpack.c.0.s8 %v1470
          %v1472 = vperm.slane %v1464, %v1471
          %v1473 = vrot.slane %v1396, 4
          %v1474 = vsel %vm908, %v1473, %v1372
          %v1475 = vrot.slane %v1372, 4
          %v1476 = vsel %vm908, %v1396, %v1475
          %v1478 = vunpack.c.l.s4 1983009808
          %v1479 = vunpack.c.0.s8 %v1478
          %v1480 = vperm.slane %v1474, %v1479
          %v1482 = vunpack.c.l.s4 1983009808
          %v1483 = vunpack.c.0.s8 %v1482
          %v1484 = vperm.slane %v1476, %v1483
          %v1485 = vrot.slane %v1480, 4
          %v1486 = vsel %vm908, %v1485, %v1468
          %v1487 = vrot.slane %v1468, 4
          %v1488 = vsel %vm908, %v1480, %v1487
          %v1490 = vunpack.c.l.s4 1934713408
          %v1491 = vunpack.c.0.s8 %v1490
          %v1492 = vperm.slane %v1486, %v1491
          %v1494 = vunpack.c.l.s4 1934713408
          %v1495 = vunpack.c.0.s8 %v1494
          %v1496 = vperm.slane %v1488, %v1495
          %v1497 = vrot.slane %v1484, 4
          %v1498 = vsel %vm908, %v1497, %v1472
          %v1499 = vrot.slane %v1472, 4
          %v1500 = vsel %vm908, %v1484, %v1499
          %v1502 = vunpack.c.l.s4 1934713408
          %v1503 = vunpack.c.0.s8 %v1502
          %v1504 = vperm.slane %v1498, %v1503
          %v1506 = vunpack.c.l.s4 1934713408
          %v1507 = vunpack.c.0.s8 %v1506
          %v1508 = vperm.slane %v1500, %v1507
          %v1509 = vrot.slane %v1492, 4
          %v1510 = vsel %vm908, 0.0, %v1509
          %v1511 = vrot.slane %v1496, 4
          %v1512 = vsel %vm908, 0.0, %v1511
          %v1513 = vrot.slane %v1504, 4
          %v1514 = vsel %vm908, 0.0, %v1513
          %v1515 = vrot.slane %v1508, 4
          %v1516 = vsel %vm908, 0.0, %v1515
          %v1517 = vrot.slane %v1386, 4
          %v1518 = vsel %vm908, %v1517, %v817
          %v1519 = vrot.slane %v817, 4
          %v1520 = vsel %vm908, %v1386, %v1519
          %v1522 = vunpack.c.l.s4 1983009808
          %v1523 = vunpack.c.0.s8 %v1522
          %v1524 = vperm.slane %v1518, %v1523
          %v1526 = vunpack.c.l.s4 1983009808
          %v1527 = vunpack.c.0.s8 %v1526
          %v1528 = vperm.slane %v1520, %v1527
          %v1529 = vrot.slane %v1398, 4
          %v1530 = vsel %vm908, %v1529, %v1374
          %v1531 = vrot.slane %v1374, 4
          %v1532 = vsel %vm908, %v1398, %v1531
          %v1534 = vunpack.c.l.s4 1983009808
          %v1535 = vunpack.c.0.s8 %v1534
          %v1536 = vperm.slane %v1530, %v1535
          %v1538 = vunpack.c.l.s4 1983009808
          %v1539 = vunpack.c.0.s8 %v1538
          %v1540 = vperm.slane %v1532, %v1539
          %v1541 = vrot.slane %v1536, 4
          %v1542 = vsel %vm908, %v1541, %v1524
          %v1543 = vrot.slane %v1524, 4
          %v1544 = vsel %vm908, %v1536, %v1543
          %v1546 = vunpack.c.l.s4 1934713408
          %v1547 = vunpack.c.0.s8 %v1546
          %v1548 = vperm.slane %v1542, %v1547
          %v1550 = vunpack.c.l.s4 1934713408
          %v1551 = vunpack.c.0.s8 %v1550
          %v1552 = vperm.slane %v1544, %v1551
          %v1553 = vrot.slane %v1540, 4
          %v1554 = vsel %vm908, %v1553, %v1528
          %v1555 = vrot.slane %v1528, 4
          %v1556 = vsel %vm908, %v1540, %v1555
          %v1558 = vunpack.c.l.s4 1934713408
          %v1559 = vunpack.c.0.s8 %v1558
          %v1560 = vperm.slane %v1554, %v1559
          %v1562 = vunpack.c.l.s4 1934713408
          %v1563 = vunpack.c.0.s8 %v1562
          %v1564 = vperm.slane %v1556, %v1563
          %v1565 = vrot.slane %v1548, 4
          %v1566 = vsel %vm908, 0.0, %v1565
          %v1567 = vrot.slane %v1552, 4
          %v1568 = vsel %vm908, 0.0, %v1567
          %v1569 = vrot.slane %v1560, 4
          %v1570 = vsel %vm908, 0.0, %v1569
          %v1571 = vrot.slane %v1564, 4
          %v1572 = vsel %vm908, 0.0, %v1571
          %v1573 = vrot.slane %v1388, 4
          %v1574 = vsel %vm908, %v1573, %v820
          %v1575 = vrot.slane %v820, 4
          %v1576 = vsel %vm908, %v1388, %v1575
          %v1578 = vunpack.c.l.s4 1983009808
          %v1579 = vunpack.c.0.s8 %v1578
          %v1580 = vperm.slane %v1574, %v1579
          %v1582 = vunpack.c.l.s4 1983009808
          %v1583 = vunpack.c.0.s8 %v1582
          %v1584 = vperm.slane %v1576, %v1583
          %v1585 = vrot.slane %v1400, 4
          %v1586 = vsel %vm908, %v1585, %v1376
          %v1587 = vrot.slane %v1376, 4
          %v1588 = vsel %vm908, %v1400, %v1587
          %v1590 = vunpack.c.l.s4 1983009808
          %v1591 = vunpack.c.0.s8 %v1590
          %v1592 = vperm.slane %v1586, %v1591
          %v1594 = vunpack.c.l.s4 1983009808
          %v1595 = vunpack.c.0.s8 %v1594
          %v1596 = vperm.slane %v1588, %v1595
          %v1597 = vrot.slane %v1592, 4
          %v1598 = vsel %vm908, %v1597, %v1580
          %v1599 = vrot.slane %v1580, 4
          %v1600 = vsel %vm908, %v1592, %v1599
          %v1602 = vunpack.c.l.s4 1934713408
          %v1603 = vunpack.c.0.s8 %v1602
          %v1604 = vperm.slane %v1598, %v1603
          %v1606 = vunpack.c.l.s4 1934713408
          %v1607 = vunpack.c.0.s8 %v1606
          %v1608 = vperm.slane %v1600, %v1607
          %v1609 = vrot.slane %v1596, 4
          %v1610 = vsel %vm908, %v1609, %v1584
          %v1611 = vrot.slane %v1584, 4
          %v1612 = vsel %vm908, %v1596, %v1611
          %v1614 = vunpack.c.l.s4 1934713408
          %v1615 = vunpack.c.0.s8 %v1614
          %v1616 = vperm.slane %v1610, %v1615
          %v1618 = vunpack.c.l.s4 1934713408
          %v1619 = vunpack.c.0.s8 %v1618
          %v1620 = vperm.slane %v1612, %v1619
          %v1621 = vrot.slane %v1604, 4
          %v1622 = vsel %vm908, 0.0, %v1621
          %v1623 = vrot.slane %v1608, 4
          %v1624 = vsel %vm908, 0.0, %v1623
          %v1625 = vrot.slane %v1616, 4
          %v1626 = vsel %vm908, 0.0, %v1625
          %v1627 = vrot.slane %v1620, 4
          %v1628 = vsel %vm908, 0.0, %v1627
          %v1629 = vsel %vm908, %v1455, %v1436
          %v1631 = vunpack.c.l.s4 1983009808
          %v1632 = vunpack.c.0.s8 %v1631
          %v1633 = vperm.slane %v1629, %v1632
          %v1634 = vrot.slane %v1456, 4
          %v1635 = vsel %vm908, %v1634, %v1454
          %v1637 = vunpack.c.l.s4 1983009808
          %v1638 = vunpack.c.0.s8 %v1637
          %v1639 = vperm.slane %v1635, %v1638
          %v1640 = vsel %vm908, %v1459, %v1448
          %v1642 = vunpack.c.l.s4 1983009808
          %v1643 = vunpack.c.0.s8 %v1642
          %v1644 = vperm.slane %v1640, %v1643
          %v1645 = vrot.slane %v1460, 4
          %v1646 = vsel %vm908, %v1645, %v1458
          %v1648 = vunpack.c.l.s4 1983009808
          %v1649 = vunpack.c.0.s8 %v1648
          %v1650 = vperm.slane %v1646, %v1649
          %v1651 = vrot.slane %v1639, 4
          %v1652 = vsel %vm908, %v1651, %v1633
          %v1653 = vrot.slane %v1633, 4
          %v1654 = vsel %vm908, %v1639, %v1653
          %v1656 = vunpack.c.l.s4 1934713408
          %v1657 = vunpack.c.0.s8 %v1656
          %v1658 = vperm.slane %v1652, %v1657
          %v1660 = vunpack.c.l.s4 1934713408
          %v1661 = vunpack.c.0.s8 %v1660
          %v1662 = vperm.slane %v1654, %v1661
          %v1663 = vrot.slane %v1650, 4
          %v1664 = vsel %vm908, %v1663, %v1644
          %v1665 = vrot.slane %v1644, 4
          %v1666 = vsel %vm908, %v1650, %v1665
          %v1668 = vunpack.c.l.s4 1934713408
          %v1669 = vunpack.c.0.s8 %v1668
          %v1670 = vperm.slane %v1664, %v1669
          %v1672 = vunpack.c.l.s4 1934713408
          %v1673 = vunpack.c.0.s8 %v1672
          %v1674 = vperm.slane %v1666, %v1673
          %v1675 = vrot.slane %v1670, 4
          %v1676 = vsel %vm908, %v1675, %v1658
          %v1677 = vrot.slane %v1658, 4
          %v1678 = vsel %vm908, %v1670, %v1677
          %v1679 = vrot.slane %v1674, 4
          %v1680 = vsel %vm908, %v1679, %v1662
          %v1681 = vrot.slane %v1662, 4
          %v1682 = vsel %vm908, %v1674, %v1681
          %v1683 = vsel %vm908, %v1511, %v1492
          %v1685 = vunpack.c.l.s4 1983009808
          %v1686 = vunpack.c.0.s8 %v1685
          %v1687 = vperm.slane %v1683, %v1686
          %v1688 = vrot.slane %v1512, 4
          %v1689 = vsel %vm908, %v1688, %v1510
          %v1691 = vunpack.c.l.s4 1983009808
          %v1692 = vunpack.c.0.s8 %v1691
          %v1693 = vperm.slane %v1689, %v1692
          %v1694 = vsel %vm908, %v1515, %v1504
          %v1696 = vunpack.c.l.s4 1983009808
          %v1697 = vunpack.c.0.s8 %v1696
          %v1698 = vperm.slane %v1694, %v1697
          %v1699 = vrot.slane %v1516, 4
          %v1700 = vsel %vm908, %v1699, %v1514
          %v1702 = vunpack.c.l.s4 1983009808
          %v1703 = vunpack.c.0.s8 %v1702
          %v1704 = vperm.slane %v1700, %v1703
          %v1705 = vrot.slane %v1693, 4
          %v1706 = vsel %vm908, %v1705, %v1687
          %v1707 = vrot.slane %v1687, 4
          %v1708 = vsel %vm908, %v1693, %v1707
          %v1710 = vunpack.c.l.s4 1934713408
          %v1711 = vunpack.c.0.s8 %v1710
          %v1712 = vperm.slane %v1706, %v1711
          %v1714 = vunpack.c.l.s4 1934713408
          %v1715 = vunpack.c.0.s8 %v1714
          %v1716 = vperm.slane %v1708, %v1715
          %v1717 = vrot.slane %v1704, 4
          %v1718 = vsel %vm908, %v1717, %v1698
          %v1719 = vrot.slane %v1698, 4
          %v1720 = vsel %vm908, %v1704, %v1719
          %v1722 = vunpack.c.l.s4 1934713408
          %v1723 = vunpack.c.0.s8 %v1722
          %v1724 = vperm.slane %v1718, %v1723
          %v1726 = vunpack.c.l.s4 1934713408
          %v1727 = vunpack.c.0.s8 %v1726
          %v1728 = vperm.slane %v1720, %v1727
          %v1729 = vrot.slane %v1724, 4
          %v1730 = vsel %vm908, %v1729, %v1712
          %v1731 = vrot.slane %v1712, 4
          %v1732 = vsel %vm908, %v1724, %v1731
          %v1733 = vrot.slane %v1728, 4
          %v1734 = vsel %vm908, %v1733, %v1716
          %v1735 = vrot.slane %v1716, 4
          %v1736 = vsel %vm908, %v1728, %v1735
          %v1737 = vsel %vm908, %v1567, %v1548
          %v1739 = vunpack.c.l.s4 1983009808
          %v1740 = vunpack.c.0.s8 %v1739
          %v1741 = vperm.slane %v1737, %v1740
          %v1742 = vrot.slane %v1568, 4
          %v1743 = vsel %vm908, %v1742, %v1566
          %v1745 = vunpack.c.l.s4 1983009808
          %v1746 = vunpack.c.0.s8 %v1745
          %v1747 = vperm.slane %v1743, %v1746
          %v1748 = vsel %vm908, %v1571, %v1560
          %v1750 = vunpack.c.l.s4 1983009808
          %v1751 = vunpack.c.0.s8 %v1750
          %v1752 = vperm.slane %v1748, %v1751
          %v1753 = vrot.slane %v1572, 4
          %v1754 = vsel %vm908, %v1753, %v1570
          %v1756 = vunpack.c.l.s4 1983009808
          %v1757 = vunpack.c.0.s8 %v1756
          %v1758 = vperm.slane %v1754, %v1757
          %v1759 = vrot.slane %v1747, 4
          %v1760 = vsel %vm908, %v1759, %v1741
          %v1761 = vrot.slane %v1741, 4
          %v1762 = vsel %vm908, %v1747, %v1761
          %v1764 = vunpack.c.l.s4 1934713408
          %v1765 = vunpack.c.0.s8 %v1764
          %v1766 = vperm.slane %v1760, %v1765
          %v1768 = vunpack.c.l.s4 1934713408
          %v1769 = vunpack.c.0.s8 %v1768
          %v1770 = vperm.slane %v1762, %v1769
          %v1771 = vrot.slane %v1758, 4
          %v1772 = vsel %vm908, %v1771, %v1752
          %v1773 = vrot.slane %v1752, 4
          %v1774 = vsel %vm908, %v1758, %v1773
          %v1776 = vunpack.c.l.s4 1934713408
          %v1777 = vunpack.c.0.s8 %v1776
          %v1778 = vperm.slane %v1772, %v1777
          %v1780 = vunpack.c.l.s4 1934713408
          %v1781 = vunpack.c.0.s8 %v1780
          %v1782 = vperm.slane %v1774, %v1781
          %v1783 = vrot.slane %v1778, 4
          %v1784 = vsel %vm908, %v1783, %v1766
          %v1785 = vrot.slane %v1766, 4
          %v1786 = vsel %vm908, %v1778, %v1785
          %v1787 = vrot.slane %v1782, 4
          %v1788 = vsel %vm908, %v1787, %v1770
          %v1789 = vrot.slane %v1770, 4
          %v1790 = vsel %vm908, %v1782, %v1789
          %v1791 = vsel %vm908, %v1623, %v1604
          %v1793 = vunpack.c.l.s4 1983009808
          %v1794 = vunpack.c.0.s8 %v1793
          %v1795 = vperm.slane %v1791, %v1794
          %v1796 = vrot.slane %v1624, 4
          %v1797 = vsel %vm908, %v1796, %v1622
          %v1799 = vunpack.c.l.s4 1983009808
          %v1800 = vunpack.c.0.s8 %v1799
          %v1801 = vperm.slane %v1797, %v1800
          %v1802 = vsel %vm908, %v1627, %v1616
          %v1804 = vunpack.c.l.s4 1983009808
          %v1805 = vunpack.c.0.s8 %v1804
          %v1806 = vperm.slane %v1802, %v1805
          %v1807 = vrot.slane %v1628, 4
          %v1808 = vsel %vm908, %v1807, %v1626
          %v1810 = vunpack.c.l.s4 1983009808
          %v1811 = vunpack.c.0.s8 %v1810
          %v1812 = vperm.slane %v1808, %v1811
          %v1813 = vrot.slane %v1801, 4
          %v1814 = vsel %vm908, %v1813, %v1795
          %v1815 = vrot.slane %v1795, 4
          %v1816 = vsel %vm908, %v1801, %v1815
          %v1818 = vunpack.c.l.s4 1934713408
          %v1819 = vunpack.c.0.s8 %v1818
          %v1820 = vperm.slane %v1814, %v1819
          %v1822 = vunpack.c.l.s4 1934713408
          %v1823 = vunpack.c.0.s8 %v1822
          %v1824 = vperm.slane %v1816, %v1823
          %v1825 = vrot.slane %v1812, 4
          %v1826 = vsel %vm908, %v1825, %v1806
          %v1827 = vrot.slane %v1806, 4
          %v1828 = vsel %vm908, %v1812, %v1827
          %v1830 = vunpack.c.l.s4 1934713408
          %v1831 = vunpack.c.0.s8 %v1830
          %v1832 = vperm.slane %v1826, %v1831
          %v1834 = vunpack.c.l.s4 1934713408
          %v1835 = vunpack.c.0.s8 %v1834
          %v1836 = vperm.slane %v1828, %v1835
          %v1837 = vrot.slane %v1832, 4
          %v1838 = vsel %vm908, %v1837, %v1820
          %v1839 = vrot.slane %v1820, 4
          %v1840 = vsel %vm908, %v1832, %v1839
          %v1841 = vrot.slane %v1836, 4
          %v1842 = vsel %vm908, %v1841, %v1824
          %v1843 = vrot.slane %v1824, 4
          %v1844 = vsel %vm908, %v1836, %v1843
          %1845 = vst.msk [vmem:[#allocation3] sm:$0xff] %vm1348, %v1676
          %1846 = vst.msk [vmem:[#allocation3 + $0x8] sm:$0xff] %vm1348, %v1730
          %1847 = vst.msk [vmem:[#allocation3 + $0x10] sm:$0xff] %vm1348, %v1784
          %1848 = vst.msk [vmem:[#allocation3 + $0x18] sm:$0xff] %vm1348, %v1838
          %1849 = vst.msk [vmem:[#allocation3 + $0x20] sm:$0xff] %vm1348, %v1678
          %1850 = vst.msk [vmem:[#allocation3 + $0x28] sm:$0xff] %vm1348, %v1732
          %1851 = vst.msk [vmem:[#allocation3 + $0x30] sm:$0xff] %vm1348, %v1786
          %1852 = vst.msk [vmem:[#allocation3 + $0x38] sm:$0xff] %vm1348, %v1840
          %1853 = vst.msk [vmem:[#allocation3 + $0x40] sm:$0xff] %vm1348, %v1680
          %1854 = vst.msk [vmem:[#allocation3 + $0x48] sm:$0xff] %vm1348, %v1734
          %1855 = vst.msk [vmem:[#allocation3 + $0x50] sm:$0xff] %vm1348, %v1788
          %1856 = vst.msk [vmem:[#allocation3 + $0x58] sm:$0xff] %vm1348, %v1842
          %1857 = vst.msk [vmem:[#allocation3 + $0x60] sm:$0xff] %vm1348, %v1682
          %1858 = vst.msk [vmem:[#allocation3 + $0x68] sm:$0xff] %vm1348, %v1736
          %1859 = vst.msk [vmem:[#allocation3 + $0x70] sm:$0xff] %vm1348, %v1790
          %1860 = vst.msk [vmem:[#allocation3 + $0x78] sm:$0xff] %vm1348, %v1844
          %1865 = vrot.lane.b32.xlu0 %v856, 96
          %v1866 = vpop.permute.xlu0 %1865
          %1867 = vrot.lane.b32.xlu0 %v859, 96
          %v1868 = vpop.permute.xlu0 %1867
          %1869 = vrot.lane.b32.xlu0 %v862, 96
          %v1870 = vpop.permute.xlu0 %1869
          %1871 = vrot.lane.b32.xlu0 %v865, 96
          %v1872 = vpop.permute.xlu0 %1871
          %1877 = vrot.lane.b32.xlu0 %v856, 64
          %v1878 = vpop.permute.xlu0 %1877
          %1879 = vrot.lane.b32.xlu0 %v859, 64
          %v1880 = vpop.permute.xlu0 %1879
          %1881 = vrot.lane.b32.xlu0 %v862, 64
          %v1882 = vpop.permute.xlu0 %1881
          %1883 = vrot.lane.b32.xlu0 %v865, 64
          %v1884 = vpop.permute.xlu0 %1883
          %1889 = vrot.lane.b32.xlu0 %v856, 32
          %v1890 = vpop.permute.xlu0 %1889
          %1891 = vrot.lane.b32.xlu0 %v859, 32
          %v1892 = vpop.permute.xlu0 %1891
          %1893 = vrot.lane.b32.xlu0 %v862, 32
          %v1894 = vpop.permute.xlu0 %1893
          %1895 = vrot.lane.b32.xlu0 %v865, 32
          %v1896 = vpop.permute.xlu0 %1895
          %v1901 = vrot.slane %v1878, 4
          %v1902 = vsel %vm908, %v1901, %v856
          %v1903 = vrot.slane %v856, 4
          %v1904 = vsel %vm908, %v1878, %v1903
          %v1906 = vunpack.c.l.s4 1983009808
          %v1907 = vunpack.c.0.s8 %v1906
          %v1908 = vperm.slane %v1902, %v1907
          %v1910 = vunpack.c.l.s4 1983009808
          %v1911 = vunpack.c.0.s8 %v1910
          %v1912 = vperm.slane %v1904, %v1911
          %v1913 = vrot.slane %v1890, 4
          %v1914 = vsel %vm908, %v1913, %v1866
          %v1915 = vrot.slane %v1866, 4
          %v1916 = vsel %vm908, %v1890, %v1915
          %v1918 = vunpack.c.l.s4 1983009808
          %v1919 = vunpack.c.0.s8 %v1918
          %v1920 = vperm.slane %v1914, %v1919
          %v1922 = vunpack.c.l.s4 1983009808
          %v1923 = vunpack.c.0.s8 %v1922
          %v1924 = vperm.slane %v1916, %v1923
          %v1925 = vrot.slane %v1920, 4
          %v1926 = vsel %vm908, %v1925, %v1908
          %v1927 = vrot.slane %v1908, 4
          %v1928 = vsel %vm908, %v1920, %v1927
          %v1930 = vunpack.c.l.s4 1934713408
          %v1931 = vunpack.c.0.s8 %v1930
          %v1932 = vperm.slane %v1926, %v1931
          %v1934 = vunpack.c.l.s4 1934713408
          %v1935 = vunpack.c.0.s8 %v1934
          %v1936 = vperm.slane %v1928, %v1935
          %v1937 = vrot.slane %v1924, 4
          %v1938 = vsel %vm908, %v1937, %v1912
          %v1939 = vrot.slane %v1912, 4
          %v1940 = vsel %vm908, %v1924, %v1939
          %v1942 = vunpack.c.l.s4 1934713408
          %v1943 = vunpack.c.0.s8 %v1942
          %v1944 = vperm.slane %v1938, %v1943
          %v1946 = vunpack.c.l.s4 1934713408
          %v1947 = vunpack.c.0.s8 %v1946
          %v1948 = vperm.slane %v1940, %v1947
          %v1949 = vrot.slane %v1932, 4
          %v1950 = vsel %vm908, 0.0, %v1949
          %v1951 = vrot.slane %v1936, 4
          %v1952 = vsel %vm908, 0.0, %v1951
          %v1953 = vrot.slane %v1944, 4
          %v1954 = vsel %vm908, 0.0, %v1953
          %v1955 = vrot.slane %v1948, 4
          %v1956 = vsel %vm908, 0.0, %v1955
          %v1957 = vrot.slane %v1880, 4
          %v1958 = vsel %vm908, %v1957, %v859
          %v1959 = vrot.slane %v859, 4
          %v1960 = vsel %vm908, %v1880, %v1959
          %v1962 = vunpack.c.l.s4 1983009808
          %v1963 = vunpack.c.0.s8 %v1962
          %v1964 = vperm.slane %v1958, %v1963
          %v1966 = vunpack.c.l.s4 1983009808
          %v1967 = vunpack.c.0.s8 %v1966
          %v1968 = vperm.slane %v1960, %v1967
          %v1969 = vrot.slane %v1892, 4
          %v1970 = vsel %vm908, %v1969, %v1868
          %v1971 = vrot.slane %v1868, 4
          %v1972 = vsel %vm908, %v1892, %v1971
          %v1974 = vunpack.c.l.s4 1983009808
          %v1975 = vunpack.c.0.s8 %v1974
          %v1976 = vperm.slane %v1970, %v1975
          %v1978 = vunpack.c.l.s4 1983009808
          %v1979 = vunpack.c.0.s8 %v1978
          %v1980 = vperm.slane %v1972, %v1979
          %v1981 = vrot.slane %v1976, 4
          %v1982 = vsel %vm908, %v1981, %v1964
          %v1983 = vrot.slane %v1964, 4
          %v1984 = vsel %vm908, %v1976, %v1983
          %v1986 = vunpack.c.l.s4 1934713408
          %v1987 = vunpack.c.0.s8 %v1986
          %v1988 = vperm.slane %v1982, %v1987
          %v1990 = vunpack.c.l.s4 1934713408
          %v1991 = vunpack.c.0.s8 %v1990
          %v1992 = vperm.slane %v1984, %v1991
          %v1993 = vrot.slane %v1980, 4
          %v1994 = vsel %vm908, %v1993, %v1968
          %v1995 = vrot.slane %v1968, 4
          %v1996 = vsel %vm908, %v1980, %v1995
          %v1998 = vunpack.c.l.s4 1934713408
          %v1999 = vunpack.c.0.s8 %v1998
          %v2000 = vperm.slane %v1994, %v1999
          %v2002 = vunpack.c.l.s4 1934713408
          %v2003 = vunpack.c.0.s8 %v2002
          %v2004 = vperm.slane %v1996, %v2003
          %v2005 = vrot.slane %v1988, 4
          %v2006 = vsel %vm908, 0.0, %v2005
          %v2007 = vrot.slane %v1992, 4
          %v2008 = vsel %vm908, 0.0, %v2007
          %v2009 = vrot.slane %v2000, 4
          %v2010 = vsel %vm908, 0.0, %v2009
          %v2011 = vrot.slane %v2004, 4
          %v2012 = vsel %vm908, 0.0, %v2011
          %v2013 = vrot.slane %v1882, 4
          %v2014 = vsel %vm908, %v2013, %v862
          %v2015 = vrot.slane %v862, 4
          %v2016 = vsel %vm908, %v1882, %v2015
          %v2018 = vunpack.c.l.s4 1983009808
          %v2019 = vunpack.c.0.s8 %v2018
          %v2020 = vperm.slane %v2014, %v2019
          %v2022 = vunpack.c.l.s4 1983009808
          %v2023 = vunpack.c.0.s8 %v2022
          %v2024 = vperm.slane %v2016, %v2023
          %v2025 = vrot.slane %v1894, 4
          %v2026 = vsel %vm908, %v2025, %v1870
          %v2027 = vrot.slane %v1870, 4
          %v2028 = vsel %vm908, %v1894, %v2027
          %v2030 = vunpack.c.l.s4 1983009808
          %v2031 = vunpack.c.0.s8 %v2030
          %v2032 = vperm.slane %v2026, %v2031
          %v2034 = vunpack.c.l.s4 1983009808
          %v2035 = vunpack.c.0.s8 %v2034
          %v2036 = vperm.slane %v2028, %v2035
          %v2037 = vrot.slane %v2032, 4
          %v2038 = vsel %vm908, %v2037, %v2020
          %v2039 = vrot.slane %v2020, 4
          %v2040 = vsel %vm908, %v2032, %v2039
          %v2042 = vunpack.c.l.s4 1934713408
          %v2043 = vunpack.c.0.s8 %v2042
          %v2044 = vperm.slane %v2038, %v2043
          %v2046 = vunpack.c.l.s4 1934713408
          %v2047 = vunpack.c.0.s8 %v2046
          %v2048 = vperm.slane %v2040, %v2047
          %v2049 = vrot.slane %v2036, 4
          %v2050 = vsel %vm908, %v2049, %v2024
          %v2051 = vrot.slane %v2024, 4
          %v2052 = vsel %vm908, %v2036, %v2051
          %v2054 = vunpack.c.l.s4 1934713408
          %v2055 = vunpack.c.0.s8 %v2054
          %v2056 = vperm.slane %v2050, %v2055
          %v2058 = vunpack.c.l.s4 1934713408
          %v2059 = vunpack.c.0.s8 %v2058
          %v2060 = vperm.slane %v2052, %v2059
          %v2061 = vrot.slane %v2044, 4
          %v2062 = vsel %vm908, 0.0, %v2061
          %v2063 = vrot.slane %v2048, 4
          %v2064 = vsel %vm908, 0.0, %v2063
          %v2065 = vrot.slane %v2056, 4
          %v2066 = vsel %vm908, 0.0, %v2065
          %v2067 = vrot.slane %v2060, 4
          %v2068 = vsel %vm908, 0.0, %v2067
          %v2069 = vrot.slane %v1884, 4
          %v2070 = vsel %vm908, %v2069, %v865
          %v2071 = vrot.slane %v865, 4
          %v2072 = vsel %vm908, %v1884, %v2071
          %v2074 = vunpack.c.l.s4 1983009808
          %v2075 = vunpack.c.0.s8 %v2074
          %v2076 = vperm.slane %v2070, %v2075
          %v2078 = vunpack.c.l.s4 1983009808
          %v2079 = vunpack.c.0.s8 %v2078
          %v2080 = vperm.slane %v2072, %v2079
          %v2081 = vrot.slane %v1896, 4
          %v2082 = vsel %vm908, %v2081, %v1872
          %v2083 = vrot.slane %v1872, 4
          %v2084 = vsel %vm908, %v1896, %v2083
          %v2086 = vunpack.c.l.s4 1983009808
          %v2087 = vunpack.c.0.s8 %v2086
          %v2088 = vperm.slane %v2082, %v2087
          %v2090 = vunpack.c.l.s4 1983009808
          %v2091 = vunpack.c.0.s8 %v2090
          %v2092 = vperm.slane %v2084, %v2091
          %v2093 = vrot.slane %v2088, 4
          %v2094 = vsel %vm908, %v2093, %v2076
          %v2095 = vrot.slane %v2076, 4
          %v2096 = vsel %vm908, %v2088, %v2095
          %v2098 = vunpack.c.l.s4 1934713408
          %v2099 = vunpack.c.0.s8 %v2098
          %v2100 = vperm.slane %v2094, %v2099
          %v2102 = vunpack.c.l.s4 1934713408
          %v2103 = vunpack.c.0.s8 %v2102
          %v2104 = vperm.slane %v2096, %v2103
          %v2105 = vrot.slane %v2092, 4
          %v2106 = vsel %vm908, %v2105, %v2080
          %v2107 = vrot.slane %v2080, 4
          %v2108 = vsel %vm908, %v2092, %v2107
          %v2110 = vunpack.c.l.s4 1934713408
          %v2111 = vunpack.c.0.s8 %v2110
          %v2112 = vperm.slane %v2106, %v2111
          %v2114 = vunpack.c.l.s4 1934713408
          %v2115 = vunpack.c.0.s8 %v2114
          %v2116 = vperm.slane %v2108, %v2115
          %v2117 = vrot.slane %v2100, 4
          %v2118 = vsel %vm908, 0.0, %v2117
          %v2119 = vrot.slane %v2104, 4
          %v2120 = vsel %vm908, 0.0, %v2119
          %v2121 = vrot.slane %v2112, 4
          %v2122 = vsel %vm908, 0.0, %v2121
          %v2123 = vrot.slane %v2116, 4
          %v2124 = vsel %vm908, 0.0, %v2123
          %v2125 = vsel %vm908, %v1951, %v1932
          %v2127 = vunpack.c.l.s4 1983009808
          %v2128 = vunpack.c.0.s8 %v2127
          %v2129 = vperm.slane %v2125, %v2128
          %v2130 = vrot.slane %v1952, 4
          %v2131 = vsel %vm908, %v2130, %v1950
          %v2133 = vunpack.c.l.s4 1983009808
          %v2134 = vunpack.c.0.s8 %v2133
          %v2135 = vperm.slane %v2131, %v2134
          %v2136 = vsel %vm908, %v1955, %v1944
          %v2138 = vunpack.c.l.s4 1983009808
          %v2139 = vunpack.c.0.s8 %v2138
          %v2140 = vperm.slane %v2136, %v2139
          %v2141 = vrot.slane %v1956, 4
          %v2142 = vsel %vm908, %v2141, %v1954
          %v2144 = vunpack.c.l.s4 1983009808
          %v2145 = vunpack.c.0.s8 %v2144
          %v2146 = vperm.slane %v2142, %v2145
          %v2147 = vrot.slane %v2135, 4
          %v2148 = vsel %vm908, %v2147, %v2129
          %v2149 = vrot.slane %v2129, 4
          %v2150 = vsel %vm908, %v2135, %v2149
          %v2152 = vunpack.c.l.s4 1934713408
          %v2153 = vunpack.c.0.s8 %v2152
          %v2154 = vperm.slane %v2148, %v2153
          %v2156 = vunpack.c.l.s4 1934713408
          %v2157 = vunpack.c.0.s8 %v2156
          %v2158 = vperm.slane %v2150, %v2157
          %v2159 = vrot.slane %v2146, 4
          %v2160 = vsel %vm908, %v2159, %v2140
          %v2161 = vrot.slane %v2140, 4
          %v2162 = vsel %vm908, %v2146, %v2161
          %v2164 = vunpack.c.l.s4 1934713408
          %v2165 = vunpack.c.0.s8 %v2164
          %v2166 = vperm.slane %v2160, %v2165
          %v2168 = vunpack.c.l.s4 1934713408
          %v2169 = vunpack.c.0.s8 %v2168
          %v2170 = vperm.slane %v2162, %v2169
          %v2171 = vrot.slane %v2166, 4
          %v2172 = vsel %vm908, %v2171, %v2154
          %v2173 = vrot.slane %v2154, 4
          %v2174 = vsel %vm908, %v2166, %v2173
          %v2175 = vrot.slane %v2170, 4
          %v2176 = vsel %vm908, %v2175, %v2158
          %v2177 = vrot.slane %v2158, 4
          %v2178 = vsel %vm908, %v2170, %v2177
          %v2179 = vsel %vm908, %v2007, %v1988
          %v2181 = vunpack.c.l.s4 1983009808
          %v2182 = vunpack.c.0.s8 %v2181
          %v2183 = vperm.slane %v2179, %v2182
          %v2184 = vrot.slane %v2008, 4
          %v2185 = vsel %vm908, %v2184, %v2006
          %v2187 = vunpack.c.l.s4 1983009808
          %v2188 = vunpack.c.0.s8 %v2187
          %v2189 = vperm.slane %v2185, %v2188
          %v2190 = vsel %vm908, %v2011, %v2000
          %v2192 = vunpack.c.l.s4 1983009808
          %v2193 = vunpack.c.0.s8 %v2192
          %v2194 = vperm.slane %v2190, %v2193
          %v2195 = vrot.slane %v2012, 4
          %v2196 = vsel %vm908, %v2195, %v2010
          %v2198 = vunpack.c.l.s4 1983009808
          %v2199 = vunpack.c.0.s8 %v2198
          %v2200 = vperm.slane %v2196, %v2199
          %v2201 = vrot.slane %v2189, 4
          %v2202 = vsel %vm908, %v2201, %v2183
          %v2203 = vrot.slane %v2183, 4
          %v2204 = vsel %vm908, %v2189, %v2203
          %v2206 = vunpack.c.l.s4 1934713408
          %v2207 = vunpack.c.0.s8 %v2206
          %v2208 = vperm.slane %v2202, %v2207
          %v2210 = vunpack.c.l.s4 1934713408
          %v2211 = vunpack.c.0.s8 %v2210
          %v2212 = vperm.slane %v2204, %v2211
          %v2213 = vrot.slane %v2200, 4
          %v2214 = vsel %vm908, %v2213, %v2194
          %v2215 = vrot.slane %v2194, 4
          %v2216 = vsel %vm908, %v2200, %v2215
          %v2218 = vunpack.c.l.s4 1934713408
          %v2219 = vunpack.c.0.s8 %v2218
          %v2220 = vperm.slane %v2214, %v2219
          %v2222 = vunpack.c.l.s4 1934713408
          %v2223 = vunpack.c.0.s8 %v2222
          %v2224 = vperm.slane %v2216, %v2223
          %v2225 = vrot.slane %v2220, 4
          %v2226 = vsel %vm908, %v2225, %v2208
          %v2227 = vrot.slane %v2208, 4
          %v2228 = vsel %vm908, %v2220, %v2227
          %v2229 = vrot.slane %v2224, 4
          %v2230 = vsel %vm908, %v2229, %v2212
          %v2231 = vrot.slane %v2212, 4
          %v2232 = vsel %vm908, %v2224, %v2231
          %v2233 = vsel %vm908, %v2063, %v2044
          %v2235 = vunpack.c.l.s4 1983009808
          %v2236 = vunpack.c.0.s8 %v2235
          %v2237 = vperm.slane %v2233, %v2236
          %v2238 = vrot.slane %v2064, 4
          %v2239 = vsel %vm908, %v2238, %v2062
          %v2241 = vunpack.c.l.s4 1983009808
          %v2242 = vunpack.c.0.s8 %v2241
          %v2243 = vperm.slane %v2239, %v2242
          %v2244 = vsel %vm908, %v2067, %v2056
          %v2246 = vunpack.c.l.s4 1983009808
          %v2247 = vunpack.c.0.s8 %v2246
          %v2248 = vperm.slane %v2244, %v2247
          %v2249 = vrot.slane %v2068, 4
          %v2250 = vsel %vm908, %v2249, %v2066
          %v2252 = vunpack.c.l.s4 1983009808
          %v2253 = vunpack.c.0.s8 %v2252
          %v2254 = vperm.slane %v2250, %v2253
          %v2255 = vrot.slane %v2243, 4
          %v2256 = vsel %vm908, %v2255, %v2237
          %v2257 = vrot.slane %v2237, 4
          %v2258 = vsel %vm908, %v2243, %v2257
          %v2260 = vunpack.c.l.s4 1934713408
          %v2261 = vunpack.c.0.s8 %v2260
          %v2262 = vperm.slane %v2256, %v2261
          %v2264 = vunpack.c.l.s4 1934713408
          %v2265 = vunpack.c.0.s8 %v2264
          %v2266 = vperm.slane %v2258, %v2265
          %v2267 = vrot.slane %v2254, 4
          %v2268 = vsel %vm908, %v2267, %v2248
          %v2269 = vrot.slane %v2248, 4
          %v2270 = vsel %vm908, %v2254, %v2269
          %v2272 = vunpack.c.l.s4 1934713408
          %v2273 = vunpack.c.0.s8 %v2272
          %v2274 = vperm.slane %v2268, %v2273
          %v2276 = vunpack.c.l.s4 1934713408
          %v2277 = vunpack.c.0.s8 %v2276
          %v2278 = vperm.slane %v2270, %v2277
          %v2279 = vrot.slane %v2274, 4
          %v2280 = vsel %vm908, %v2279, %v2262
          %v2281 = vrot.slane %v2262, 4
          %v2282 = vsel %vm908, %v2274, %v2281
          %v2283 = vrot.slane %v2278, 4
          %v2284 = vsel %vm908, %v2283, %v2266
          %v2285 = vrot.slane %v2266, 4
          %v2286 = vsel %vm908, %v2278, %v2285
          %v2287 = vsel %vm908, %v2119, %v2100
          %v2289 = vunpack.c.l.s4 1983009808
          %v2290 = vunpack.c.0.s8 %v2289
          %v2291 = vperm.slane %v2287, %v2290
          %v2292 = vrot.slane %v2120, 4
          %v2293 = vsel %vm908, %v2292, %v2118
          %v2295 = vunpack.c.l.s4 1983009808
          %v2296 = vunpack.c.0.s8 %v2295
          %v2297 = vperm.slane %v2293, %v2296
          %v2298 = vsel %vm908, %v2123, %v2112
          %v2300 = vunpack.c.l.s4 1983009808
          %v2301 = vunpack.c.0.s8 %v2300
          %v2302 = vperm.slane %v2298, %v2301
          %v2303 = vrot.slane %v2124, 4
          %v2304 = vsel %vm908, %v2303, %v2122
          %v2306 = vunpack.c.l.s4 1983009808
          %v2307 = vunpack.c.0.s8 %v2306
          %v2308 = vperm.slane %v2304, %v2307
          %v2309 = vrot.slane %v2297, 4
          %v2310 = vsel %vm908, %v2309, %v2291
          %v2311 = vrot.slane %v2291, 4
          %v2312 = vsel %vm908, %v2297, %v2311
          %v2314 = vunpack.c.l.s4 1934713408
          %v2315 = vunpack.c.0.s8 %v2314
          %v2316 = vperm.slane %v2310, %v2315
          %v2318 = vunpack.c.l.s4 1934713408
          %v2319 = vunpack.c.0.s8 %v2318
          %v2320 = vperm.slane %v2312, %v2319
          %v2321 = vrot.slane %v2308, 4
          %v2322 = vsel %vm908, %v2321, %v2302
          %v2323 = vrot.slane %v2302, 4
          %v2324 = vsel %vm908, %v2308, %v2323
          %v2326 = vunpack.c.l.s4 1934713408
          %v2327 = vunpack.c.0.s8 %v2326
          %v2328 = vperm.slane %v2322, %v2327
          %v2330 = vunpack.c.l.s4 1934713408
          %v2331 = vunpack.c.0.s8 %v2330
          %v2332 = vperm.slane %v2324, %v2331
          %v2333 = vrot.slane %v2328, 4
          %v2334 = vsel %vm908, %v2333, %v2316
          %v2335 = vrot.slane %v2316, 4
          %v2336 = vsel %vm908, %v2328, %v2335
          %v2337 = vrot.slane %v2332, 4
          %v2338 = vsel %vm908, %v2337, %v2320
          %v2339 = vrot.slane %v2320, 4
          %v2340 = vsel %vm908, %v2332, %v2339
          %2341 = vst.msk [vmem:[#allocation4] sm:$0xff] %vm1348, %v2172
          %2342 = vst.msk [vmem:[#allocation4 + $0x8] sm:$0xff] %vm1348, %v2226
          %2343 = vst.msk [vmem:[#allocation4 + $0x10] sm:$0xff] %vm1348, %v2280
          %2344 = vst.msk [vmem:[#allocation4 + $0x18] sm:$0xff] %vm1348, %v2334
          %2345 = vst.msk [vmem:[#allocation4 + $0x20] sm:$0xff] %vm1348, %v2174
          %2346 = vst.msk [vmem:[#allocation4 + $0x28] sm:$0xff] %vm1348, %v2228
          %2347 = vst.msk [vmem:[#allocation4 + $0x30] sm:$0xff] %vm1348, %v2282
          %2348 = vst.msk [vmem:[#allocation4 + $0x38] sm:$0xff] %vm1348, %v2336
          %2349 = vst.msk [vmem:[#allocation4 + $0x40] sm:$0xff] %vm1348, %v2176
          %2350 = vst.msk [vmem:[#allocation4 + $0x48] sm:$0xff] %vm1348, %v2230
          %2351 = vst.msk [vmem:[#allocation4 + $0x50] sm:$0xff] %vm1348, %v2284
          %2352 = vst.msk [vmem:[#allocation4 + $0x58] sm:$0xff] %vm1348, %v2338
          %2353 = vst.msk [vmem:[#allocation4 + $0x60] sm:$0xff] %vm1348, %v2178
          %2354 = vst.msk [vmem:[#allocation4 + $0x68] sm:$0xff] %vm1348, %v2232
          %2355 = vst.msk [vmem:[#allocation4 + $0x70] sm:$0xff] %vm1348, %v2286
          %2356 = vst.msk [vmem:[#allocation4 + $0x78] sm:$0xff] %vm1348, %v2340
        $region112: #{tpu_custom_call.1} parent=75 // pred_fallthru
          _
        %vm2357 = vcmask 7168
        %2358 = vst.msk [vmem:[#allocation5] sm:$0xff] %vm2357, -inf
        %2359 = vst.msk [vmem:[#allocation5 + $0x8] sm:$0xff] %vm2357, -inf
        %2360 = vst.msk [vmem:[#allocation5 + $0x10] sm:$0xff] %vm2357, -inf
        %2361 = vst.msk [vmem:[#allocation5 + $0x18] sm:$0xff] %vm2357, -inf
        %2362 = vst.msk [vmem:[#allocation6] sm:$0xff] %vm2357, 0.0
        %2363 = vst.msk [vmem:[#allocation6 + $0x8] sm:$0xff] %vm2357, 0.0
        %2364 = vst.msk [vmem:[#allocation6 + $0x10] sm:$0xff] %vm2357, 0.0
        %2365 = vst.msk [vmem:[#allocation6 + $0x18] sm:$0xff] %vm2357, 0.0
        %vm2366 = vcmask 261120
        %2367 = vst.msk [vmem:[#allocation7] sm:$0xff] %vm2366, 0.0
        %2368 = vst.msk [vmem:[#allocation7 + $0x8] sm:$0xff] %vm2366, 0.0
        %2369 = vst.msk [vmem:[#allocation7 + $0x10] sm:$0xff] %vm2366, 0.0
        %2370 = vst.msk [vmem:[#allocation7 + $0x18] sm:$0xff] %vm2366, 0.0
        %s2371 = scalar_lea.vmem [#allocation2], %s616
        %v2372 = vld [vmem:[%s2371] sm:$0xff]
        %v2373 = vld [vmem:[%s2371 + $0x20] sm:$0xff]
        %v2374 = vld [vmem:[%s2371 + $0x40] sm:$0xff]
        %v2375 = vld [vmem:[%s2371 + $0x60] sm:$0xff]
        %v2376 = vlaneseq
        %v2377 = vshrl.u32 %v2376, 7
        %v2378 = vstv %s616
        %v2379 = vadd.s32 %v2378, %v2377
        %v2380 = vlaneseq
        %v2381 = vand.u32 %v2380, 127
        %s2382 = sadd.s32 %s616, 15
        %p2383 = scmp.lt.s32.totalorder %s2382, 0
        %s2384 = ssub.s32 0, %s2382
        %s2385 = scalar_select %p2383, %s2384, %s2382
        %s2386 = sshrl.u32 %s2385, 3
        %s2387 = ssub.s32 0, %s2386
        %s2388 = scalar_select %p2383, %s2387, %s2386
        // While loop
        $region113: #{tpu_custom_call.1} parent=75 // loop_pre_header
          _
        $region114: #{tpu_custom_call.1} parent=75 // loop_header
          %s2390 = sphi 0, %s2392
          %p2391 = scmp.ge.s32.totalorder %s2390, %s2388
        $region115: #{tpu_custom_call.1} parent=75 // loop_header_branch
          %2394 = sbr.rel (%p2391) target = $region119
        $region116: #{tpu_custom_call.1} parent=75 // loop_body
          %s2395 = smul.u32 %s2390, 8
          %s2396 = scalar_lea.vmem [#allocation3], %s2395
          %v2397 = vld [vmem:[%s2396] sm:$0xff]
          %v2398 = vld [vmem:[%s2396 + $0x20] sm:$0xff]
          %v2399 = vld [vmem:[%s2396 + $0x40] sm:$0xff]
          %v2400 = vld [vmem:[%s2396 + $0x60] sm:$0xff]
          %s2401 = scalar_lea.vmem [#allocation4], %s2395
          %v2402 = vld [vmem:[%s2401] sm:$0xff]
          %v2403 = vld [vmem:[%s2401 + $0x20] sm:$0xff]
          %v2404 = vld [vmem:[%s2401 + $0x40] sm:$0xff]
          %v2405 = vld [vmem:[%s2401 + $0x60] sm:$0xff]
          %v2407 = vsel %vm2366, %v2372, 0
          %v2410 = vsel %vm2366, %v2397, 0
          %2412 = vmatpush.xpose.msra.mxu0 0.0
          %2413 = vmatpush.xpose.msra.mxu0 0.0
          %2414 = vmatpush.xpose.msra.mxu0 0.0
          %2415 = vmatpush.xpose.msra.mxu0 0.0
          %2416 = vmatpush.xpose.msra.mxu0 0.0
          %2417 = vmatpush.xpose.msra.mxu0 0.0
          %2418 = vmatpush.xpose.msra.mxu0 0.0
          %2419 = vmatpush.xpose.msra.mxu0 0.0
          %2420 = vmatpush.xpose.msra.mxu0 0.0
          %2421 = vmatpush.xpose.msra.mxu0 0.0
          %2422 = vmatpush.xpose.msra.mxu0 0.0
          %2423 = vmatpush.xpose.msra.mxu0 0.0
          %2424 = vmatpush.xpose.msra.mxu0 0.0
          %2425 = vmatpush.xpose.msra.mxu0 0.0
          %2426 = vmatpush.xpose.msra.mxu0 0.0
          %2427 = vmatpush.xpose.msra.mxu0 %v2410
          %2428 = vmatmul.f32.gmra.mxu0 %v2407
          %v2429 = vpop.f32.mrf.mxu0
          %v2430 = vadd.f32 0.0, %v2429
          %2431 = vdwg.mxu0
          %v2433 = vsel %vm2366, %v2373, 0
          %v2436 = vsel %vm2366, %v2398, 0
          %2438 = vmatpush.xpose.msra.mxu0 0.0
          %2439 = vmatpush.xpose.msra.mxu0 0.0
          %2440 = vmatpush.xpose.msra.mxu0 0.0
          %2441 = vmatpush.xpose.msra.mxu0 0.0
          %2442 = vmatpush.xpose.msra.mxu0 0.0
          %2443 = vmatpush.xpose.msra.mxu0 0.0
          %2444 = vmatpush.xpose.msra.mxu0 0.0
          %2445 = vmatpush.xpose.msra.mxu0 0.0
          %2446 = vmatpush.xpose.msra.mxu0 0.0
          %2447 = vmatpush.xpose.msra.mxu0 0.0
          %2448 = vmatpush.xpose.msra.mxu0 0.0
          %2449 = vmatpush.xpose.msra.mxu0 0.0
          %2450 = vmatpush.xpose.msra.mxu0 0.0
          %2451 = vmatpush.xpose.msra.mxu0 0.0
          %2452 = vmatpush.xpose.msra.mxu0 0.0
          %2453 = vmatpush.xpose.msra.mxu0 %v2436
          %2454 = vmatmul.f32.gmra.mxu0 %v2433
          %v2455 = vpop.f32.mrf.mxu0
          %v2456 = vadd.f32 0.0, %v2455
          %2457 = vdwg.mxu0
          %v2459 = vsel %vm2366, %v2374, 0
          %v2462 = vsel %vm2366, %v2399, 0
          %2464 = vmatpush.xpose.msra.mxu0 0.0
          %2465 = vmatpush.xpose.msra.mxu0 0.0
          %2466 = vmatpush.xpose.msra.mxu0 0.0
          %2467 = vmatpush.xpose.msra.mxu0 0.0
          %2468 = vmatpush.xpose.msra.mxu0 0.0
          %2469 = vmatpush.xpose.msra.mxu0 0.0
          %2470 = vmatpush.xpose.msra.mxu0 0.0
          %2471 = vmatpush.xpose.msra.mxu0 0.0
          %2472 = vmatpush.xpose.msra.mxu0 0.0
          %2473 = vmatpush.xpose.msra.mxu0 0.0
          %2474 = vmatpush.xpose.msra.mxu0 0.0
          %2475 = vmatpush.xpose.msra.mxu0 0.0
          %2476 = vmatpush.xpose.msra.mxu0 0.0
          %2477 = vmatpush.xpose.msra.mxu0 0.0
          %2478 = vmatpush.xpose.msra.mxu0 0.0
          %2479 = vmatpush.xpose.msra.mxu0 %v2462
          %2480 = vmatmul.f32.gmra.mxu0 %v2459
          %v2481 = vpop.f32.mrf.mxu0
          %v2482 = vadd.f32 0.0, %v2481
          %2483 = vdwg.mxu0
          %v2485 = vsel %vm2366, %v2375, 0
          %v2488 = vsel %vm2366, %v2400, 0
          %2490 = vmatpush.xpose.msra.mxu0 0.0
          %2491 = vmatpush.xpose.msra.mxu0 0.0
          %2492 = vmatpush.xpose.msra.mxu0 0.0
          %2493 = vmatpush.xpose.msra.mxu0 0.0
          %2494 = vmatpush.xpose.msra.mxu0 0.0
          %2495 = vmatpush.xpose.msra.mxu0 0.0
          %2496 = vmatpush.xpose.msra.mxu0 0.0
          %2497 = vmatpush.xpose.msra.mxu0 0.0
          %2498 = vmatpush.xpose.msra.mxu0 0.0
          %2499 = vmatpush.xpose.msra.mxu0 0.0
          %2500 = vmatpush.xpose.msra.mxu0 0.0
          %2501 = vmatpush.xpose.msra.mxu0 0.0
          %2502 = vmatpush.xpose.msra.mxu0 0.0
          %2503 = vmatpush.xpose.msra.mxu0 0.0
          %2504 = vmatpush.xpose.msra.mxu0 0.0
          %2505 = vmatpush.xpose.msra.mxu0 %v2488
          %2506 = vmatmul.f32.gmra.mxu0 %v2485
          %v2507 = vpop.f32.mrf.mxu0
          %v2508 = vadd.f32 0.0, %v2507
          %2509 = vdwg.mxu0
          %v2510 = vstv %s2395
          %v2511 = vadd.s32 %v2510, %v2381
          %vm2512 = vcmp.ge.s32.totalorder %v2379, %v2511
          %v2513 = vsel %vm2512, 1, 0
          %vm2514 = vcmp.eq.s32.totalorder %v2513, 1
          %v2515 = vsel %vm2514, %v2430, -inf
          %v2516 = vsel %vm2514, %v2456, -inf
          %v2517 = vsel %vm2514, %v2482, -inf
          %v2518 = vsel %vm2514, %v2508, -inf
          %v2519 = vld [vmem:[#allocation5] sm:$0xff]
          %v2520 = vld [vmem:[#allocation5 + $0x8] sm:$0xff]
          %v2521 = vld [vmem:[#allocation5 + $0x10] sm:$0xff]
          %v2522 = vld [vmem:[#allocation5 + $0x18] sm:$0xff]
          %vm2523 = vcmask 64512
          %v2524 = vsel %vm2523, %v2515, -inf
          %2525 = vmax.xlane.f32.xlu0 %v2524
          %v2526 = vpop.xlane.xlu0 %2525
          %v2527 = vsel %vm2523, %v2516, -inf
          %2528 = vmax.xlane.f32.xlu0 %v2527
          %v2529 = vpop.xlane.xlu0 %2528
          %v2530 = vsel %vm2523, %v2517, -inf
          %2531 = vmax.xlane.f32.xlu0 %v2530
          %v2532 = vpop.xlane.xlu0 %2531
          %v2533 = vsel %vm2523, %v2518, -inf
          %2534 = vmax.xlane.f32.xlu0 %v2533
          %v2535 = vpop.xlane.xlu0 %2534
          %v2536 = vmax.f32 %v2519, %v2526
          %v2537 = vmax.f32 %v2520, %v2529
          %v2538 = vmax.f32 %v2521, %v2532
          %v2539 = vmax.f32 %v2522, %v2535
          %v2540 = vsub.f32 %v2519, %v2536
          %v2541 = vsub.f32 %v2520, %v2537
          %v2542 = vsub.f32 %v2521, %v2538
          %v2543 = vsub.f32 %v2522, %v2539
          %v2544 = vmul.f32 %v2540, 1.442695
          %v2545 = vpow.pop %v2544
          %v2546 = vmul.f32 %v2541, 1.442695
          %v2547 = vpow.pop %v2546
          %v2548 = vmul.f32 %v2542, 1.442695
          %v2549 = vpow.pop %v2548
          %v2550 = vmul.f32 %v2543, 1.442695
          %v2551 = vpow.pop %v2550
          %2553 = vset.pattern.permute.xlu0 0
          %2554 = vperm.xlu0 %2553, %v2536
          %v2555 = vpop.permute.xlu0 %2554
          %2558 = vset.pattern.permute.xlu0 0
          %2559 = vperm.xlu0 %2558, %v2537
          %v2560 = vpop.permute.xlu0 %2559
          %2563 = vset.pattern.permute.xlu0 0
          %2564 = vperm.xlu0 %2563, %v2538
          %v2565 = vpop.permute.xlu0 %2564
          %2568 = vset.pattern.permute.xlu0 0
          %2569 = vperm.xlu0 %2568, %v2539
          %v2570 = vpop.permute.xlu0 %2569
          %v2572 = vsub.f32 %v2515, %v2555
          %v2573 = vsub.f32 %v2516, %v2560
          %v2574 = vsub.f32 %v2517, %v2565
          %v2575 = vsub.f32 %v2518, %v2570
          %v2576 = vmul.f32 %v2572, 1.442695
          %v2577 = vpow.pop %v2576
          %v2578 = vmul.f32 %v2573, 1.442695
          %v2579 = vpow.pop %v2578
          %v2580 = vmul.f32 %v2574, 1.442695
          %v2581 = vpow.pop %v2580
          %v2582 = vmul.f32 %v2575, 1.442695
          %v2583 = vpow.pop %v2582
          %v2584 = vld [vmem:[#allocation6] sm:$0xff]
          %v2585 = vld [vmem:[#allocation6 + $0x8] sm:$0xff]
          %v2586 = vld [vmem:[#allocation6 + $0x10] sm:$0xff]
          %v2587 = vld [vmem:[#allocation6 + $0x18] sm:$0xff]
          %v2588 = vmul.f32 %v2545, %v2584
          %v2589 = vmul.f32 %v2547, %v2585
          %v2590 = vmul.f32 %v2549, %v2586
          %v2591 = vmul.f32 %v2551, %v2587
          %v2592 = vsel %vm2523, %v2577, 0.0
          %2593 = vadd.xlane.f32.xlu0 %v2592
          %v2594 = vpop.xlane.xlu0 %2593
          %v2595 = vsel %vm2523, %v2579, 0.0
          %2596 = vadd.xlane.f32.xlu0 %v2595
          %v2597 = vpop.xlane.xlu0 %2596
          %v2598 = vsel %vm2523, %v2581, 0.0
          %2599 = vadd.xlane.f32.xlu0 %v2598
          %v2600 = vpop.xlane.xlu0 %2599
          %v2601 = vsel %vm2523, %v2583, 0.0
          %2602 = vadd.xlane.f32.xlu0 %v2601
          %v2603 = vpop.xlane.xlu0 %2602
          %v2604 = vadd.f32 %v2588, %v2594
          %v2605 = vadd.f32 %v2589, %v2597
          %v2606 = vadd.f32 %v2590, %v2600
          %v2607 = vadd.f32 %v2591, %v2603
          %2608 = vst.msk [vmem:[#allocation6] sm:$0xff] %vm2357, %v2604
          %2609 = vst.msk [vmem:[#allocation6 + $0x8] sm:$0xff] %vm2357, %v2605
          %2610 = vst.msk [vmem:[#allocation6 + $0x10] sm:$0xff] %vm2357, %v2606
          %2611 = vst.msk [vmem:[#allocation6 + $0x18] sm:$0xff] %vm2357, %v2607
          %v2612 = vld [vmem:[#allocation7] sm:$0xff]
          %v2613 = vld [vmem:[#allocation7 + $0x8] sm:$0xff]
          %v2614 = vld [vmem:[#allocation7 + $0x10] sm:$0xff]
          %v2615 = vld [vmem:[#allocation7 + $0x18] sm:$0xff]
          %2617 = vset.pattern.permute.xlu0 0
          %2618 = vperm.xlu0 %2617, %v2545
          %v2619 = vpop.permute.xlu0 %2618
          %2622 = vset.pattern.permute.xlu0 0
          %2623 = vperm.xlu0 %2622, %v2547
          %v2624 = vpop.permute.xlu0 %2623
          %2627 = vset.pattern.permute.xlu0 0
          %2628 = vperm.xlu0 %2627, %v2549
          %v2629 = vpop.permute.xlu0 %2628
          %2632 = vset.pattern.permute.xlu0 0
          %2633 = vperm.xlu0 %2632, %v2551
          %v2634 = vpop.permute.xlu0 %2633
          %v2636 = vmul.f32 %v2619, %v2612
          %v2637 = vmul.f32 %v2624, %v2613
          %v2638 = vmul.f32 %v2629, %v2614
          %v2639 = vmul.f32 %v2634, %v2615
          %v2641 = vsel %vm2523, %v2577, 0
          %2643 = vmatpush.msra.mxu0 0.0
          %2644 = vmatpush.msra.mxu0 0.0
          %2645 = vmatpush.msra.mxu0 0.0
          %2646 = vmatpush.msra.mxu0 0.0
          %2647 = vmatpush.msra.mxu0 0.0
          %2648 = vmatpush.msra.mxu0 0.0
          %2649 = vmatpush.msra.mxu0 0.0
          %2650 = vmatpush.msra.mxu0 0.0
          %2651 = vmatpush.msra.mxu0 0.0
          %2652 = vmatpush.msra.mxu0 0.0
          %2653 = vmatpush.msra.mxu0 0.0
          %2654 = vmatpush.msra.mxu0 0.0
          %2655 = vmatpush.msra.mxu0 0.0
          %2656 = vmatpush.msra.mxu0 0.0
          %2657 = vmatpush.msra.mxu0 0.0
          %2658 = vmatpush.msra.mxu0 %v2402
          %2659 = vmatmul.f32.gmra.mxu0 %v2641
          %v2660 = vpop.f32.mrf.mxu0
          %v2661 = vadd.f32 0.0, %v2660
          %2662 = vdwg.mxu0
          %v2664 = vsel %vm2523, %v2579, 0
          %2666 = vmatpush.msra.mxu0 0.0
          %2667 = vmatpush.msra.mxu0 0.0
          %2668 = vmatpush.msra.mxu0 0.0
          %2669 = vmatpush.msra.mxu0 0.0
          %2670 = vmatpush.msra.mxu0 0.0
          %2671 = vmatpush.msra.mxu0 0.0
          %2672 = vmatpush.msra.mxu0 0.0
          %2673 = vmatpush.msra.mxu0 0.0
          %2674 = vmatpush.msra.mxu0 0.0
          %2675 = vmatpush.msra.mxu0 0.0
          %2676 = vmatpush.msra.mxu0 0.0
          %2677 = vmatpush.msra.mxu0 0.0
          %2678 = vmatpush.msra.mxu0 0.0
          %2679 = vmatpush.msra.mxu0 0.0
          %2680 = vmatpush.msra.mxu0 0.0
          %2681 = vmatpush.msra.mxu0 %v2403
          %2682 = vmatmul.f32.gmra.mxu0 %v2664
          %v2683 = vpop.f32.mrf.mxu0
          %v2684 = vadd.f32 0.0, %v2683
          %2685 = vdwg.mxu0
          %v2687 = vsel %vm2523, %v2581, 0
          %2689 = vmatpush.msra.mxu0 0.0
          %2690 = vmatpush.msra.mxu0 0.0
          %2691 = vmatpush.msra.mxu0 0.0
          %2692 = vmatpush.msra.mxu0 0.0
          %2693 = vmatpush.msra.mxu0 0.0
          %2694 = vmatpush.msra.mxu0 0.0
          %2695 = vmatpush.msra.mxu0 0.0
          %2696 = vmatpush.msra.mxu0 0.0
          %2697 = vmatpush.msra.mxu0 0.0
          %2698 = vmatpush.msra.mxu0 0.0
          %2699 = vmatpush.msra.mxu0 0.0
          %2700 = vmatpush.msra.mxu0 0.0
          %2701 = vmatpush.msra.mxu0 0.0
          %2702 = vmatpush.msra.mxu0 0.0
          %2703 = vmatpush.msra.mxu0 0.0
          %2704 = vmatpush.msra.mxu0 %v2404
          %2705 = vmatmul.f32.gmra.mxu0 %v2687
          %v2706 = vpop.f32.mrf.mxu0
          %v2707 = vadd.f32 0.0, %v2706
          %2708 = vdwg.mxu0
          %v2710 = vsel %vm2523, %v2583, 0
          %2712 = vmatpush.msra.mxu0 0.0
          %2713 = vmatpush.msra.mxu0 0.0
          %2714 = vmatpush.msra.mxu0 0.0
          %2715 = vmatpush.msra.mxu0 0.0
          %2716 = vmatpush.msra.mxu0 0.0
          %2717 = vmatpush.msra.mxu0 0.0
          %2718 = vmatpush.msra.mxu0 0.0
          %2719 = vmatpush.msra.mxu0 0.0
          %2720 = vmatpush.msra.mxu0 0.0
          %2721 = vmatpush.msra.mxu0 0.0
          %2722 = vmatpush.msra.mxu0 0.0
          %2723 = vmatpush.msra.mxu0 0.0
          %2724 = vmatpush.msra.mxu0 0.0
          %2725 = vmatpush.msra.mxu0 0.0
          %2726 = vmatpush.msra.mxu0 0.0
          %2727 = vmatpush.msra.mxu0 %v2405
          %2728 = vmatmul.f32.gmra.mxu0 %v2710
          %v2729 = vpop.f32.mrf.mxu0
          %v2730 = vadd.f32 0.0, %v2729
          %2731 = vdwg.mxu0
          %v2732 = vadd.f32 %v2636, %v2661
          %v2733 = vadd.f32 %v2637, %v2684
          %v2734 = vadd.f32 %v2638, %v2707
          %v2735 = vadd.f32 %v2639, %v2730
          %2736 = vst.msk [vmem:[#allocation7] sm:$0xff] %vm2366, %v2732
          %2737 = vst.msk [vmem:[#allocation7 + $0x8] sm:$0xff] %vm2366, %v2733
          %2738 = vst.msk [vmem:[#allocation7 + $0x10] sm:$0xff] %vm2366, %v2734
          %2739 = vst.msk [vmem:[#allocation7 + $0x18] sm:$0xff] %vm2366, %v2735
          %2740 = vst.msk [vmem:[#allocation5] sm:$0xff] %vm2357, %v2536
          %2741 = vst.msk [vmem:[#allocation5 + $0x8] sm:$0xff] %vm2357, %v2537
          %2742 = vst.msk [vmem:[#allocation5 + $0x10] sm:$0xff] %vm2357, %v2538
          %2743 = vst.msk [vmem:[#allocation5 + $0x18] sm:$0xff] %vm2357, %v2539
        $region117: #{tpu_custom_call.1} parent=75 // loop_footer
          %s2392 = sadd.s32 %s2390, 1
        $region118: #{tpu_custom_call.1} parent=75 // loop_footer_branch
          %2389 = sbr.rel target = $region114
        $region119: #{tpu_custom_call.1} parent=75 // loop_exit
          _
        %v2744 = vld [vmem:[#allocation7] sm:$0xff]
        %v2745 = vld [vmem:[#allocation7 + $0x8] sm:$0xff]
        %v2746 = vld [vmem:[#allocation7 + $0x10] sm:$0xff]
        %v2747 = vld [vmem:[#allocation7 + $0x18] sm:$0xff]
        %v2748 = vld [vmem:[#allocation6] sm:$0xff]
        %v2749 = vld [vmem:[#allocation6 + $0x8] sm:$0xff]
        %v2750 = vld [vmem:[#allocation6 + $0x10] sm:$0xff]
        %v2751 = vld [vmem:[#allocation6 + $0x18] sm:$0xff]
        %2753 = vset.pattern.permute.xlu0 0
        %2754 = vperm.xlu0 %2753, %v2748
        %v2755 = vpop.permute.xlu0 %2754
        %2758 = vset.pattern.permute.xlu0 0
        %2759 = vperm.xlu0 %2758, %v2749
        %v2760 = vpop.permute.xlu0 %2759
        %2763 = vset.pattern.permute.xlu0 0
        %2764 = vperm.xlu0 %2763, %v2750
        %v2765 = vpop.permute.xlu0 %2764
        %2768 = vset.pattern.permute.xlu0 0
        %2769 = vperm.xlu0 %2768, %v2751
        %v2770 = vpop.permute.xlu0 %2769
        %v2772 = vrcp.pop %v2755
        %v2773 = vmul.f32 %v2755, %v2772
        %v2774 = vsub.f32 1.0, %v2773
        %v2775 = vmul.f32 %v2772, %v2774
        %v2776 = vadd.f32 %v2772, %v2775
        %vm2777 = vweird.f32 %v2755
        %vm2778 = vweird.f32 %v2772
        %vm2779 = vmor %vm2777, %vm2778
        %v2780 = vsel %vm2779, %v2772, %v2776
        %v2781 = vand.u32 2147483647, %v2755
        %vm2782 = vcmp.eq.f32.partialorder %v2781, 8.507059e+37
        %v2783 = vand.u32 %v2755, 2147483648
        %v2784 = vor.u32 1.1754944e-38, %v2783
        %v2785 = vsel %vm2782, %v2784, %v2780
        %v2786 = vmul.f32 %v2744, %v2785
        %v2787 = vrcp.pop %v2760
        %v2788 = vmul.f32 %v2760, %v2787
        %v2789 = vsub.f32 1.0, %v2788
        %v2790 = vmul.f32 %v2787, %v2789
        %v2791 = vadd.f32 %v2787, %v2790
        %vm2792 = vweird.f32 %v2760
        %vm2793 = vweird.f32 %v2787
        %vm2794 = vmor %vm2792, %vm2793
        %v2795 = vsel %vm2794, %v2787, %v2791
        %v2796 = vand.u32 2147483647, %v2760
        %vm2797 = vcmp.eq.f32.partialorder %v2796, 8.507059e+37
        %v2798 = vand.u32 %v2760, 2147483648
        %v2799 = vor.u32 1.1754944e-38, %v2798
        %v2800 = vsel %vm2797, %v2799, %v2795
        %v2801 = vmul.f32 %v2745, %v2800
        %v2802 = vrcp.pop %v2765
        %v2803 = vmul.f32 %v2765, %v2802
        %v2804 = vsub.f32 1.0, %v2803
        %v2805 = vmul.f32 %v2802, %v2804
        %v2806 = vadd.f32 %v2802, %v2805
        %vm2807 = vweird.f32 %v2765
        %vm2808 = vweird.f32 %v2802
        %vm2809 = vmor %vm2807, %vm2808
        %v2810 = vsel %vm2809, %v2802, %v2806
        %v2811 = vand.u32 2147483647, %v2765
        %vm2812 = vcmp.eq.f32.partialorder %v2811, 8.507059e+37
        %v2813 = vand.u32 %v2765, 2147483648
        %v2814 = vor.u32 1.1754944e-38, %v2813
        %v2815 = vsel %vm2812, %v2814, %v2810
        %v2816 = vmul.f32 %v2746, %v2815
        %v2817 = vrcp.pop %v2770
        %v2818 = vmul.f32 %v2770, %v2817
        %v2819 = vsub.f32 1.0, %v2818
        %v2820 = vmul.f32 %v2817, %v2819
        %v2821 = vadd.f32 %v2817, %v2820
        %vm2822 = vweird.f32 %v2770
        %vm2823 = vweird.f32 %v2817
        %vm2824 = vmor %vm2822, %vm2823
        %v2825 = vsel %vm2824, %v2817, %v2821
        %v2826 = vand.u32 2147483647, %v2770
        %vm2827 = vcmp.eq.f32.partialorder %v2826, 8.507059e+37
        %v2828 = vand.u32 %v2770, 2147483648
        %v2829 = vor.u32 1.1754944e-38, %v2828
        %v2830 = vsel %vm2827, %v2829, %v2825
        %v2831 = vmul.f32 %v2747, %v2830
        %v2832 = vrot.slane %v2816, 4
        %vm2833 = vcmask 1047556
        %v2834 = vsel %vm2833, %v2832, %v2786
        %v2835 = vrot.slane %v2786, 4
        %v2836 = vsel %vm2833, %v2816, %v2835
        %v2838 = vunpack.c.l.s4 1983009808
        %v2839 = vunpack.c.0.s8 %v2838
        %v2840 = vperm.slane %v2834, %v2839
        %v2842 = vunpack.c.l.s4 1983009808
        %v2843 = vunpack.c.0.s8 %v2842
        %v2844 = vperm.slane %v2836, %v2843
        %v2845 = vrot.slane %v2831, 4
        %v2846 = vsel %vm2833, %v2845, %v2801
        %v2847 = vrot.slane %v2801, 4
        %v2848 = vsel %vm2833, %v2831, %v2847
        %v2850 = vunpack.c.l.s4 1983009808
        %v2851 = vunpack.c.0.s8 %v2850
        %v2852 = vperm.slane %v2846, %v2851
        %v2854 = vunpack.c.l.s4 1983009808
        %v2855 = vunpack.c.0.s8 %v2854
        %v2856 = vperm.slane %v2848, %v2855
        %v2857 = vrot.slane %v2852, 4
        %v2858 = vsel %vm2833, %v2857, %v2840
        %v2859 = vrot.slane %v2840, 4
        %v2860 = vsel %vm2833, %v2852, %v2859
        %v2862 = vunpack.c.l.s4 1934713408
        %v2863 = vunpack.c.0.s8 %v2862
        %v2864 = vperm.slane %v2858, %v2863
        %v2866 = vunpack.c.l.s4 1934713408
        %v2867 = vunpack.c.0.s8 %v2866
        %v2868 = vperm.slane %v2860, %v2867
        %v2869 = vrot.slane %v2856, 4
        %v2870 = vsel %vm2833, %v2869, %v2844
        %v2871 = vrot.slane %v2844, 4
        %v2872 = vsel %vm2833, %v2856, %v2871
        %v2874 = vunpack.c.l.s4 1934713408
        %v2875 = vunpack.c.0.s8 %v2874
        %v2876 = vperm.slane %v2870, %v2875
        %v2878 = vunpack.c.l.s4 1934713408
        %v2879 = vunpack.c.0.s8 %v2878
        %v2880 = vperm.slane %v2872, %v2879
        %v2881 = vrot.slane %v2864, 4
        %v2882 = vsel %vm2833, 0.0, %v2881
        %v2883 = vrot.slane %v2868, 4
        %v2884 = vsel %vm2833, 0.0, %v2883
        %v2885 = vrot.slane %v2876, 4
        %v2886 = vsel %vm2833, 0.0, %v2885
        %v2887 = vrot.slane %v2880, 4
        %v2888 = vsel %vm2833, 0.0, %v2887
        %v2889 = vsel %vm2833, %v2883, %v2864
        %v2891 = vunpack.c.l.s4 1983009808
        %v2892 = vunpack.c.0.s8 %v2891
        %v2893 = vperm.slane %v2889, %v2892
        %v2894 = vrot.slane %v2884, 4
        %v2895 = vsel %vm2833, %v2894, %v2882
        %v2897 = vunpack.c.l.s4 1983009808
        %v2898 = vunpack.c.0.s8 %v2897
        %v2899 = vperm.slane %v2895, %v2898
        %v2900 = vsel %vm2833, %v2887, %v2876
        %v2902 = vunpack.c.l.s4 1983009808
        %v2903 = vunpack.c.0.s8 %v2902
        %v2904 = vperm.slane %v2900, %v2903
        %v2905 = vrot.slane %v2888, 4
        %v2906 = vsel %vm2833, %v2905, %v2886
        %v2908 = vunpack.c.l.s4 1983009808
        %v2909 = vunpack.c.0.s8 %v2908
        %v2910 = vperm.slane %v2906, %v2909
        %v2911 = vrot.slane %v2899, 4
        %v2912 = vsel %vm2833, %v2911, %v2893
        %v2913 = vrot.slane %v2893, 4
        %v2914 = vsel %vm2833, %v2899, %v2913
        %v2916 = vunpack.c.l.s4 1934713408
        %v2917 = vunpack.c.0.s8 %v2916
        %v2918 = vperm.slane %v2912, %v2917
        %v2920 = vunpack.c.l.s4 1934713408
        %v2921 = vunpack.c.0.s8 %v2920
        %v2922 = vperm.slane %v2914, %v2921
        %v2923 = vrot.slane %v2910, 4
        %v2924 = vsel %vm2833, %v2923, %v2904
        %v2925 = vrot.slane %v2904, 4
        %v2926 = vsel %vm2833, %v2910, %v2925
        %v2928 = vunpack.c.l.s4 1934713408
        %v2929 = vunpack.c.0.s8 %v2928
        %v2930 = vperm.slane %v2924, %v2929
        %v2932 = vunpack.c.l.s4 1934713408
        %v2933 = vunpack.c.0.s8 %v2932
        %v2934 = vperm.slane %v2926, %v2933
        %v2935 = vrot.slane %v2930, 4
        %v2936 = vsel %vm2833, %v2935, %v2918
        %v2937 = vrot.slane %v2918, 4
        %v2938 = vsel %vm2833, %v2930, %v2937
        %v2939 = vrot.slane %v2934, 4
        %v2940 = vsel %vm2833, %v2939, %v2922
        %v2941 = vrot.slane %v2922, 4
        %v2942 = vsel %vm2833, %v2934, %v2941
        %2944 = vrot.lane.b32.xlu0 %v2938, 32
        %v2945 = vpop.permute.xlu0 %2944
        %2948 = vrot.lane.b32.xlu0 %v2940, 64
        %v2949 = vpop.permute.xlu0 %2948
        %2952 = vrot.lane.b32.xlu0 %v2942, 96
        %v2953 = vpop.permute.xlu0 %2952
        %v2955 = vsel %vm2366, %v2936, %v2945
        %vm2956 = vcmask 523264
        %v2957 = vsel %vm2956, %v2955, %v2949
        %vm2958 = vcmask 785408
        %v2959 = vsel %vm2958, %v2957, %v2953
        %s2960 = scalar_lea.vmem %s535, %s616 [#allocation8]
        %v2961 = vld [vmem:[%s2960] sm:$0xff]
        %v2962 = vld [vmem:[#allocation17] sm:$0xff]
        %v2963 = vld [vmem:[#allocation17 + $0x8] sm:$0xff]
        %v2964 = vld [vmem:[#allocation17 + $0x10] sm:$0xff]
        %v2965 = vld [vmem:[#allocation17 + $0x18] sm:$0xff]
        %v2966 = vld [vmem:[#allocation17 + $0x20] sm:$0xff]
        %v2967 = vld [vmem:[#allocation17 + $0x28] sm:$0xff]
        %v2968 = vld [vmem:[#allocation17 + $0x30] sm:$0xff]
        %v2969 = vld [vmem:[#allocation17 + $0x38] sm:$0xff]
        %v2970 = vld [vmem:[#allocation17 + $0x40] sm:$0xff]
        %v2971 = vld [vmem:[#allocation17 + $0x48] sm:$0xff]
        %v2972 = vld [vmem:[#allocation17 + $0x50] sm:$0xff]
        %v2973 = vld [vmem:[#allocation17 + $0x58] sm:$0xff]
        %v2974 = vld [vmem:[#allocation17 + $0x60] sm:$0xff]
        %v2975 = vld [vmem:[#allocation17 + $0x68] sm:$0xff]
        %v2976 = vld [vmem:[#allocation17 + $0x70] sm:$0xff]
        %v2977 = vld [vmem:[#allocation17 + $0x78] sm:$0xff]
        %v2978 = vld [vmem:[%s9] sm:$0x1]
        %v2980 = vperm.slane %v2978, 0
        %2982 = vmatpush.msra.mxu0 %v2977
        %2983 = vmatpush.msra.mxu0 %v2976
        %2984 = vmatpush.msra.mxu0 %v2975
        %2985 = vmatpush.msra.mxu0 %v2974
        %2986 = vmatpush.msra.mxu0 %v2973
        %2987 = vmatpush.msra.mxu0 %v2972
        %2988 = vmatpush.msra.mxu0 %v2971
        %2989 = vmatpush.msra.mxu0 %v2970
        %2990 = vmatpush.msra.mxu0 %v2969
        %2991 = vmatpush.msra.mxu0 %v2968
        %2992 = vmatpush.msra.mxu0 %v2967
        %2993 = vmatpush.msra.mxu0 %v2966
        %2994 = vmatpush.msra.mxu0 %v2965
        %2995 = vmatpush.msra.mxu0 %v2964
        %2996 = vmatpush.msra.mxu0 %v2963
        %2997 = vmatpush.msra.mxu0 %v2962
        %2998 = vmatmul.f32.gmra.mxu0 %v2959
        %v2999 = vpop.f32.mrf.mxu0
        %v3000 = vadd.f32 %v2980, %v2999
        %3001 = vdwg.mxu0
        %v3002 = vadd.f32 %v2961, %v3000
        %v3003 = vld [vmem:[%s3] sm:$0x1]
        %v3004 = vld [vmem:[%s4] sm:$0x1]
        %3005 = vadd.xlane.f32.xlu0 %v3002
        %v3006 = vpop.xlane.xlu0 %3005
        %v3007 = vrcp.pop 128.0
        %v3008 = vmul.f32 128.0, %v3007
        %v3009 = vsub.f32 1.0, %v3008
        %v3010 = vmul.f32 %v3007, %v3009
        %v3011 = vadd.f32 %v3007, %v3010
        %vm3012 = vweird.f32 %v3007
        %v3013 = vsel %vm3012, %v3007, %v3011
        %v3014 = vmul.f32 %v3006, %v3013
        %v3015 = vsub.f32 %v3002, %v3014
        %v3016 = vmul.f32 %v3015, %v3015
        %3017 = vadd.xlane.f32.xlu0 %v3016
        %v3018 = vpop.xlane.xlu0 %3017
        %v3019 = vmul.f32 %v3018, %v3013
        %v3020 = vadd.f32 %v3019, 1e-05
        %v3021 = vrsqrt.pop %v3020
        %v3022 = vmul.f32 %v3021, %v3020
        %v3023 = vmul.f32 %v3022, %v3021
        %v3024 = vmul.f32 0.5, %v3023
        %v3025 = vsub.f32 1.5, %v3024
        %v3026 = vmul.f32 %v3021, %v3025
        %vm3027 = vweird.f32 %v3020
        %vm3028 = vweird.f32 %v3021
        %vm3029 = vmor %vm3027, %vm3028
        %v3030 = vsel %vm3029, %v3021, %v3026
        %v3031 = vmul.f32 %v3015, %v3030
        %v3033 = vperm.slane %v3003, 0
        %v3035 = vmul.f32 %v3031, %v3033
        %v3037 = vperm.slane %v3004, 0
        %v3039 = vadd.f32 %v3035, %v3037
        %v3040 = vld [vmem:[#allocation19] sm:$0xff]
        %v3041 = vld [vmem:[#allocation19 + $0x8] sm:$0xff]
        %v3042 = vld [vmem:[#allocation19 + $0x10] sm:$0xff]
        %v3043 = vld [vmem:[#allocation19 + $0x18] sm:$0xff]
        %v3044 = vld [vmem:[#allocation19 + $0x20] sm:$0xff]
        %v3045 = vld [vmem:[#allocation19 + $0x28] sm:$0xff]
        %v3046 = vld [vmem:[#allocation19 + $0x30] sm:$0xff]
        %v3047 = vld [vmem:[#allocation19 + $0x38] sm:$0xff]
        %v3048 = vld [vmem:[#allocation19 + $0x40] sm:$0xff]
        %v3049 = vld [vmem:[#allocation19 + $0x48] sm:$0xff]
        %v3050 = vld [vmem:[#allocation19 + $0x50] sm:$0xff]
        %v3051 = vld [vmem:[#allocation19 + $0x58] sm:$0xff]
        %v3052 = vld [vmem:[#allocation19 + $0x60] sm:$0xff]
        %v3053 = vld [vmem:[#allocation19 + $0x68] sm:$0xff]
        %v3054 = vld [vmem:[#allocation19 + $0x70] sm:$0xff]
        %v3055 = vld [vmem:[#allocation19 + $0x78] sm:$0xff]
        %v3056 = vld [vmem:[#allocation19 + $0x80] sm:$0xff]
        %v3057 = vld [vmem:[#allocation19 + $0x88] sm:$0xff]
        %v3058 = vld [vmem:[#allocation19 + $0x90] sm:$0xff]
        %v3059 = vld [vmem:[#allocation19 + $0x98] sm:$0xff]
        %v3060 = vld [vmem:[#allocation19 + $0xa0] sm:$0xff]
        %v3061 = vld [vmem:[#allocation19 + $0xa8] sm:$0xff]
        %v3062 = vld [vmem:[#allocation19 + $0xb0] sm:$0xff]
        %v3063 = vld [vmem:[#allocation19 + $0xb8] sm:$0xff]
        %v3064 = vld [vmem:[#allocation19 + $0xc0] sm:$0xff]
        %v3065 = vld [vmem:[#allocation19 + $0xc8] sm:$0xff]
        %v3066 = vld [vmem:[#allocation19 + $0xd0] sm:$0xff]
        %v3067 = vld [vmem:[#allocation19 + $0xd8] sm:$0xff]
        %v3068 = vld [vmem:[#allocation19 + $0xe0] sm:$0xff]
        %v3069 = vld [vmem:[#allocation19 + $0xe8] sm:$0xff]
        %v3070 = vld [vmem:[#allocation19 + $0xf0] sm:$0xff]
        %v3071 = vld [vmem:[#allocation19 + $0xf8] sm:$0xff]
        %v3072 = vld [vmem:[#allocation19 + $0x100] sm:$0xff]
        %v3073 = vld [vmem:[#allocation19 + $0x108] sm:$0xff]
        %v3074 = vld [vmem:[#allocation19 + $0x110] sm:$0xff]
        %v3075 = vld [vmem:[#allocation19 + $0x118] sm:$0xff]
        %v3076 = vld [vmem:[#allocation19 + $0x120] sm:$0xff]
        %v3077 = vld [vmem:[#allocation19 + $0x128] sm:$0xff]
        %v3078 = vld [vmem:[#allocation19 + $0x130] sm:$0xff]
        %v3079 = vld [vmem:[#allocation19 + $0x138] sm:$0xff]
        %v3080 = vld [vmem:[#allocation19 + $0x140] sm:$0xff]
        %v3081 = vld [vmem:[#allocation19 + $0x148] sm:$0xff]
        %v3082 = vld [vmem:[#allocation19 + $0x150] sm:$0xff]
        %v3083 = vld [vmem:[#allocation19 + $0x158] sm:$0xff]
        %v3084 = vld [vmem:[#allocation19 + $0x160] sm:$0xff]
        %v3085 = vld [vmem:[#allocation19 + $0x168] sm:$0xff]
        %v3086 = vld [vmem:[#allocation19 + $0x170] sm:$0xff]
        %v3087 = vld [vmem:[#allocation19 + $0x178] sm:$0xff]
        %v3088 = vld [vmem:[#allocation19 + $0x180] sm:$0xff]
        %v3089 = vld [vmem:[#allocation19 + $0x188] sm:$0xff]
        %v3090 = vld [vmem:[#allocation19 + $0x190] sm:$0xff]
        %v3091 = vld [vmem:[#allocation19 + $0x198] sm:$0xff]
        %v3092 = vld [vmem:[#allocation19 + $0x1a0] sm:$0xff]
        %v3093 = vld [vmem:[#allocation19 + $0x1a8] sm:$0xff]
        %v3094 = vld [vmem:[#allocation19 + $0x1b0] sm:$0xff]
        %v3095 = vld [vmem:[#allocation19 + $0x1b8] sm:$0xff]
        %v3096 = vld [vmem:[#allocation19 + $0x1c0] sm:$0xff]
        %v3097 = vld [vmem:[#allocation19 + $0x1c8] sm:$0xff]
        %v3098 = vld [vmem:[#allocation19 + $0x1d0] sm:$0xff]
        %v3099 = vld [vmem:[#allocation19 + $0x1d8] sm:$0xff]
        %v3100 = vld [vmem:[#allocation19 + $0x1e0] sm:$0xff]
        %v3101 = vld [vmem:[#allocation19 + $0x1e8] sm:$0xff]
        %v3102 = vld [vmem:[#allocation19 + $0x1f0] sm:$0xff]
        %v3103 = vld [vmem:[#allocation19 + $0x1f8] sm:$0xff]
        %v3104 = vld [vmem:[%s11] sm:$0xf]
        %v3106 = vperm.slane %v3104, 0
        %v3107 = vperm.slane %v3104, 1
        %v3108 = vperm.slane %v3104, 2
        %v3109 = vperm.slane %v3104, 3
        %3114 = vmatpush.msra.mxu0 %v3100
        %3115 = vmatpush.msra.mxu0 %v3096
        %3116 = vmatpush.msra.mxu0 %v3092
        %3117 = vmatpush.msra.mxu0 %v3088
        %3118 = vmatpush.msra.mxu0 %v3084
        %3119 = vmatpush.msra.mxu0 %v3080
        %3120 = vmatpush.msra.mxu0 %v3076
        %3121 = vmatpush.msra.mxu0 %v3072
        %3122 = vmatpush.msra.mxu0 %v3068
        %3123 = vmatpush.msra.mxu0 %v3064
        %3124 = vmatpush.msra.mxu0 %v3060
        %3125 = vmatpush.msra.mxu0 %v3056
        %3126 = vmatpush.msra.mxu0 %v3052
        %3127 = vmatpush.msra.mxu0 %v3048
        %3128 = vmatpush.msra.mxu0 %v3044
        %3129 = vmatpush.msra.mxu0 %v3040
        %3130 = vmatmul.f32.gmra.mxu0 %v3039
        %v3131 = vpop.f32.mrf.mxu0
        %v3132 = vadd.f32 %v3106, %v3131
        %3133 = vdwg.mxu0
        %3134 = vmatpush.msra.mxu0 %v3101
        %3135 = vmatpush.msra.mxu0 %v3097
        %3136 = vmatpush.msra.mxu0 %v3093
        %3137 = vmatpush.msra.mxu0 %v3089
        %3138 = vmatpush.msra.mxu0 %v3085
        %3139 = vmatpush.msra.mxu0 %v3081
        %3140 = vmatpush.msra.mxu0 %v3077
        %3141 = vmatpush.msra.mxu0 %v3073
        %3142 = vmatpush.msra.mxu0 %v3069
        %3143 = vmatpush.msra.mxu0 %v3065
        %3144 = vmatpush.msra.mxu0 %v3061
        %3145 = vmatpush.msra.mxu0 %v3057
        %3146 = vmatpush.msra.mxu0 %v3053
        %3147 = vmatpush.msra.mxu0 %v3049
        %3148 = vmatpush.msra.mxu0 %v3045
        %3149 = vmatpush.msra.mxu0 %v3041
        %3150 = vmatmul.f32.gmra.mxu0 %v3039
        %v3151 = vpop.f32.mrf.mxu0
        %v3152 = vadd.f32 %v3107, %v3151
        %3153 = vdwg.mxu0
        %3154 = vmatpush.msra.mxu0 %v3102
        %3155 = vmatpush.msra.mxu0 %v3098
        %3156 = vmatpush.msra.mxu0 %v3094
        %3157 = vmatpush.msra.mxu0 %v3090
        %3158 = vmatpush.msra.mxu0 %v3086
        %3159 = vmatpush.msra.mxu0 %v3082
        %3160 = vmatpush.msra.mxu0 %v3078
        %3161 = vmatpush.msra.mxu0 %v3074
        %3162 = vmatpush.msra.mxu0 %v3070
        %3163 = vmatpush.msra.mxu0 %v3066
        %3164 = vmatpush.msra.mxu0 %v3062
        %3165 = vmatpush.msra.mxu0 %v3058
        %3166 = vmatpush.msra.mxu0 %v3054
        %3167 = vmatpush.msra.mxu0 %v3050
        %3168 = vmatpush.msra.mxu0 %v3046
        %3169 = vmatpush.msra.mxu0 %v3042
        %3170 = vmatmul.f32.gmra.mxu0 %v3039
        %v3171 = vpop.f32.mrf.mxu0
        %v3172 = vadd.f32 %v3108, %v3171
        %3173 = vdwg.mxu0
        %3174 = vmatpush.msra.mxu0 %v3103
        %3175 = vmatpush.msra.mxu0 %v3099
        %3176 = vmatpush.msra.mxu0 %v3095
        %3177 = vmatpush.msra.mxu0 %v3091
        %3178 = vmatpush.msra.mxu0 %v3087
        %3179 = vmatpush.msra.mxu0 %v3083
        %3180 = vmatpush.msra.mxu0 %v3079
        %3181 = vmatpush.msra.mxu0 %v3075
        %3182 = vmatpush.msra.mxu0 %v3071
        %3183 = vmatpush.msra.mxu0 %v3067
        %3184 = vmatpush.msra.mxu0 %v3063
        %3185 = vmatpush.msra.mxu0 %v3059
        %3186 = vmatpush.msra.mxu0 %v3055
        %3187 = vmatpush.msra.mxu0 %v3051
        %3188 = vmatpush.msra.mxu0 %v3047
        %3189 = vmatpush.msra.mxu0 %v3043
        %3190 = vmatmul.f32.gmra.mxu0 %v3039
        %v3191 = vpop.f32.mrf.mxu0
        %v3192 = vadd.f32 %v3109, %v3191
        %3193 = vdwg.mxu0
        %v3194 = vmax.f32 %v3132, 0.0
        %v3195 = vmax.f32 %v3152, 0.0
        %v3196 = vmax.f32 %v3172, 0.0
        %v3197 = vmax.f32 %v3192, 0.0
        %v3198 = vld [vmem:[#allocation20] sm:$0xff]
        %v3199 = vld [vmem:[#allocation20 + $0x8] sm:$0xff]
        %v3200 = vld [vmem:[#allocation20 + $0x10] sm:$0xff]
        %v3201 = vld [vmem:[#allocation20 + $0x18] sm:$0xff]
        %v3202 = vld [vmem:[#allocation20 + $0x20] sm:$0xff]
        %v3203 = vld [vmem:[#allocation20 + $0x28] sm:$0xff]
        %v3204 = vld [vmem:[#allocation20 + $0x30] sm:$0xff]
        %v3205 = vld [vmem:[#allocation20 + $0x38] sm:$0xff]
        %v3206 = vld [vmem:[#allocation20 + $0x40] sm:$0xff]
        %v3207 = vld [vmem:[#allocation20 + $0x48] sm:$0xff]
        %v3208 = vld [vmem:[#allocation20 + $0x50] sm:$0xff]
        %v3209 = vld [vmem:[#allocation20 + $0x58] sm:$0xff]
        %v3210 = vld [vmem:[#allocation20 + $0x60] sm:$0xff]
        %v3211 = vld [vmem:[#allocation20 + $0x68] sm:$0xff]
        %v3212 = vld [vmem:[#allocation20 + $0x70] sm:$0xff]
        %v3213 = vld [vmem:[#allocation20 + $0x78] sm:$0xff]
        %v3214 = vld [vmem:[#allocation20 + $0x80] sm:$0xff]
        %v3215 = vld [vmem:[#allocation20 + $0x88] sm:$0xff]
        %v3216 = vld [vmem:[#allocation20 + $0x90] sm:$0xff]
        %v3217 = vld [vmem:[#allocation20 + $0x98] sm:$0xff]
        %v3218 = vld [vmem:[#allocation20 + $0xa0] sm:$0xff]
        %v3219 = vld [vmem:[#allocation20 + $0xa8] sm:$0xff]
        %v3220 = vld [vmem:[#allocation20 + $0xb0] sm:$0xff]
        %v3221 = vld [vmem:[#allocation20 + $0xb8] sm:$0xff]
        %v3222 = vld [vmem:[#allocation20 + $0xc0] sm:$0xff]
        %v3223 = vld [vmem:[#allocation20 + $0xc8] sm:$0xff]
        %v3224 = vld [vmem:[#allocation20 + $0xd0] sm:$0xff]
        %v3225 = vld [vmem:[#allocation20 + $0xd8] sm:$0xff]
        %v3226 = vld [vmem:[#allocation20 + $0xe0] sm:$0xff]
        %v3227 = vld [vmem:[#allocation20 + $0xe8] sm:$0xff]
        %v3228 = vld [vmem:[#allocation20 + $0xf0] sm:$0xff]
        %v3229 = vld [vmem:[#allocation20 + $0xf8] sm:$0xff]
        %v3230 = vld [vmem:[#allocation20 + $0x100] sm:$0xff]
        %v3231 = vld [vmem:[#allocation20 + $0x108] sm:$0xff]
        %v3232 = vld [vmem:[#allocation20 + $0x110] sm:$0xff]
        %v3233 = vld [vmem:[#allocation20 + $0x118] sm:$0xff]
        %v3234 = vld [vmem:[#allocation20 + $0x120] sm:$0xff]
        %v3235 = vld [vmem:[#allocation20 + $0x128] sm:$0xff]
        %v3236 = vld [vmem:[#allocation20 + $0x130] sm:$0xff]
        %v3237 = vld [vmem:[#allocation20 + $0x138] sm:$0xff]
        %v3238 = vld [vmem:[#allocation20 + $0x140] sm:$0xff]
        %v3239 = vld [vmem:[#allocation20 + $0x148] sm:$0xff]
        %v3240 = vld [vmem:[#allocation20 + $0x150] sm:$0xff]
        %v3241 = vld [vmem:[#allocation20 + $0x158] sm:$0xff]
        %v3242 = vld [vmem:[#allocation20 + $0x160] sm:$0xff]
        %v3243 = vld [vmem:[#allocation20 + $0x168] sm:$0xff]
        %v3244 = vld [vmem:[#allocation20 + $0x170] sm:$0xff]
        %v3245 = vld [vmem:[#allocation20 + $0x178] sm:$0xff]
        %v3246 = vld [vmem:[#allocation20 + $0x180] sm:$0xff]
        %v3247 = vld [vmem:[#allocation20 + $0x188] sm:$0xff]
        %v3248 = vld [vmem:[#allocation20 + $0x190] sm:$0xff]
        %v3249 = vld [vmem:[#allocation20 + $0x198] sm:$0xff]
        %v3250 = vld [vmem:[#allocation20 + $0x1a0] sm:$0xff]
        %v3251 = vld [vmem:[#allocation20 + $0x1a8] sm:$0xff]
        %v3252 = vld [vmem:[#allocation20 + $0x1b0] sm:$0xff]
        %v3253 = vld [vmem:[#allocation20 + $0x1b8] sm:$0xff]
        %v3254 = vld [vmem:[#allocation20 + $0x1c0] sm:$0xff]
        %v3255 = vld [vmem:[#allocation20 + $0x1c8] sm:$0xff]
        %v3256 = vld [vmem:[#allocation20 + $0x1d0] sm:$0xff]
        %v3257 = vld [vmem:[#allocation20 + $0x1d8] sm:$0xff]
        %v3258 = vld [vmem:[#allocation20 + $0x1e0] sm:$0xff]
        %v3259 = vld [vmem:[#allocation20 + $0x1e8] sm:$0xff]
        %v3260 = vld [vmem:[#allocation20 + $0x1f0] sm:$0xff]
        %v3261 = vld [vmem:[#allocation20 + $0x1f8] sm:$0xff]
        %v3262 = vld [vmem:[%s13] sm:$0x1]
        %v3264 = vperm.slane %v3262, 0
        %3266 = vmatpush.msra.mxu0 %v3213
        %3267 = vmatpush.msra.mxu0 %v3212
        %3268 = vmatpush.msra.mxu0 %v3211
        %3269 = vmatpush.msra.mxu0 %v3210
        %3270 = vmatpush.msra.mxu0 %v3209
        %3271 = vmatpush.msra.mxu0 %v3208
        %3272 = vmatpush.msra.mxu0 %v3207
        %3273 = vmatpush.msra.mxu0 %v3206
        %3274 = vmatpush.msra.mxu0 %v3205
        %3275 = vmatpush.msra.mxu0 %v3204
        %3276 = vmatpush.msra.mxu0 %v3203
        %3277 = vmatpush.msra.mxu0 %v3202
        %3278 = vmatpush.msra.mxu0 %v3201
        %3279 = vmatpush.msra.mxu0 %v3200
        %3280 = vmatpush.msra.mxu0 %v3199
        %3281 = vmatpush.msra.mxu0 %v3198
        %3282 = vmatmul.f32.gmra.mxu0 %v3194
        %v3283 = vpop.f32.mrf.mxu0
        %v3284 = vadd.f32 %v3264, %v3283
        %3285 = vdwg.mxu0
        %3286 = vmatpush.msra.mxu0 %v3229
        %3287 = vmatpush.msra.mxu0 %v3228
        %3288 = vmatpush.msra.mxu0 %v3227
        %3289 = vmatpush.msra.mxu0 %v3226
        %3290 = vmatpush.msra.mxu0 %v3225
        %3291 = vmatpush.msra.mxu0 %v3224
        %3292 = vmatpush.msra.mxu0 %v3223
        %3293 = vmatpush.msra.mxu0 %v3222
        %3294 = vmatpush.msra.mxu0 %v3221
        %3295 = vmatpush.msra.mxu0 %v3220
        %3296 = vmatpush.msra.mxu0 %v3219
        %3297 = vmatpush.msra.mxu0 %v3218
        %3298 = vmatpush.msra.mxu0 %v3217
        %3299 = vmatpush.msra.mxu0 %v3216
        %3300 = vmatpush.msra.mxu0 %v3215
        %3301 = vmatpush.msra.mxu0 %v3214
        %3302 = vmatmul.f32.gmra.mxu0 %v3195
        %v3303 = vpop.f32.mrf.mxu0
        %v3304 = vadd.f32 %v3284, %v3303
        %3305 = vdwg.mxu0
        %3306 = vmatpush.msra.mxu0 %v3245
        %3307 = vmatpush.msra.mxu0 %v3244
        %3308 = vmatpush.msra.mxu0 %v3243
        %3309 = vmatpush.msra.mxu0 %v3242
        %3310 = vmatpush.msra.mxu0 %v3241
        %3311 = vmatpush.msra.mxu0 %v3240
        %3312 = vmatpush.msra.mxu0 %v3239
        %3313 = vmatpush.msra.mxu0 %v3238
        %3314 = vmatpush.msra.mxu0 %v3237
        %3315 = vmatpush.msra.mxu0 %v3236
        %3316 = vmatpush.msra.mxu0 %v3235
        %3317 = vmatpush.msra.mxu0 %v3234
        %3318 = vmatpush.msra.mxu0 %v3233
        %3319 = vmatpush.msra.mxu0 %v3232
        %3320 = vmatpush.msra.mxu0 %v3231
        %3321 = vmatpush.msra.mxu0 %v3230
        %3322 = vmatmul.f32.gmra.mxu0 %v3196
        %v3323 = vpop.f32.mrf.mxu0
        %v3324 = vadd.f32 %v3304, %v3323
        %3325 = vdwg.mxu0
        %3326 = vmatpush.msra.mxu0 %v3261
        %3327 = vmatpush.msra.mxu0 %v3260
        %3328 = vmatpush.msra.mxu0 %v3259
        %3329 = vmatpush.msra.mxu0 %v3258
        %3330 = vmatpush.msra.mxu0 %v3257
        %3331 = vmatpush.msra.mxu0 %v3256
        %3332 = vmatpush.msra.mxu0 %v3255
        %3333 = vmatpush.msra.mxu0 %v3254
        %3334 = vmatpush.msra.mxu0 %v3253
        %3335 = vmatpush.msra.mxu0 %v3252
        %3336 = vmatpush.msra.mxu0 %v3251
        %3337 = vmatpush.msra.mxu0 %v3250
        %3338 = vmatpush.msra.mxu0 %v3249
        %3339 = vmatpush.msra.mxu0 %v3248
        %3340 = vmatpush.msra.mxu0 %v3247
        %3341 = vmatpush.msra.mxu0 %v3246
        %3342 = vmatmul.f32.gmra.mxu0 %v3197
        %v3343 = vpop.f32.mrf.mxu0
        %v3344 = vadd.f32 %v3324, %v3343
        %3345 = vdwg.mxu0
        %v3346 = vadd.f32 %v3002, %v3344
        %3347 = vst [vmem:[%s615] sm:$0xff] %v3346
        %s3348 = sand.u32 %s356, 1
        %s3349 = scalar_lea.sflag [#allocation10], %s3348
        %s3350 = sand.u32 %s356, 1
        %s3351 = smul.addr %s3350, 8
        %s3352 = scalar_lea.vmem [#allocation22], %s3351
        // Predicated region
        $region120: #{tpu_custom_call.1} parent=75 // pred_check
          %p3353 = pneg %p366
        $region121: #{tpu_custom_call.1} parent=75 // pred_check_branch
          %3355 = sbr.rel (%p3353) target = $region123
        $region122: #{tpu_custom_call.1} parent=75 // pred_region
          %3357 = vsyncadd %s3349, 0
          %s3358 = smul.addr %s39, 4
          %s3359 = sadd.s32 %s40, %s3358
          %s3360 = smul.addr %s3359, 8
          %s3361 = scalar_lea.hbm %s14, %s3360
          %s3363 = sshll.u32 %s3352, 4
          %s3364 = int_to_ptr.vmem [resolvable:$true] %s3363
          %s3365 = sshll.u32 %s3361, 4
          %s3366 = int_to_ptr.hbm [resolvable:$true] %s3365
          %3368 = dma.vmem_to_hbm [thread:$0]  %s3364, 128, %s3366, %s3349
        $region123: #{tpu_custom_call.1} parent=75 // pred_fallthru
          _
      $region76: #{tpu_custom_call.1} parent=5 // pred_fallthru
        _
      %p3369 = scmp.le.s32.totalorder 2, %s30
      // Predicated region
      $region124: #{tpu_custom_call.1} parent=5 // pred_check
        %p3370 = pneg %p3369
      $region125: #{tpu_custom_call.1} parent=5 // pred_check_branch
        %3372 = sbr.rel (%p3370) target = $region127
      $region126: #{tpu_custom_call.1} parent=5 // pred_region
        %s3373 = ssub.s32 %s30, 2
        // Predicated region
        $region128: #{tpu_custom_call.1} parent=126 // pred_check
          %p3374 = pneg %p372
        $region129: #{tpu_custom_call.1} parent=126 // pred_check_branch
          %3376 = sbr.rel (%p3374) target = $region131
        $region130: #{tpu_custom_call.1} parent=126 // pred_region
          %s3377 = sand.u32 %s357, 1
          %s3378 = scalar_lea.sflag [#allocation10], %s3377
          %s3379 = sand.u32 %s357, 1
          %s3380 = smul.addr %s3379, 8
          %s3381 = scalar_lea.vmem [#allocation22], %s3380
          %3383 = dma.done %s3378, 128
        $region131: #{tpu_custom_call.1} parent=126 // pred_fallthru
          _
      $region127: #{tpu_custom_call.1} parent=5 // pred_fallthru
        _
    $region6: #{tpu_custom_call.1} parent=1 // loop_footer
      %s34 = sadd.s32 1, %s30
    $region7: #{tpu_custom_call.1} parent=1 // loop_footer_branch
      %29 = sbr.rel target = $region3
    $region8: #{tpu_custom_call.1} parent=1 // loop_exit
      _
    %3384 = vsyncpa [#allocation9], 1
    %s3385 = scalar_lea.sflag [#allocation9], 1
    %3386 = vsyncpa %s3385, 1
    %3387 = vsyncpa [#allocation12], 1
    %3388 = vsyncpa [#allocation15], 1
    %3389 = vsyncpa [#allocation18], 1
    %3390 = vsyncpa [#allocation21], 1
    %3391 = vsyncpa [#allocation10], 1
    %s3392 = scalar_lea.sflag [#allocation10], 1
    %3393 = vsyncpa %s3392, 1

</llo_original>
